<compile_context>
chip_gen: v6e
topology: v6e:2x2x1
jax: 0.10.0
libtpu: 0.0.40
codegen_flags: <defaults>
</compile_context>

<pallas_src>
import jax
import jax.numpy as jnp
from jax import lax
from jax.experimental import pallas as pl
from jax.experimental.pallas import tpu as pltpu

# ---------------- small GPT-2 config (synthetic weights) ----------------
VOCAB = 256
N_CTX = 8
D_MODEL = 32
N_HEAD = 4
HEAD_DIM = D_MODEL // N_HEAD
N_LAYER = 2
D_MLP = 4 * D_MODEL
LN_EPS = 1e-5


# ---------------- fused forward kernel (runs once per batch element) ----------------
def _gpt2_fused_kernel(h_ref, mask_ref,
                       ln1_g_ref, ln1_b_ref, attn_w_ref, attn_b_ref,
                       proj_w_ref, proj_b_ref, ln2_g_ref, ln2_b_ref,
                       fc_w_ref, fc_b_ref, fc2_w_ref, fc2_b_ref,
                       lnf_g_ref, lnf_b_ref, wte_ref, out_ref):
    f32 = jnp.float32
    bf16 = jnp.bfloat16
    T = h_ref.shape[1]
    D = h_ref.shape[2]
    scale = 1.0 / (HEAD_DIM ** 0.5)

    def ln(x, g, b):
        mu = jnp.mean(x, axis=-1, keepdims=True)
        var = jnp.mean(jnp.square(x - mu), axis=-1, keepdims=True)
        return (x - mu) * lax.rsqrt(var + LN_EPS) * g + b

    x = h_ref[0].astype(f32)                                        # (T, D)

    # additive causal + key-padding bias, built once in VMEM (no HBM (BH,T,T) mask)
    rows = lax.broadcasted_iota(jnp.int32, (T, T), 0)
    cols = lax.broadcasted_iota(jnp.int32, (T, T), 1)
    keep = jnp.logical_and(rows >= cols, mask_ref[0] > 0.5)         # (T, T)
    bias = jnp.where(keep, 0.0, -1e9).astype(f32)

    for l in range(N_LAYER):
        # ---------------- attention block ----------------
        xn = ln(x, ln1_g_ref[l].astype(f32), ln1_b_ref[l].astype(f32))
        qkv = jnp.dot(xn.astype(bf16), attn_w_ref[l],
                      preferred_element_type=f32) + attn_b_ref[l].astype(f32)   # (T, 3D)
        pw = proj_w_ref[l]                                           # (D, D) bf16
        attn_out = jnp.zeros((T, D), f32)
        for hh in range(N_HEAD):
            lo = hh * HEAD_DIM
            q_h = qkv[:, lo:lo + HEAD_DIM]                           # (T, hd)
            k_h = qkv[:, D + lo:D + lo + HEAD_DIM]
            v_h = qkv[:, 2 * D + lo:2 * D + lo + HEAD_DIM]
            # scores: q_h @ k_h^T (transposed contraction, no relayout)
            s = lax.dot_general(q_h.astype(bf16), k_h.astype(bf16),
                                (((1,), (1,)), ((), ())),
                                preferred_element_type=f32) * scale
            s = s + bias
            s = s - jnp.max(s, axis=-1, keepdims=True)
            p = jnp.exp(s)                                           # f32 softmax
            p = p * pl.reciprocal(jnp.sum(p, axis=-1, keepdims=True), approx=True)
            o_h = jnp.dot(p.astype(bf16), v_h.astype(bf16),
                          preferred_element_type=f32)                # (T, hd)
            # fuse "concat heads" into the output projection: per-head proj_w rows
            attn_out = attn_out + jnp.dot(
                o_h.astype(bf16), pw[lo:lo + HEAD_DIM, :],
                preferred_element_type=f32)
        x = x + attn_out + proj_b_ref[l].astype(f32)

        # ---------------- MLP block ----------------
        xn2 = ln(x, ln2_g_ref[l].astype(f32), ln2_b_ref[l].astype(f32))
        hmid = jnp.dot(xn2.astype(bf16), fc_w_ref[l],
                       preferred_element_type=f32) + fc_b_ref[l].astype(f32)
        # GPT-2 "gelu_new" (tanh approximation), f32 (tanh -> EUP)
        hmid = 0.5 * hmid * (1.0 + jnp.tanh(
            0.7978845608028654 * (hmid + 0.044715 * hmid * hmid * hmid)))
        x = x + jnp.dot(hmid.astype(bf16), fc2_w_ref[l],
                        preferred_element_type=f32) + fc2_b_ref[l].astype(f32)

    # ---------------- final LN + tied lm_head ----------------
    xn = ln(x, lnf_g_ref[...].astype(f32), lnf_b_ref[...].astype(f32))
    logits = lax.dot_general(xn.astype(bf16), wte_ref[...],
                             (((1,), (1,)), ((), ())),
                             preferred_element_type=f32)             # (T, VOCAB)
    out_ref[0] = logits.astype(out_ref.dtype)


# ---------------- deterministic parameter init (synthetic GPT-2, stacked layers) ----
def init_params(key):
    ks = jax.random.split(key, 2 + 4 * N_LAYER)
    std = 0.02

    def rnd(k, shape):
        return jax.random.normal(k, shape, jnp.float32) * std

    L = N_LAYER
    attn_w = jnp.stack([rnd(ks[2 + 4 * l + 0], (D_MODEL, 3 * D_MODEL)) for l in range(L)])
    proj_w = jnp.stack([rnd(ks[2 + 4 * l + 1], (D_MODEL, D_MODEL)) for l in range(L)])
    fc_w = jnp.stack([rnd(ks[2 + 4 * l + 2], (D_MODEL, D_MLP)) for l in range(L)])
    fc2_w = jnp.stack([rnd(ks[2 + 4 * l + 3], (D_MLP, D_MODEL)) for l in range(L)])

    return {
        # dense weights stored bf16 (MXU-native); LN params & biases stay f32
        "wte": rnd(ks[0], (VOCAB, D_MODEL)).astype(jnp.bfloat16),
        "wpe": rnd(ks[1], (N_CTX, D_MODEL)),
        "lnf_g": jnp.ones((1, D_MODEL), jnp.float32),
        "lnf_b": jnp.zeros((1, D_MODEL), jnp.float32),
        "ln1_g": jnp.ones((L, 1, D_MODEL), jnp.float32),
        "ln1_b": jnp.zeros((L, 1, D_MODEL), jnp.float32),
        "attn_w": attn_w.astype(jnp.bfloat16),
        "attn_b": jnp.zeros((L, 1, 3 * D_MODEL), jnp.float32),
        "proj_w": proj_w.astype(jnp.bfloat16),
        "proj_b": jnp.zeros((L, 1, D_MODEL), jnp.float32),
        "ln2_g": jnp.ones((L, 1, D_MODEL), jnp.float32),
        "ln2_b": jnp.zeros((L, 1, D_MODEL), jnp.float32),
        "fc_w": fc_w.astype(jnp.bfloat16),
        "fc_b": jnp.zeros((L, 1, D_MLP), jnp.float32),
        "fc2_w": fc2_w.astype(jnp.bfloat16),
        "fc2_b": jnp.zeros((L, 1, D_MODEL), jnp.float32),
    }


# ---------------- forward pass (== InstructionGenerationModel.forward) ----------------
def instruction_generation_forward(params, input_ids, attention_mask):
    B, T = input_ids.shape
    L = N_LAYER

    # embeddings (plain-JAX glue: gather; tiny, runs once)
    h = jnp.take(params["wte"], input_ids, axis=0).astype(jnp.float32) \
        + params["wpe"][None, :T, :]                                  # (B, T, D)
    key_mask = attention_mask.astype(jnp.float32)[:, None, :]         # (B, 1, T)

    bcast = lambda b: (0, 0, 0)
    bcast2 = lambda b: (0, 0)

    logits = pl.pallas_call(
        _gpt2_fused_kernel,
        out_shape=jax.ShapeDtypeStruct((B, T, VOCAB), jnp.float32),
        grid=(B,),
        in_specs=[
            pl.BlockSpec((1, T, D_MODEL), lambda b: (b, 0, 0)),          # h
            pl.BlockSpec((1, 1, T), lambda b: (b, 0, 0)),                # key mask
            pl.BlockSpec((L, 1, D_MODEL), bcast),                        # ln1_g
            pl.BlockSpec((L, 1, D_MODEL), bcast),                        # ln1_b
            pl.BlockSpec((L, D_MODEL, 3 * D_MODEL), bcast),              # attn_w
            pl.BlockSpec((L, 1, 3 * D_MODEL), bcast),                    # attn_b
            pl.BlockSpec((L, D_MODEL, D_MODEL), bcast),                  # proj_w
            pl.BlockSpec((L, 1, D_MODEL), bcast),                        # proj_b
            pl.BlockSpec((L, 1, D_MODEL), bcast),                        # ln2_g
            pl.BlockSpec((L, 1, D_MODEL), bcast),                        # ln2_b
            pl.BlockSpec((L, D_MODEL, D_MLP), bcast),                    # fc_w
            pl.BlockSpec((L, 1, D_MLP), bcast),                          # fc_b
            pl.BlockSpec((L, D_MLP, D_MODEL), bcast),                    # fc2_w
            pl.BlockSpec((L, 1, D_MODEL), bcast),                        # fc2_b
            pl.BlockSpec((1, D_MODEL), bcast2),                          # lnf_g
            pl.BlockSpec((1, D_MODEL), bcast2),                          # lnf_b
            pl.BlockSpec((VOCAB, D_MODEL), bcast2),                      # wte (tied head)
        ],
        out_specs=pl.BlockSpec((1, T, VOCAB), lambda b: (b, 0, 0)),
        compiler_params=pltpu.CompilerParams(
            dimension_semantics=("parallel",)),                          # 2 TCs on v7x
    )(h, key_mask,
      params["ln1_g"], params["ln1_b"], params["attn_w"], params["attn_b"],
      params["proj_w"], params["proj_b"], params["ln2_g"], params["ln2_b"],
      params["fc_w"], params["fc_b"], params["fc2_w"], params["fc2_b"],
      params["lnf_g"], params["lnf_b"], params["wte"])
    return logits


if __name__ == "__main__":
    key = jax.random.PRNGKey(0)
    pkey, ikey = jax.random.split(key)
    params = init_params(pkey)

    B, T = 2, N_CTX
    input_ids = jax.random.randint(ikey, (B, T), 0, VOCAB, dtype=jnp.int32)
    attention_mask = jnp.array(
        [[1, 1, 1, 1, 1, 1, 1, 1],
         [1, 1, 1, 1, 1, 1, 0, 0]], dtype=jnp.int32)   # second sequence padded

    fwd = jax.jit(instruction_generation_forward)
    logits = fwd(params, input_ids, attention_mask)
    logits = jax.block_until_ready(logits)
    assert logits.shape == (B, T, VOCAB), logits.shape
    assert bool(jnp.all(jnp.isfinite(logits)))
    print("KERNEL_OK")
</pallas_src>

<mosaic_0001>
module attributes {stable_mosaic.version = 11 : i64} {
  func.func @_gpt2_fused_kernel(%arg0: i32, %arg1: memref<1x8x32xf32, #tpu.memory_space<vmem>>, %arg2: memref<1x1x8xf32, #tpu.memory_space<vmem>>, %arg3: memref<2x1x32xf32, #tpu.memory_space<vmem>>, %arg4: memref<2x1x32xf32, #tpu.memory_space<vmem>>, %arg5: memref<2x32x96xbf16, #tpu.memory_space<vmem>>, %arg6: memref<2x1x96xf32, #tpu.memory_space<vmem>>, %arg7: memref<2x32x32xbf16, #tpu.memory_space<vmem>>, %arg8: memref<2x1x32xf32, #tpu.memory_space<vmem>>, %arg9: memref<2x1x32xf32, #tpu.memory_space<vmem>>, %arg10: memref<2x1x32xf32, #tpu.memory_space<vmem>>, %arg11: memref<2x32x128xbf16, #tpu.memory_space<vmem>>, %arg12: memref<2x1x128xf32, #tpu.memory_space<vmem>>, %arg13: memref<2x128x32xbf16, #tpu.memory_space<vmem>>, %arg14: memref<2x1x32xf32, #tpu.memory_space<vmem>>, %arg15: memref<1x32xf32, #tpu.memory_space<vmem>>, %arg16: memref<1x32xf32, #tpu.memory_space<vmem>>, %arg17: memref<256x32xbf16, #tpu.memory_space<vmem>>, %arg18: memref<1x8x256xf32, #tpu.memory_space<vmem>>) attributes {dimension_semantics = [#tpu.dimension_semantics<parallel>], iteration_bounds = array<i64: 2>, scalar_prefetch = 0 : i64, scratch_operands = 0 : i64, tpu.core_type = #tpu.core_type<tc>, window_params = [{transform_indices = @transform_0, window_bounds = array<i64: 1, 8, 32>}, {transform_indices = @transform_1, window_bounds = array<i64: 1, 1, 8>}, {pipeline_mode = #tpu.pipeline_mode<synchronous>, transform_indices = @transform_2, window_bounds = array<i64: 2, 1, 32>}, {pipeline_mode = #tpu.pipeline_mode<synchronous>, transform_indices = @transform_3, window_bounds = array<i64: 2, 1, 32>}, {pipeline_mode = #tpu.pipeline_mode<synchronous>, transform_indices = @transform_4, window_bounds = array<i64: 2, 32, 96>}, {pipeline_mode = #tpu.pipeline_mode<synchronous>, transform_indices = @transform_5, window_bounds = array<i64: 2, 1, 96>}, {pipeline_mode = #tpu.pipeline_mode<synchronous>, transform_indices = @transform_6, window_bounds = array<i64: 2, 32, 32>}, {pipeline_mode = #tpu.pipeline_mode<synchronous>, transform_indices = @transform_7, window_bounds = array<i64: 2, 1, 32>}, {pipeline_mode = #tpu.pipeline_mode<synchronous>, transform_indices = @transform_8, window_bounds = array<i64: 2, 1, 32>}, {pipeline_mode = #tpu.pipeline_mode<synchronous>, transform_indices = @transform_9, window_bounds = array<i64: 2, 1, 32>}, {pipeline_mode = #tpu.pipeline_mode<synchronous>, transform_indices = @transform_10, window_bounds = array<i64: 2, 32, 128>}, {pipeline_mode = #tpu.pipeline_mode<synchronous>, transform_indices = @transform_11, window_bounds = array<i64: 2, 1, 128>}, {pipeline_mode = #tpu.pipeline_mode<synchronous>, transform_indices = @transform_12, window_bounds = array<i64: 2, 128, 32>}, {pipeline_mode = #tpu.pipeline_mode<synchronous>, transform_indices = @transform_13, window_bounds = array<i64: 2, 1, 32>}, {pipeline_mode = #tpu.pipeline_mode<synchronous>, transform_indices = @transform_14, window_bounds = array<i64: 1, 32>}, {pipeline_mode = #tpu.pipeline_mode<synchronous>, transform_indices = @transform_15, window_bounds = array<i64: 1, 32>}, {pipeline_mode = #tpu.pipeline_mode<synchronous>, transform_indices = @transform_16, window_bounds = array<i64: 256, 32>}, {transform_indices = @transform_17, window_bounds = array<i64: 1, 8, 256>}]} {
    %c0 = arith.constant 0 : index
    %c0_0 = arith.constant 0 : index
    %c0_1 = arith.constant 0 : index
    %0 = vector.load %arg1[%c0, %c0_0, %c0_1] : memref<1x8x32xf32, #tpu.memory_space<vmem>>, vector<1x8x32xf32>
    %1 = vector.shape_cast %0 : vector<1x8x32xf32> to vector<8x32xf32>
    %2 = tpu.iota {dimensions = array<i32: 0>} : vector<8x8xi32>
    %3 = tpu.iota {dimensions = array<i32: 1>} : vector<8x8xi32>
    %4 = arith.cmpi sge, %2, %3 : vector<8x8xi32>
    %c0_2 = arith.constant 0 : index
    %c0_3 = arith.constant 0 : index
    %c0_4 = arith.constant 0 : index
    %5 = vector.load %arg2[%c0_2, %c0_3, %c0_4] : memref<1x1x8xf32, #tpu.memory_space<vmem>>, vector<1x1x8xf32>
    %6 = vector.shape_cast %5 : vector<1x1x8xf32> to vector<1x8xf32>
    %cst = arith.constant 5.000000e-01 : f32
    %7 = vector.broadcast %cst : f32 to vector<1x8xf32>
    %8 = arith.cmpf ogt, %6, %7 : vector<1x8xf32>
    %9 = vector.broadcast %8 : vector<1x8xi1> to vector<8x8xi1>
    %10 = arith.andi %4, %9 : vector<8x8xi1>
    %cst_5 = arith.constant 0.000000e+00 : f32
    %cst_6 = arith.constant -1.000000e+09 : f32
    %11 = vector.broadcast %cst_5 : f32 to vector<8x8xf32>
    %12 = vector.broadcast %cst_6 : f32 to vector<8x8xf32>
    %13 = arith.select %10, %11, %12 : vector<8x8xi1>, vector<8x8xf32>
    %c0_7 = arith.constant 0 : index
    %c0_8 = arith.constant 0 : index
    %c0_9 = arith.constant 0 : index
    %14 = vector.load %arg3[%c0_7, %c0_8, %c0_9] : memref<2x1x32xf32, #tpu.memory_space<vmem>>, vector<1x1x32xf32>
    %15 = vector.shape_cast %14 : vector<1x1x32xf32> to vector<1x32xf32>
    %c0_10 = arith.constant 0 : index
    %c0_11 = arith.constant 0 : index
    %c0_12 = arith.constant 0 : index
    %16 = vector.load %arg4[%c0_10, %c0_11, %c0_12] : memref<2x1x32xf32, #tpu.memory_space<vmem>>, vector<1x1x32xf32>
    %17 = vector.shape_cast %16 : vector<1x1x32xf32> to vector<1x32xf32>
    %cst_13 = arith.constant dense<0.000000e+00> : vector<8xf32>
    %18 = vector.multi_reduction <add>, %1, %cst_13 [1] : vector<8x32xf32> to vector<8xf32>
    %19 = vector.shape_cast %18 : vector<8xf32> to vector<8x1xf32>
    %cst_14 = arith.constant 3.200000e+01 : f32
    %20 = vector.broadcast %cst_14 : f32 to vector<8x1xf32>
    %21 = arith.divf %19, %20 : vector<8x1xf32>
    %22 = vector.broadcast %21 : vector<8x1xf32> to vector<8x32xf32>
    %23 = arith.subf %1, %22 : vector<8x32xf32>
    %24 = arith.mulf %23, %23 : vector<8x32xf32>
    %cst_15 = arith.constant dense<0.000000e+00> : vector<8xf32>
    %25 = vector.multi_reduction <add>, %24, %cst_15 [1] : vector<8x32xf32> to vector<8xf32>
    %26 = vector.shape_cast %25 : vector<8xf32> to vector<8x1xf32>
    %cst_16 = arith.constant 3.200000e+01 : f32
    %27 = vector.broadcast %cst_16 : f32 to vector<8x1xf32>
    %28 = arith.divf %26, %27 : vector<8x1xf32>
    %29 = vector.broadcast %21 : vector<8x1xf32> to vector<8x32xf32>
    %30 = arith.subf %1, %29 : vector<8x32xf32>
    %cst_17 = arith.constant 9.99999974E-6 : f32
    %31 = vector.broadcast %cst_17 : f32 to vector<8x1xf32>
    %32 = arith.addf %28, %31 : vector<8x1xf32>
    %33 = math.rsqrt %32 : vector<8x1xf32>
    %34 = vector.broadcast %33 : vector<8x1xf32> to vector<8x32xf32>
    %35 = arith.mulf %30, %34 : vector<8x32xf32>
    %36 = vector.broadcast %15 : vector<1x32xf32> to vector<8x32xf32>
    %37 = arith.mulf %35, %36 : vector<8x32xf32>
    %38 = vector.broadcast %17 : vector<1x32xf32> to vector<8x32xf32>
    %39 = arith.addf %37, %38 : vector<8x32xf32>
    %40 = arith.truncf %39 : vector<8x32xf32> to vector<8x32xbf16>
    %c0_18 = arith.constant 0 : index
    %c0_19 = arith.constant 0 : index
    %c0_20 = arith.constant 0 : index
    %41 = vector.load %arg5[%c0_18, %c0_19, %c0_20] : memref<2x32x96xbf16, #tpu.memory_space<vmem>>, vector<1x32x96xbf16>
    %42 = vector.shape_cast %41 : vector<1x32x96xbf16> to vector<32x96xbf16>
    %cst_21 = arith.constant dense<0.000000e+00> : vector<8x96xf32>
    %43 = tpu.matmul %40, %42, %cst_21 {dimension_numbers = #tpu.dot_dimension_numbers<[1], [0], [0], [1], [0, 0, 1, 1], [], []>} : vector<8x32xbf16>, vector<32x96xbf16>, vector<8x96xf32> -> vector<8x96xf32>
    %c0_22 = arith.constant 0 : index
    %c0_23 = arith.constant 0 : index
    %c0_24 = arith.constant 0 : index
    %44 = vector.load %arg6[%c0_22, %c0_23, %c0_24] : memref<2x1x96xf32, #tpu.memory_space<vmem>>, vector<1x1x96xf32>
    %45 = vector.shape_cast %44 : vector<1x1x96xf32> to vector<1x96xf32>
    %46 = vector.broadcast %45 : vector<1x96xf32> to vector<8x96xf32>
    %47 = arith.addf %43, %46 : vector<8x96xf32>
    %c0_25 = arith.constant 0 : index
    %c0_26 = arith.constant 0 : index
    %c0_27 = arith.constant 0 : index
    %48 = vector.load %arg7[%c0_25, %c0_26, %c0_27] : memref<2x32x32xbf16, #tpu.memory_space<vmem>>, vector<1x32x32xbf16>
    %49 = vector.shape_cast %48 : vector<1x32x32xbf16> to vector<32x32xbf16>
    %cst_28 = arith.constant 0.000000e+00 : f32
    %50 = vector.broadcast %cst_28 : f32 to vector<8x32xf32>
    %51 = vector.extract_strided_slice %47 {offsets = [0, 0], sizes = [8, 8], strides = [1, 1]} : vector<8x96xf32> to vector<8x8xf32>
    %52 = vector.extract_strided_slice %47 {offsets = [0, 32], sizes = [8, 8], strides = [1, 1]} : vector<8x96xf32> to vector<8x8xf32>
    %53 = vector.extract_strided_slice %47 {offsets = [0, 64], sizes = [8, 8], strides = [1, 1]} : vector<8x96xf32> to vector<8x8xf32>
    %54 = arith.truncf %51 : vector<8x8xf32> to vector<8x8xbf16>
    %55 = arith.truncf %52 : vector<8x8xf32> to vector<8x8xbf16>
    %cst_29 = arith.constant dense<0.000000e+00> : vector<8x8xf32>
    %56 = tpu.matmul %54, %55, %cst_29 {dimension_numbers = #tpu.dot_dimension_numbers<[1], [1], [0], [0], [0, 0, 1, 0], [], []>} : vector<8x8xbf16>, vector<8x8xbf16>, vector<8x8xf32> -> vector<8x8xf32>
    %cst_30 = arith.constant 0.353553385 : f32
    %57 = vector.broadcast %cst_30 : f32 to vector<8x8xf32>
    %58 = arith.mulf %56, %57 : vector<8x8xf32>
    %59 = arith.addf %58, %13 : vector<8x8xf32>
    %cst_31 = arith.constant dense<0xFF800000> : vector<8xf32>
    %60 = vector.multi_reduction <maximumf>, %59, %cst_31 [1] : vector<8x8xf32> to vector<8xf32>
    %61 = vector.shape_cast %60 : vector<8xf32> to vector<8x1xf32>
    %62 = vector.broadcast %61 : vector<8x1xf32> to vector<8x8xf32>
    %63 = arith.subf %59, %62 : vector<8x8xf32>
    %64 = math.exp %63 : vector<8x8xf32>
    %cst_32 = arith.constant dense<0.000000e+00> : vector<8xf32>
    %65 = vector.multi_reduction <add>, %64, %cst_32 [1] : vector<8x8xf32> to vector<8xf32>
    %66 = vector.shape_cast %65 : vector<8xf32> to vector<8x1xf32>
    %67 = tpu.reciprocal %66 {approx = true} : vector<8x1xf32> -> vector<8x1xf32>
    %68 = vector.broadcast %67 : vector<8x1xf32> to vector<8x8xf32>
    %69 = arith.mulf %64, %68 : vector<8x8xf32>
    %70 = arith.truncf %69 : vector<8x8xf32> to vector<8x8xbf16>
    %71 = arith.truncf %53 : vector<8x8xf32> to vector<8x8xbf16>
    %cst_33 = arith.constant dense<0.000000e+00> : vector<8x8xf32>
    %72 = tpu.matmul %70, %71, %cst_33 {dimension_numbers = #tpu.dot_dimension_numbers<[1], [0], [0], [1], [0, 0, 1, 1], [], []>} : vector<8x8xbf16>, vector<8x8xbf16>, vector<8x8xf32> -> vector<8x8xf32>
    %73 = arith.truncf %72 : vector<8x8xf32> to vector<8x8xbf16>
    %74 = vector.extract_strided_slice %49 {offsets = [0, 0], sizes = [8, 32], strides = [1, 1]} : vector<32x32xbf16> to vector<8x32xbf16>
    %cst_34 = arith.constant dense<0.000000e+00> : vector<8x32xf32>
    %75 = tpu.matmul %73, %74, %cst_34 {dimension_numbers = #tpu.dot_dimension_numbers<[1], [0], [0], [1], [0, 0, 1, 1], [], []>} : vector<8x8xbf16>, vector<8x32xbf16>, vector<8x32xf32> -> vector<8x32xf32>
    %76 = arith.addf %50, %75 : vector<8x32xf32>
    %77 = vector.extract_strided_slice %47 {offsets = [0, 8], sizes = [8, 8], strides = [1, 1]} : vector<8x96xf32> to vector<8x8xf32>
    %78 = vector.extract_strided_slice %47 {offsets = [0, 40], sizes = [8, 8], strides = [1, 1]} : vector<8x96xf32> to vector<8x8xf32>
    %79 = vector.extract_strided_slice %47 {offsets = [0, 72], sizes = [8, 8], strides = [1, 1]} : vector<8x96xf32> to vector<8x8xf32>
    %80 = arith.truncf %77 : vector<8x8xf32> to vector<8x8xbf16>
    %81 = arith.truncf %78 : vector<8x8xf32> to vector<8x8xbf16>
    %cst_35 = arith.constant dense<0.000000e+00> : vector<8x8xf32>
    %82 = tpu.matmul %80, %81, %cst_35 {dimension_numbers = #tpu.dot_dimension_numbers<[1], [1], [0], [0], [0, 0, 1, 0], [], []>} : vector<8x8xbf16>, vector<8x8xbf16>, vector<8x8xf32> -> vector<8x8xf32>
    %cst_36 = arith.constant 0.353553385 : f32
    %83 = vector.broadcast %cst_36 : f32 to vector<8x8xf32>
    %84 = arith.mulf %82, %83 : vector<8x8xf32>
    %85 = arith.addf %84, %13 : vector<8x8xf32>
    %cst_37 = arith.constant dense<0xFF800000> : vector<8xf32>
    %86 = vector.multi_reduction <maximumf>, %85, %cst_37 [1] : vector<8x8xf32> to vector<8xf32>
    %87 = vector.shape_cast %86 : vector<8xf32> to vector<8x1xf32>
    %88 = vector.broadcast %87 : vector<8x1xf32> to vector<8x8xf32>
    %89 = arith.subf %85, %88 : vector<8x8xf32>
    %90 = math.exp %89 : vector<8x8xf32>
    %cst_38 = arith.constant dense<0.000000e+00> : vector<8xf32>
    %91 = vector.multi_reduction <add>, %90, %cst_38 [1] : vector<8x8xf32> to vector<8xf32>
    %92 = vector.shape_cast %91 : vector<8xf32> to vector<8x1xf32>
    %93 = tpu.reciprocal %92 {approx = true} : vector<8x1xf32> -> vector<8x1xf32>
    %94 = vector.broadcast %93 : vector<8x1xf32> to vector<8x8xf32>
    %95 = arith.mulf %90, %94 : vector<8x8xf32>
    %96 = arith.truncf %95 : vector<8x8xf32> to vector<8x8xbf16>
    %97 = arith.truncf %79 : vector<8x8xf32> to vector<8x8xbf16>
    %cst_39 = arith.constant dense<0.000000e+00> : vector<8x8xf32>
    %98 = tpu.matmul %96, %97, %cst_39 {dimension_numbers = #tpu.dot_dimension_numbers<[1], [0], [0], [1], [0, 0, 1, 1], [], []>} : vector<8x8xbf16>, vector<8x8xbf16>, vector<8x8xf32> -> vector<8x8xf32>
    %99 = arith.truncf %98 : vector<8x8xf32> to vector<8x8xbf16>
    %100 = vector.extract_strided_slice %49 {offsets = [8, 0], sizes = [8, 32], strides = [1, 1]} : vector<32x32xbf16> to vector<8x32xbf16>
    %cst_40 = arith.constant dense<0.000000e+00> : vector<8x32xf32>
    %101 = tpu.matmul %99, %100, %cst_40 {dimension_numbers = #tpu.dot_dimension_numbers<[1], [0], [0], [1], [0, 0, 1, 1], [], []>} : vector<8x8xbf16>, vector<8x32xbf16>, vector<8x32xf32> -> vector<8x32xf32>
    %102 = arith.addf %76, %101 : vector<8x32xf32>
    %103 = vector.extract_strided_slice %47 {offsets = [0, 16], sizes = [8, 8], strides = [1, 1]} : vector<8x96xf32> to vector<8x8xf32>
    %104 = vector.extract_strided_slice %47 {offsets = [0, 48], sizes = [8, 8], strides = [1, 1]} : vector<8x96xf32> to vector<8x8xf32>
    %105 = vector.extract_strided_slice %47 {offsets = [0, 80], sizes = [8, 8], strides = [1, 1]} : vector<8x96xf32> to vector<8x8xf32>
    %106 = arith.truncf %103 : vector<8x8xf32> to vector<8x8xbf16>
    %107 = arith.truncf %104 : vector<8x8xf32> to vector<8x8xbf16>
    %cst_41 = arith.constant dense<0.000000e+00> : vector<8x8xf32>
    %108 = tpu.matmul %106, %107, %cst_41 {dimension_numbers = #tpu.dot_dimension_numbers<[1], [1], [0], [0], [0, 0, 1, 0], [], []>} : vector<8x8xbf16>, vector<8x8xbf16>, vector<8x8xf32> -> vector<8x8xf32>
    %cst_42 = arith.constant 0.353553385 : f32
    %109 = vector.broadcast %cst_42 : f32 to vector<8x8xf32>
    %110 = arith.mulf %108, %109 : vector<8x8xf32>
    %111 = arith.addf %110, %13 : vector<8x8xf32>
    %cst_43 = arith.constant dense<0xFF800000> : vector<8xf32>
    %112 = vector.multi_reduction <maximumf>, %111, %cst_43 [1] : vector<8x8xf32> to vector<8xf32>
    %113 = vector.shape_cast %112 : vector<8xf32> to vector<8x1xf32>
    %114 = vector.broadcast %113 : vector<8x1xf32> to vector<8x8xf32>
    %115 = arith.subf %111, %114 : vector<8x8xf32>
    %116 = math.exp %115 : vector<8x8xf32>
    %cst_44 = arith.constant dense<0.000000e+00> : vector<8xf32>
    %117 = vector.multi_reduction <add>, %116, %cst_44 [1] : vector<8x8xf32> to vector<8xf32>
    %118 = vector.shape_cast %117 : vector<8xf32> to vector<8x1xf32>
    %119 = tpu.reciprocal %118 {approx = true} : vector<8x1xf32> -> vector<8x1xf32>
    %120 = vector.broadcast %119 : vector<8x1xf32> to vector<8x8xf32>
    %121 = arith.mulf %116, %120 : vector<8x8xf32>
    %122 = arith.truncf %121 : vector<8x8xf32> to vector<8x8xbf16>
    %123 = arith.truncf %105 : vector<8x8xf32> to vector<8x8xbf16>
    %cst_45 = arith.constant dense<0.000000e+00> : vector<8x8xf32>
    %124 = tpu.matmul %122, %123, %cst_45 {dimension_numbers = #tpu.dot_dimension_numbers<[1], [0], [0], [1], [0, 0, 1, 1], [], []>} : vector<8x8xbf16>, vector<8x8xbf16>, vector<8x8xf32> -> vector<8x8xf32>
    %125 = arith.truncf %124 : vector<8x8xf32> to vector<8x8xbf16>
    %126 = vector.extract_strided_slice %49 {offsets = [16, 0], sizes = [8, 32], strides = [1, 1]} : vector<32x32xbf16> to vector<8x32xbf16>
    %cst_46 = arith.constant dense<0.000000e+00> : vector<8x32xf32>
    %127 = tpu.matmul %125, %126, %cst_46 {dimension_numbers = #tpu.dot_dimension_numbers<[1], [0], [0], [1], [0, 0, 1, 1], [], []>} : vector<8x8xbf16>, vector<8x32xbf16>, vector<8x32xf32> -> vector<8x32xf32>
    %128 = arith.addf %102, %127 : vector<8x32xf32>
    %129 = vector.extract_strided_slice %47 {offsets = [0, 24], sizes = [8, 8], strides = [1, 1]} : vector<8x96xf32> to vector<8x8xf32>
    %130 = vector.extract_strided_slice %47 {offsets = [0, 56], sizes = [8, 8], strides = [1, 1]} : vector<8x96xf32> to vector<8x8xf32>
    %131 = vector.extract_strided_slice %47 {offsets = [0, 88], sizes = [8, 8], strides = [1, 1]} : vector<8x96xf32> to vector<8x8xf32>
    %132 = arith.truncf %129 : vector<8x8xf32> to vector<8x8xbf16>
    %133 = arith.truncf %130 : vector<8x8xf32> to vector<8x8xbf16>
    %cst_47 = arith.constant dense<0.000000e+00> : vector<8x8xf32>
    %134 = tpu.matmul %132, %133, %cst_47 {dimension_numbers = #tpu.dot_dimension_numbers<[1], [1], [0], [0], [0, 0, 1, 0], [], []>} : vector<8x8xbf16>, vector<8x8xbf16>, vector<8x8xf32> -> vector<8x8xf32>
    %cst_48 = arith.constant 0.353553385 : f32
    %135 = vector.broadcast %cst_48 : f32 to vector<8x8xf32>
    %136 = arith.mulf %134, %135 : vector<8x8xf32>
    %137 = arith.addf %136, %13 : vector<8x8xf32>
    %cst_49 = arith.constant dense<0xFF800000> : vector<8xf32>
    %138 = vector.multi_reduction <maximumf>, %137, %cst_49 [1] : vector<8x8xf32> to vector<8xf32>
    %139 = vector.shape_cast %138 : vector<8xf32> to vector<8x1xf32>
    %140 = vector.broadcast %139 : vector<8x1xf32> to vector<8x8xf32>
    %141 = arith.subf %137, %140 : vector<8x8xf32>
    %142 = math.exp %141 : vector<8x8xf32>
    %cst_50 = arith.constant dense<0.000000e+00> : vector<8xf32>
    %143 = vector.multi_reduction <add>, %142, %cst_50 [1] : vector<8x8xf32> to vector<8xf32>
    %144 = vector.shape_cast %143 : vector<8xf32> to vector<8x1xf32>
    %145 = tpu.reciprocal %144 {approx = true} : vector<8x1xf32> -> vector<8x1xf32>
    %146 = vector.broadcast %145 : vector<8x1xf32> to vector<8x8xf32>
    %147 = arith.mulf %142, %146 : vector<8x8xf32>
    %148 = arith.truncf %147 : vector<8x8xf32> to vector<8x8xbf16>
    %149 = arith.truncf %131 : vector<8x8xf32> to vector<8x8xbf16>
    %cst_51 = arith.constant dense<0.000000e+00> : vector<8x8xf32>
    %150 = tpu.matmul %148, %149, %cst_51 {dimension_numbers = #tpu.dot_dimension_numbers<[1], [0], [0], [1], [0, 0, 1, 1], [], []>} : vector<8x8xbf16>, vector<8x8xbf16>, vector<8x8xf32> -> vector<8x8xf32>
    %151 = arith.truncf %150 : vector<8x8xf32> to vector<8x8xbf16>
    %152 = vector.extract_strided_slice %49 {offsets = [24, 0], sizes = [8, 32], strides = [1, 1]} : vector<32x32xbf16> to vector<8x32xbf16>
    %cst_52 = arith.constant dense<0.000000e+00> : vector<8x32xf32>
    %153 = tpu.matmul %151, %152, %cst_52 {dimension_numbers = #tpu.dot_dimension_numbers<[1], [0], [0], [1], [0, 0, 1, 1], [], []>} : vector<8x8xbf16>, vector<8x32xbf16>, vector<8x32xf32> -> vector<8x32xf32>
    %154 = arith.addf %128, %153 : vector<8x32xf32>
    %155 = arith.addf %1, %154 : vector<8x32xf32>
    %c0_53 = arith.constant 0 : index
    %c0_54 = arith.constant 0 : index
    %c0_55 = arith.constant 0 : index
    %156 = vector.load %arg8[%c0_53, %c0_54, %c0_55] : memref<2x1x32xf32, #tpu.memory_space<vmem>>, vector<1x1x32xf32>
    %157 = vector.shape_cast %156 : vector<1x1x32xf32> to vector<1x32xf32>
    %158 = vector.broadcast %157 : vector<1x32xf32> to vector<8x32xf32>
    %159 = arith.addf %155, %158 : vector<8x32xf32>
    %c0_56 = arith.constant 0 : index
    %c0_57 = arith.constant 0 : index
    %c0_58 = arith.constant 0 : index
    %160 = vector.load %arg9[%c0_56, %c0_57, %c0_58] : memref<2x1x32xf32, #tpu.memory_space<vmem>>, vector<1x1x32xf32>
    %161 = vector.shape_cast %160 : vector<1x1x32xf32> to vector<1x32xf32>
    %c0_59 = arith.constant 0 : index
    %c0_60 = arith.constant 0 : index
    %c0_61 = arith.constant 0 : index
    %162 = vector.load %arg10[%c0_59, %c0_60, %c0_61] : memref<2x1x32xf32, #tpu.memory_space<vmem>>, vector<1x1x32xf32>
    %163 = vector.shape_cast %162 : vector<1x1x32xf32> to vector<1x32xf32>
    %cst_62 = arith.constant dense<0.000000e+00> : vector<8xf32>
    %164 = vector.multi_reduction <add>, %159, %cst_62 [1] : vector<8x32xf32> to vector<8xf32>
    %165 = vector.shape_cast %164 : vector<8xf32> to vector<8x1xf32>
    %cst_63 = arith.constant 3.200000e+01 : f32
    %166 = vector.broadcast %cst_63 : f32 to vector<8x1xf32>
    %167 = arith.divf %165, %166 : vector<8x1xf32>
    %168 = vector.broadcast %167 : vector<8x1xf32> to vector<8x32xf32>
    %169 = arith.subf %159, %168 : vector<8x32xf32>
    %170 = arith.mulf %169, %169 : vector<8x32xf32>
    %cst_64 = arith.constant dense<0.000000e+00> : vector<8xf32>
    %171 = vector.multi_reduction <add>, %170, %cst_64 [1] : vector<8x32xf32> to vector<8xf32>
    %172 = vector.shape_cast %171 : vector<8xf32> to vector<8x1xf32>
    %cst_65 = arith.constant 3.200000e+01 : f32
    %173 = vector.broadcast %cst_65 : f32 to vector<8x1xf32>
    %174 = arith.divf %172, %173 : vector<8x1xf32>
    %175 = vector.broadcast %167 : vector<8x1xf32> to vector<8x32xf32>
    %176 = arith.subf %159, %175 : vector<8x32xf32>
    %cst_66 = arith.constant 9.99999974E-6 : f32
    %177 = vector.broadcast %cst_66 : f32 to vector<8x1xf32>
    %178 = arith.addf %174, %177 : vector<8x1xf32>
    %179 = math.rsqrt %178 : vector<8x1xf32>
    %180 = vector.broadcast %179 : vector<8x1xf32> to vector<8x32xf32>
    %181 = arith.mulf %176, %180 : vector<8x32xf32>
    %182 = vector.broadcast %161 : vector<1x32xf32> to vector<8x32xf32>
    %183 = arith.mulf %181, %182 : vector<8x32xf32>
    %184 = vector.broadcast %163 : vector<1x32xf32> to vector<8x32xf32>
    %185 = arith.addf %183, %184 : vector<8x32xf32>
    %186 = arith.truncf %185 : vector<8x32xf32> to vector<8x32xbf16>
    %c0_67 = arith.constant 0 : index
    %c0_68 = arith.constant 0 : index
    %c0_69 = arith.constant 0 : index
    %187 = vector.load %arg11[%c0_67, %c0_68, %c0_69] : memref<2x32x128xbf16, #tpu.memory_space<vmem>>, vector<1x32x128xbf16>
    %188 = vector.shape_cast %187 : vector<1x32x128xbf16> to vector<32x128xbf16>
    %cst_70 = arith.constant dense<0.000000e+00> : vector<8x128xf32>
    %189 = tpu.matmul %186, %188, %cst_70 {dimension_numbers = #tpu.dot_dimension_numbers<[1], [0], [0], [1], [0, 0, 1, 1], [], []>} : vector<8x32xbf16>, vector<32x128xbf16>, vector<8x128xf32> -> vector<8x128xf32>
    %c0_71 = arith.constant 0 : index
    %c0_72 = arith.constant 0 : index
    %c0_73 = arith.constant 0 : index
    %190 = vector.load %arg12[%c0_71, %c0_72, %c0_73] : memref<2x1x128xf32, #tpu.memory_space<vmem>>, vector<1x1x128xf32>
    %191 = vector.shape_cast %190 : vector<1x1x128xf32> to vector<1x128xf32>
    %192 = vector.broadcast %191 : vector<1x128xf32> to vector<8x128xf32>
    %193 = arith.addf %189, %192 : vector<8x128xf32>
    %cst_74 = arith.constant 5.000000e-01 : f32
    %194 = vector.broadcast %cst_74 : f32 to vector<8x128xf32>
    %195 = arith.mulf %194, %193 : vector<8x128xf32>
    %cst_75 = arith.constant 4.471500e-02 : f32
    %196 = vector.broadcast %cst_75 : f32 to vector<8x128xf32>
    %197 = arith.mulf %196, %193 : vector<8x128xf32>
    %198 = arith.mulf %197, %193 : vector<8x128xf32>
    %199 = arith.mulf %198, %193 : vector<8x128xf32>
    %200 = arith.addf %193, %199 : vector<8x128xf32>
    %cst_76 = arith.constant 0.797884583 : f32
    %201 = vector.broadcast %cst_76 : f32 to vector<8x128xf32>
    %202 = arith.mulf %201, %200 : vector<8x128xf32>
    %203 = math.tanh %202 : vector<8x128xf32>
    %cst_77 = arith.constant 1.000000e+00 : f32
    %204 = vector.broadcast %cst_77 : f32 to vector<8x128xf32>
    %205 = arith.addf %204, %203 : vector<8x128xf32>
    %206 = arith.mulf %195, %205 : vector<8x128xf32>
    %207 = arith.truncf %206 : vector<8x128xf32> to vector<8x128xbf16>
    %c0_78 = arith.constant 0 : index
    %c0_79 = arith.constant 0 : index
    %c0_80 = arith.constant 0 : index
    %208 = vector.load %arg13[%c0_78, %c0_79, %c0_80] : memref<2x128x32xbf16, #tpu.memory_space<vmem>>, vector<1x128x32xbf16>
    %209 = vector.shape_cast %208 : vector<1x128x32xbf16> to vector<128x32xbf16>
    %cst_81 = arith.constant dense<0.000000e+00> : vector<8x32xf32>
    %210 = tpu.matmul %207, %209, %cst_81 {dimension_numbers = #tpu.dot_dimension_numbers<[1], [0], [0], [1], [0, 0, 1, 1], [], []>} : vector<8x128xbf16>, vector<128x32xbf16>, vector<8x32xf32> -> vector<8x32xf32>
    %211 = arith.addf %159, %210 : vector<8x32xf32>
    %c0_82 = arith.constant 0 : index
    %c0_83 = arith.constant 0 : index
    %c0_84 = arith.constant 0 : index
    %212 = vector.load %arg14[%c0_82, %c0_83, %c0_84] : memref<2x1x32xf32, #tpu.memory_space<vmem>>, vector<1x1x32xf32>
    %213 = vector.shape_cast %212 : vector<1x1x32xf32> to vector<1x32xf32>
    %214 = vector.broadcast %213 : vector<1x32xf32> to vector<8x32xf32>
    %215 = arith.addf %211, %214 : vector<8x32xf32>
    %c1 = arith.constant 1 : index
    %c0_85 = arith.constant 0 : index
    %c0_86 = arith.constant 0 : index
    %216 = vector.load %arg3[%c1, %c0_85, %c0_86] : memref<2x1x32xf32, #tpu.memory_space<vmem>>, vector<1x1x32xf32>
    %217 = vector.shape_cast %216 : vector<1x1x32xf32> to vector<1x32xf32>
    %c1_87 = arith.constant 1 : index
    %c0_88 = arith.constant 0 : index
    %c0_89 = arith.constant 0 : index
    %218 = vector.load %arg4[%c1_87, %c0_88, %c0_89] : memref<2x1x32xf32, #tpu.memory_space<vmem>>, vector<1x1x32xf32>
    %219 = vector.shape_cast %218 : vector<1x1x32xf32> to vector<1x32xf32>
    %cst_90 = arith.constant dense<0.000000e+00> : vector<8xf32>
    %220 = vector.multi_reduction <add>, %215, %cst_90 [1] : vector<8x32xf32> to vector<8xf32>
    %221 = vector.shape_cast %220 : vector<8xf32> to vector<8x1xf32>
    %cst_91 = arith.constant 3.200000e+01 : f32
    %222 = vector.broadcast %cst_91 : f32 to vector<8x1xf32>
    %223 = arith.divf %221, %222 : vector<8x1xf32>
    %224 = vector.broadcast %223 : vector<8x1xf32> to vector<8x32xf32>
    %225 = arith.subf %215, %224 : vector<8x32xf32>
    %226 = arith.mulf %225, %225 : vector<8x32xf32>
    %cst_92 = arith.constant dense<0.000000e+00> : vector<8xf32>
    %227 = vector.multi_reduction <add>, %226, %cst_92 [1] : vector<8x32xf32> to vector<8xf32>
    %228 = vector.shape_cast %227 : vector<8xf32> to vector<8x1xf32>
    %cst_93 = arith.constant 3.200000e+01 : f32
    %229 = vector.broadcast %cst_93 : f32 to vector<8x1xf32>
    %230 = arith.divf %228, %229 : vector<8x1xf32>
    %231 = vector.broadcast %223 : vector<8x1xf32> to vector<8x32xf32>
    %232 = arith.subf %215, %231 : vector<8x32xf32>
    %cst_94 = arith.constant 9.99999974E-6 : f32
    %233 = vector.broadcast %cst_94 : f32 to vector<8x1xf32>
    %234 = arith.addf %230, %233 : vector<8x1xf32>
    %235 = math.rsqrt %234 : vector<8x1xf32>
    %236 = vector.broadcast %235 : vector<8x1xf32> to vector<8x32xf32>
    %237 = arith.mulf %232, %236 : vector<8x32xf32>
    %238 = vector.broadcast %217 : vector<1x32xf32> to vector<8x32xf32>
    %239 = arith.mulf %237, %238 : vector<8x32xf32>
    %240 = vector.broadcast %219 : vector<1x32xf32> to vector<8x32xf32>
    %241 = arith.addf %239, %240 : vector<8x32xf32>
    %242 = arith.truncf %241 : vector<8x32xf32> to vector<8x32xbf16>
    %c1_95 = arith.constant 1 : index
    %c0_96 = arith.constant 0 : index
    %c0_97 = arith.constant 0 : index
    %243 = vector.load %arg5[%c1_95, %c0_96, %c0_97] : memref<2x32x96xbf16, #tpu.memory_space<vmem>>, vector<1x32x96xbf16>
    %244 = vector.shape_cast %243 : vector<1x32x96xbf16> to vector<32x96xbf16>
    %cst_98 = arith.constant dense<0.000000e+00> : vector<8x96xf32>
    %245 = tpu.matmul %242, %244, %cst_98 {dimension_numbers = #tpu.dot_dimension_numbers<[1], [0], [0], [1], [0, 0, 1, 1], [], []>} : vector<8x32xbf16>, vector<32x96xbf16>, vector<8x96xf32> -> vector<8x96xf32>
    %c1_99 = arith.constant 1 : index
    %c0_100 = arith.constant 0 : index
    %c0_101 = arith.constant 0 : index
    %246 = vector.load %arg6[%c1_99, %c0_100, %c0_101] : memref<2x1x96xf32, #tpu.memory_space<vmem>>, vector<1x1x96xf32>
    %247 = vector.shape_cast %246 : vector<1x1x96xf32> to vector<1x96xf32>
    %248 = vector.broadcast %247 : vector<1x96xf32> to vector<8x96xf32>
    %249 = arith.addf %245, %248 : vector<8x96xf32>
    %c1_102 = arith.constant 1 : index
    %c0_103 = arith.constant 0 : index
    %c0_104 = arith.constant 0 : index
    %250 = vector.load %arg7[%c1_102, %c0_103, %c0_104] : memref<2x32x32xbf16, #tpu.memory_space<vmem>>, vector<1x32x32xbf16>
    %251 = vector.shape_cast %250 : vector<1x32x32xbf16> to vector<32x32xbf16>
    %cst_105 = arith.constant 0.000000e+00 : f32
    %252 = vector.broadcast %cst_105 : f32 to vector<8x32xf32>
    %253 = vector.extract_strided_slice %249 {offsets = [0, 0], sizes = [8, 8], strides = [1, 1]} : vector<8x96xf32> to vector<8x8xf32>
    %254 = vector.extract_strided_slice %249 {offsets = [0, 32], sizes = [8, 8], strides = [1, 1]} : vector<8x96xf32> to vector<8x8xf32>
    %255 = vector.extract_strided_slice %249 {offsets = [0, 64], sizes = [8, 8], strides = [1, 1]} : vector<8x96xf32> to vector<8x8xf32>
    %256 = arith.truncf %253 : vector<8x8xf32> to vector<8x8xbf16>
    %257 = arith.truncf %254 : vector<8x8xf32> to vector<8x8xbf16>
    %cst_106 = arith.constant dense<0.000000e+00> : vector<8x8xf32>
    %258 = tpu.matmul %256, %257, %cst_106 {dimension_numbers = #tpu.dot_dimension_numbers<[1], [1], [0], [0], [0, 0, 1, 0], [], []>} : vector<8x8xbf16>, vector<8x8xbf16>, vector<8x8xf32> -> vector<8x8xf32>
    %cst_107 = arith.constant 0.353553385 : f32
    %259 = vector.broadcast %cst_107 : f32 to vector<8x8xf32>
    %260 = arith.mulf %258, %259 : vector<8x8xf32>
    %261 = arith.addf %260, %13 : vector<8x8xf32>
    %cst_108 = arith.constant dense<0xFF800000> : vector<8xf32>
    %262 = vector.multi_reduction <maximumf>, %261, %cst_108 [1] : vector<8x8xf32> to vector<8xf32>
    %263 = vector.shape_cast %262 : vector<8xf32> to vector<8x1xf32>
    %264 = vector.broadcast %263 : vector<8x1xf32> to vector<8x8xf32>
    %265 = arith.subf %261, %264 : vector<8x8xf32>
    %266 = math.exp %265 : vector<8x8xf32>
    %cst_109 = arith.constant dense<0.000000e+00> : vector<8xf32>
    %267 = vector.multi_reduction <add>, %266, %cst_109 [1] : vector<8x8xf32> to vector<8xf32>
    %268 = vector.shape_cast %267 : vector<8xf32> to vector<8x1xf32>
    %269 = tpu.reciprocal %268 {approx = true} : vector<8x1xf32> -> vector<8x1xf32>
    %270 = vector.broadcast %269 : vector<8x1xf32> to vector<8x8xf32>
    %271 = arith.mulf %266, %270 : vector<8x8xf32>
    %272 = arith.truncf %271 : vector<8x8xf32> to vector<8x8xbf16>
    %273 = arith.truncf %255 : vector<8x8xf32> to vector<8x8xbf16>
    %cst_110 = arith.constant dense<0.000000e+00> : vector<8x8xf32>
    %274 = tpu.matmul %272, %273, %cst_110 {dimension_numbers = #tpu.dot_dimension_numbers<[1], [0], [0], [1], [0, 0, 1, 1], [], []>} : vector<8x8xbf16>, vector<8x8xbf16>, vector<8x8xf32> -> vector<8x8xf32>
    %275 = arith.truncf %274 : vector<8x8xf32> to vector<8x8xbf16>
    %276 = vector.extract_strided_slice %251 {offsets = [0, 0], sizes = [8, 32], strides = [1, 1]} : vector<32x32xbf16> to vector<8x32xbf16>
    %cst_111 = arith.constant dense<0.000000e+00> : vector<8x32xf32>
    %277 = tpu.matmul %275, %276, %cst_111 {dimension_numbers = #tpu.dot_dimension_numbers<[1], [0], [0], [1], [0, 0, 1, 1], [], []>} : vector<8x8xbf16>, vector<8x32xbf16>, vector<8x32xf32> -> vector<8x32xf32>
    %278 = arith.addf %252, %277 : vector<8x32xf32>
    %279 = vector.extract_strided_slice %249 {offsets = [0, 8], sizes = [8, 8], strides = [1, 1]} : vector<8x96xf32> to vector<8x8xf32>
    %280 = vector.extract_strided_slice %249 {offsets = [0, 40], sizes = [8, 8], strides = [1, 1]} : vector<8x96xf32> to vector<8x8xf32>
    %281 = vector.extract_strided_slice %249 {offsets = [0, 72], sizes = [8, 8], strides = [1, 1]} : vector<8x96xf32> to vector<8x8xf32>
    %282 = arith.truncf %279 : vector<8x8xf32> to vector<8x8xbf16>
    %283 = arith.truncf %280 : vector<8x8xf32> to vector<8x8xbf16>
    %cst_112 = arith.constant dense<0.000000e+00> : vector<8x8xf32>
    %284 = tpu.matmul %282, %283, %cst_112 {dimension_numbers = #tpu.dot_dimension_numbers<[1], [1], [0], [0], [0, 0, 1, 0], [], []>} : vector<8x8xbf16>, vector<8x8xbf16>, vector<8x8xf32> -> vector<8x8xf32>
    %cst_113 = arith.constant 0.353553385 : f32
    %285 = vector.broadcast %cst_113 : f32 to vector<8x8xf32>
    %286 = arith.mulf %284, %285 : vector<8x8xf32>
    %287 = arith.addf %286, %13 : vector<8x8xf32>
    %cst_114 = arith.constant dense<0xFF800000> : vector<8xf32>
    %288 = vector.multi_reduction <maximumf>, %287, %cst_114 [1] : vector<8x8xf32> to vector<8xf32>
    %289 = vector.shape_cast %288 : vector<8xf32> to vector<8x1xf32>
    %290 = vector.broadcast %289 : vector<8x1xf32> to vector<8x8xf32>
    %291 = arith.subf %287, %290 : vector<8x8xf32>
    %292 = math.exp %291 : vector<8x8xf32>
    %cst_115 = arith.constant dense<0.000000e+00> : vector<8xf32>
    %293 = vector.multi_reduction <add>, %292, %cst_115 [1] : vector<8x8xf32> to vector<8xf32>
    %294 = vector.shape_cast %293 : vector<8xf32> to vector<8x1xf32>
    %295 = tpu.reciprocal %294 {approx = true} : vector<8x1xf32> -> vector<8x1xf32>
    %296 = vector.broadcast %295 : vector<8x1xf32> to vector<8x8xf32>
    %297 = arith.mulf %292, %296 : vector<8x8xf32>
    %298 = arith.truncf %297 : vector<8x8xf32> to vector<8x8xbf16>
    %299 = arith.truncf %281 : vector<8x8xf32> to vector<8x8xbf16>
    %cst_116 = arith.constant dense<0.000000e+00> : vector<8x8xf32>
    %300 = tpu.matmul %298, %299, %cst_116 {dimension_numbers = #tpu.dot_dimension_numbers<[1], [0], [0], [1], [0, 0, 1, 1], [], []>} : vector<8x8xbf16>, vector<8x8xbf16>, vector<8x8xf32> -> vector<8x8xf32>
    %301 = arith.truncf %300 : vector<8x8xf32> to vector<8x8xbf16>
    %302 = vector.extract_strided_slice %251 {offsets = [8, 0], sizes = [8, 32], strides = [1, 1]} : vector<32x32xbf16> to vector<8x32xbf16>
    %cst_117 = arith.constant dense<0.000000e+00> : vector<8x32xf32>
    %303 = tpu.matmul %301, %302, %cst_117 {dimension_numbers = #tpu.dot_dimension_numbers<[1], [0], [0], [1], [0, 0, 1, 1], [], []>} : vector<8x8xbf16>, vector<8x32xbf16>, vector<8x32xf32> -> vector<8x32xf32>
    %304 = arith.addf %278, %303 : vector<8x32xf32>
    %305 = vector.extract_strided_slice %249 {offsets = [0, 16], sizes = [8, 8], strides = [1, 1]} : vector<8x96xf32> to vector<8x8xf32>
    %306 = vector.extract_strided_slice %249 {offsets = [0, 48], sizes = [8, 8], strides = [1, 1]} : vector<8x96xf32> to vector<8x8xf32>
    %307 = vector.extract_strided_slice %249 {offsets = [0, 80], sizes = [8, 8], strides = [1, 1]} : vector<8x96xf32> to vector<8x8xf32>
    %308 = arith.truncf %305 : vector<8x8xf32> to vector<8x8xbf16>
    %309 = arith.truncf %306 : vector<8x8xf32> to vector<8x8xbf16>
    %cst_118 = arith.constant dense<0.000000e+00> : vector<8x8xf32>
    %310 = tpu.matmul %308, %309, %cst_118 {dimension_numbers = #tpu.dot_dimension_numbers<[1], [1], [0], [0], [0, 0, 1, 0], [], []>} : vector<8x8xbf16>, vector<8x8xbf16>, vector<8x8xf32> -> vector<8x8xf32>
    %cst_119 = arith.constant 0.353553385 : f32
    %311 = vector.broadcast %cst_119 : f32 to vector<8x8xf32>
    %312 = arith.mulf %310, %311 : vector<8x8xf32>
    %313 = arith.addf %312, %13 : vector<8x8xf32>
    %cst_120 = arith.constant dense<0xFF800000> : vector<8xf32>
    %314 = vector.multi_reduction <maximumf>, %313, %cst_120 [1] : vector<8x8xf32> to vector<8xf32>
    %315 = vector.shape_cast %314 : vector<8xf32> to vector<8x1xf32>
    %316 = vector.broadcast %315 : vector<8x1xf32> to vector<8x8xf32>
    %317 = arith.subf %313, %316 : vector<8x8xf32>
    %318 = math.exp %317 : vector<8x8xf32>
    %cst_121 = arith.constant dense<0.000000e+00> : vector<8xf32>
    %319 = vector.multi_reduction <add>, %318, %cst_121 [1] : vector<8x8xf32> to vector<8xf32>
    %320 = vector.shape_cast %319 : vector<8xf32> to vector<8x1xf32>
    %321 = tpu.reciprocal %320 {approx = true} : vector<8x1xf32> -> vector<8x1xf32>
    %322 = vector.broadcast %321 : vector<8x1xf32> to vector<8x8xf32>
    %323 = arith.mulf %318, %322 : vector<8x8xf32>
    %324 = arith.truncf %323 : vector<8x8xf32> to vector<8x8xbf16>
    %325 = arith.truncf %307 : vector<8x8xf32> to vector<8x8xbf16>
    %cst_122 = arith.constant dense<0.000000e+00> : vector<8x8xf32>
    %326 = tpu.matmul %324, %325, %cst_122 {dimension_numbers = #tpu.dot_dimension_numbers<[1], [0], [0], [1], [0, 0, 1, 1], [], []>} : vector<8x8xbf16>, vector<8x8xbf16>, vector<8x8xf32> -> vector<8x8xf32>
    %327 = arith.truncf %326 : vector<8x8xf32> to vector<8x8xbf16>
    %328 = vector.extract_strided_slice %251 {offsets = [16, 0], sizes = [8, 32], strides = [1, 1]} : vector<32x32xbf16> to vector<8x32xbf16>
    %cst_123 = arith.constant dense<0.000000e+00> : vector<8x32xf32>
    %329 = tpu.matmul %327, %328, %cst_123 {dimension_numbers = #tpu.dot_dimension_numbers<[1], [0], [0], [1], [0, 0, 1, 1], [], []>} : vector<8x8xbf16>, vector<8x32xbf16>, vector<8x32xf32> -> vector<8x32xf32>
    %330 = arith.addf %304, %329 : vector<8x32xf32>
    %331 = vector.extract_strided_slice %249 {offsets = [0, 24], sizes = [8, 8], strides = [1, 1]} : vector<8x96xf32> to vector<8x8xf32>
    %332 = vector.extract_strided_slice %249 {offsets = [0, 56], sizes = [8, 8], strides = [1, 1]} : vector<8x96xf32> to vector<8x8xf32>
    %333 = vector.extract_strided_slice %249 {offsets = [0, 88], sizes = [8, 8], strides = [1, 1]} : vector<8x96xf32> to vector<8x8xf32>
    %334 = arith.truncf %331 : vector<8x8xf32> to vector<8x8xbf16>
    %335 = arith.truncf %332 : vector<8x8xf32> to vector<8x8xbf16>
    %cst_124 = arith.constant dense<0.000000e+00> : vector<8x8xf32>
    %336 = tpu.matmul %334, %335, %cst_124 {dimension_numbers = #tpu.dot_dimension_numbers<[1], [1], [0], [0], [0, 0, 1, 0], [], []>} : vector<8x8xbf16>, vector<8x8xbf16>, vector<8x8xf32> -> vector<8x8xf32>
    %cst_125 = arith.constant 0.353553385 : f32
    %337 = vector.broadcast %cst_125 : f32 to vector<8x8xf32>
    %338 = arith.mulf %336, %337 : vector<8x8xf32>
    %339 = arith.addf %338, %13 : vector<8x8xf32>
    %cst_126 = arith.constant dense<0xFF800000> : vector<8xf32>
    %340 = vector.multi_reduction <maximumf>, %339, %cst_126 [1] : vector<8x8xf32> to vector<8xf32>
    %341 = vector.shape_cast %340 : vector<8xf32> to vector<8x1xf32>
    %342 = vector.broadcast %341 : vector<8x1xf32> to vector<8x8xf32>
    %343 = arith.subf %339, %342 : vector<8x8xf32>
    %344 = math.exp %343 : vector<8x8xf32>
    %cst_127 = arith.constant dense<0.000000e+00> : vector<8xf32>
    %345 = vector.multi_reduction <add>, %344, %cst_127 [1] : vector<8x8xf32> to vector<8xf32>
    %346 = vector.shape_cast %345 : vector<8xf32> to vector<8x1xf32>
    %347 = tpu.reciprocal %346 {approx = true} : vector<8x1xf32> -> vector<8x1xf32>
    %348 = vector.broadcast %347 : vector<8x1xf32> to vector<8x8xf32>
    %349 = arith.mulf %344, %348 : vector<8x8xf32>
    %350 = arith.truncf %349 : vector<8x8xf32> to vector<8x8xbf16>
    %351 = arith.truncf %333 : vector<8x8xf32> to vector<8x8xbf16>
    %cst_128 = arith.constant dense<0.000000e+00> : vector<8x8xf32>
    %352 = tpu.matmul %350, %351, %cst_128 {dimension_numbers = #tpu.dot_dimension_numbers<[1], [0], [0], [1], [0, 0, 1, 1], [], []>} : vector<8x8xbf16>, vector<8x8xbf16>, vector<8x8xf32> -> vector<8x8xf32>
    %353 = arith.truncf %352 : vector<8x8xf32> to vector<8x8xbf16>
    %354 = vector.extract_strided_slice %251 {offsets = [24, 0], sizes = [8, 32], strides = [1, 1]} : vector<32x32xbf16> to vector<8x32xbf16>
    %cst_129 = arith.constant dense<0.000000e+00> : vector<8x32xf32>
    %355 = tpu.matmul %353, %354, %cst_129 {dimension_numbers = #tpu.dot_dimension_numbers<[1], [0], [0], [1], [0, 0, 1, 1], [], []>} : vector<8x8xbf16>, vector<8x32xbf16>, vector<8x32xf32> -> vector<8x32xf32>
    %356 = arith.addf %330, %355 : vector<8x32xf32>
    %357 = arith.addf %215, %356 : vector<8x32xf32>
    %c1_130 = arith.constant 1 : index
    %c0_131 = arith.constant 0 : index
    %c0_132 = arith.constant 0 : index
    %358 = vector.load %arg8[%c1_130, %c0_131, %c0_132] : memref<2x1x32xf32, #tpu.memory_space<vmem>>, vector<1x1x32xf32>
    %359 = vector.shape_cast %358 : vector<1x1x32xf32> to vector<1x32xf32>
    %360 = vector.broadcast %359 : vector<1x32xf32> to vector<8x32xf32>
    %361 = arith.addf %357, %360 : vector<8x32xf32>
    %c1_133 = arith.constant 1 : index
    %c0_134 = arith.constant 0 : index
    %c0_135 = arith.constant 0 : index
    %362 = vector.load %arg9[%c1_133, %c0_134, %c0_135] : memref<2x1x32xf32, #tpu.memory_space<vmem>>, vector<1x1x32xf32>
    %363 = vector.shape_cast %362 : vector<1x1x32xf32> to vector<1x32xf32>
    %c1_136 = arith.constant 1 : index
    %c0_137 = arith.constant 0 : index
    %c0_138 = arith.constant 0 : index
    %364 = vector.load %arg10[%c1_136, %c0_137, %c0_138] : memref<2x1x32xf32, #tpu.memory_space<vmem>>, vector<1x1x32xf32>
    %365 = vector.shape_cast %364 : vector<1x1x32xf32> to vector<1x32xf32>
    %cst_139 = arith.constant dense<0.000000e+00> : vector<8xf32>
    %366 = vector.multi_reduction <add>, %361, %cst_139 [1] : vector<8x32xf32> to vector<8xf32>
    %367 = vector.shape_cast %366 : vector<8xf32> to vector<8x1xf32>
    %cst_140 = arith.constant 3.200000e+01 : f32
    %368 = vector.broadcast %cst_140 : f32 to vector<8x1xf32>
    %369 = arith.divf %367, %368 : vector<8x1xf32>
    %370 = vector.broadcast %369 : vector<8x1xf32> to vector<8x32xf32>
    %371 = arith.subf %361, %370 : vector<8x32xf32>
    %372 = arith.mulf %371, %371 : vector<8x32xf32>
    %cst_141 = arith.constant dense<0.000000e+00> : vector<8xf32>
    %373 = vector.multi_reduction <add>, %372, %cst_141 [1] : vector<8x32xf32> to vector<8xf32>
    %374 = vector.shape_cast %373 : vector<8xf32> to vector<8x1xf32>
    %cst_142 = arith.constant 3.200000e+01 : f32
    %375 = vector.broadcast %cst_142 : f32 to vector<8x1xf32>
    %376 = arith.divf %374, %375 : vector<8x1xf32>
    %377 = vector.broadcast %369 : vector<8x1xf32> to vector<8x32xf32>
    %378 = arith.subf %361, %377 : vector<8x32xf32>
    %cst_143 = arith.constant 9.99999974E-6 : f32
    %379 = vector.broadcast %cst_143 : f32 to vector<8x1xf32>
    %380 = arith.addf %376, %379 : vector<8x1xf32>
    %381 = math.rsqrt %380 : vector<8x1xf32>
    %382 = vector.broadcast %381 : vector<8x1xf32> to vector<8x32xf32>
    %383 = arith.mulf %378, %382 : vector<8x32xf32>
    %384 = vector.broadcast %363 : vector<1x32xf32> to vector<8x32xf32>
    %385 = arith.mulf %383, %384 : vector<8x32xf32>
    %386 = vector.broadcast %365 : vector<1x32xf32> to vector<8x32xf32>
    %387 = arith.addf %385, %386 : vector<8x32xf32>
    %388 = arith.truncf %387 : vector<8x32xf32> to vector<8x32xbf16>
    %c1_144 = arith.constant 1 : index
    %c0_145 = arith.constant 0 : index
    %c0_146 = arith.constant 0 : index
    %389 = vector.load %arg11[%c1_144, %c0_145, %c0_146] : memref<2x32x128xbf16, #tpu.memory_space<vmem>>, vector<1x32x128xbf16>
    %390 = vector.shape_cast %389 : vector<1x32x128xbf16> to vector<32x128xbf16>
    %cst_147 = arith.constant dense<0.000000e+00> : vector<8x128xf32>
    %391 = tpu.matmul %388, %390, %cst_147 {dimension_numbers = #tpu.dot_dimension_numbers<[1], [0], [0], [1], [0, 0, 1, 1], [], []>} : vector<8x32xbf16>, vector<32x128xbf16>, vector<8x128xf32> -> vector<8x128xf32>
    %c1_148 = arith.constant 1 : index
    %c0_149 = arith.constant 0 : index
    %c0_150 = arith.constant 0 : index
    %392 = vector.load %arg12[%c1_148, %c0_149, %c0_150] : memref<2x1x128xf32, #tpu.memory_space<vmem>>, vector<1x1x128xf32>
    %393 = vector.shape_cast %392 : vector<1x1x128xf32> to vector<1x128xf32>
    %394 = vector.broadcast %393 : vector<1x128xf32> to vector<8x128xf32>
    %395 = arith.addf %391, %394 : vector<8x128xf32>
    %cst_151 = arith.constant 5.000000e-01 : f32
    %396 = vector.broadcast %cst_151 : f32 to vector<8x128xf32>
    %397 = arith.mulf %396, %395 : vector<8x128xf32>
    %cst_152 = arith.constant 4.471500e-02 : f32
    %398 = vector.broadcast %cst_152 : f32 to vector<8x128xf32>
    %399 = arith.mulf %398, %395 : vector<8x128xf32>
    %400 = arith.mulf %399, %395 : vector<8x128xf32>
    %401 = arith.mulf %400, %395 : vector<8x128xf32>
    %402 = arith.addf %395, %401 : vector<8x128xf32>
    %cst_153 = arith.constant 0.797884583 : f32
    %403 = vector.broadcast %cst_153 : f32 to vector<8x128xf32>
    %404 = arith.mulf %403, %402 : vector<8x128xf32>
    %405 = math.tanh %404 : vector<8x128xf32>
    %cst_154 = arith.constant 1.000000e+00 : f32
    %406 = vector.broadcast %cst_154 : f32 to vector<8x128xf32>
    %407 = arith.addf %406, %405 : vector<8x128xf32>
    %408 = arith.mulf %397, %407 : vector<8x128xf32>
    %409 = arith.truncf %408 : vector<8x128xf32> to vector<8x128xbf16>
    %c1_155 = arith.constant 1 : index
    %c0_156 = arith.constant 0 : index
    %c0_157 = arith.constant 0 : index
    %410 = vector.load %arg13[%c1_155, %c0_156, %c0_157] : memref<2x128x32xbf16, #tpu.memory_space<vmem>>, vector<1x128x32xbf16>
    %411 = vector.shape_cast %410 : vector<1x128x32xbf16> to vector<128x32xbf16>
    %cst_158 = arith.constant dense<0.000000e+00> : vector<8x32xf32>
    %412 = tpu.matmul %409, %411, %cst_158 {dimension_numbers = #tpu.dot_dimension_numbers<[1], [0], [0], [1], [0, 0, 1, 1], [], []>} : vector<8x128xbf16>, vector<128x32xbf16>, vector<8x32xf32> -> vector<8x32xf32>
    %413 = arith.addf %361, %412 : vector<8x32xf32>
    %c1_159 = arith.constant 1 : index
    %c0_160 = arith.constant 0 : index
    %c0_161 = arith.constant 0 : index
    %414 = vector.load %arg14[%c1_159, %c0_160, %c0_161] : memref<2x1x32xf32, #tpu.memory_space<vmem>>, vector<1x1x32xf32>
    %415 = vector.shape_cast %414 : vector<1x1x32xf32> to vector<1x32xf32>
    %416 = vector.broadcast %415 : vector<1x32xf32> to vector<8x32xf32>
    %417 = arith.addf %413, %416 : vector<8x32xf32>
    %c0_162 = arith.constant 0 : index
    %c0_163 = arith.constant 0 : index
    %418 = vector.load %arg15[%c0_162, %c0_163] : memref<1x32xf32, #tpu.memory_space<vmem>>, vector<1x32xf32>
    %c0_164 = arith.constant 0 : index
    %c0_165 = arith.constant 0 : index
    %419 = vector.load %arg16[%c0_164, %c0_165] : memref<1x32xf32, #tpu.memory_space<vmem>>, vector<1x32xf32>
    %cst_166 = arith.constant dense<0.000000e+00> : vector<8xf32>
    %420 = vector.multi_reduction <add>, %417, %cst_166 [1] : vector<8x32xf32> to vector<8xf32>
    %421 = vector.shape_cast %420 : vector<8xf32> to vector<8x1xf32>
    %cst_167 = arith.constant 3.200000e+01 : f32
    %422 = vector.broadcast %cst_167 : f32 to vector<8x1xf32>
    %423 = arith.divf %421, %422 : vector<8x1xf32>
    %424 = vector.broadcast %423 : vector<8x1xf32> to vector<8x32xf32>
    %425 = arith.subf %417, %424 : vector<8x32xf32>
    %426 = arith.mulf %425, %425 : vector<8x32xf32>
    %cst_168 = arith.constant dense<0.000000e+00> : vector<8xf32>
    %427 = vector.multi_reduction <add>, %426, %cst_168 [1] : vector<8x32xf32> to vector<8xf32>
    %428 = vector.shape_cast %427 : vector<8xf32> to vector<8x1xf32>
    %cst_169 = arith.constant 3.200000e+01 : f32
    %429 = vector.broadcast %cst_169 : f32 to vector<8x1xf32>
    %430 = arith.divf %428, %429 : vector<8x1xf32>
    %431 = vector.broadcast %423 : vector<8x1xf32> to vector<8x32xf32>
    %432 = arith.subf %417, %431 : vector<8x32xf32>
    %cst_170 = arith.constant 9.99999974E-6 : f32
    %433 = vector.broadcast %cst_170 : f32 to vector<8x1xf32>
    %434 = arith.addf %430, %433 : vector<8x1xf32>
    %435 = math.rsqrt %434 : vector<8x1xf32>
    %436 = vector.broadcast %435 : vector<8x1xf32> to vector<8x32xf32>
    %437 = arith.mulf %432, %436 : vector<8x32xf32>
    %438 = vector.broadcast %418 : vector<1x32xf32> to vector<8x32xf32>
    %439 = arith.mulf %437, %438 : vector<8x32xf32>
    %440 = vector.broadcast %419 : vector<1x32xf32> to vector<8x32xf32>
    %441 = arith.addf %439, %440 : vector<8x32xf32>
    %442 = arith.truncf %441 : vector<8x32xf32> to vector<8x32xbf16>
    %c0_171 = arith.constant 0 : index
    %c0_172 = arith.constant 0 : index
    %443 = vector.load %arg17[%c0_171, %c0_172] : memref<256x32xbf16, #tpu.memory_space<vmem>>, vector<256x32xbf16>
    %cst_173 = arith.constant dense<0.000000e+00> : vector<8x256xf32>
    %444 = tpu.matmul %442, %443, %cst_173 {dimension_numbers = #tpu.dot_dimension_numbers<[1], [1], [0], [0], [0, 0, 1, 0], [], []>} : vector<8x32xbf16>, vector<256x32xbf16>, vector<8x256xf32> -> vector<8x256xf32>
    %c0_174 = arith.constant 0 : index
    %c0_175 = arith.constant 0 : index
    %c0_176 = arith.constant 0 : index
    %445 = vector.load %arg18[%c0_174, %c0_175, %c0_176] : memref<1x8x256xf32, #tpu.memory_space<vmem>>, vector<1x8x256xf32>
    %446 = vector.shape_cast %445 : vector<1x8x256xf32> to vector<8x256xf32>
    %447 = vector.shape_cast %444 : vector<8x256xf32> to vector<1x8x256xf32>
    tpu.vector_store %arg18[%c0_174, %c0_175, %c0_176], %447 {strides = array<i32>} : memref<1x8x256xf32, #tpu.memory_space<vmem>>, vector<1x8x256xf32>,
    return
  }
  func.func @transform_0(%arg0: i32) -> (i32, i32, i32) {
    %c0_i32 = arith.constant 0 : i32
    %c0_i32_0 = arith.constant 0 : i32
    %c0_i32_1 = arith.constant 0 : i32
    return %arg0, %c0_i32, %c0_i32_0 : i32, i32, i32
  }
  func.func @transform_1(%arg0: i32) -> (i32, i32, i32) {
    %c0_i32 = arith.constant 0 : i32
    %c0_i32_0 = arith.constant 0 : i32
    %c0_i32_1 = arith.constant 0 : i32
    return %arg0, %c0_i32, %c0_i32_0 : i32, i32, i32
  }
  func.func @transform_2(%arg0: i32) -> (i32, i32, i32) {
    %c0_i32 = arith.constant 0 : i32
    %c0_i32_0 = arith.constant 0 : i32
    %c0_i32_1 = arith.constant 0 : i32
    %c0_i32_2 = arith.constant 0 : i32
    return %c0_i32, %c0_i32_0, %c0_i32_1 : i32, i32, i32
  }
  func.func @transform_3(%arg0: i32) -> (i32, i32, i32) {
    %c0_i32 = arith.constant 0 : i32
    %c0_i32_0 = arith.constant 0 : i32
    %c0_i32_1 = arith.constant 0 : i32
    %c0_i32_2 = arith.constant 0 : i32
    return %c0_i32, %c0_i32_0, %c0_i32_1 : i32, i32, i32
  }
  func.func @transform_4(%arg0: i32) -> (i32, i32, i32) {
    %c0_i32 = arith.constant 0 : i32
    %c0_i32_0 = arith.constant 0 : i32
    %c0_i32_1 = arith.constant 0 : i32
    %c0_i32_2 = arith.constant 0 : i32
    return %c0_i32, %c0_i32_0, %c0_i32_1 : i32, i32, i32
  }
  func.func @transform_5(%arg0: i32) -> (i32, i32, i32) {
    %c0_i32 = arith.constant 0 : i32
    %c0_i32_0 = arith.constant 0 : i32
    %c0_i32_1 = arith.constant 0 : i32
    %c0_i32_2 = arith.constant 0 : i32
    return %c0_i32, %c0_i32_0, %c0_i32_1 : i32, i32, i32
  }
  func.func @transform_6(%arg0: i32) -> (i32, i32, i32) {
    %c0_i32 = arith.constant 0 : i32
    %c0_i32_0 = arith.constant 0 : i32
    %c0_i32_1 = arith.constant 0 : i32
    %c0_i32_2 = arith.constant 0 : i32
    return %c0_i32, %c0_i32_0, %c0_i32_1 : i32, i32, i32
  }
  func.func @transform_7(%arg0: i32) -> (i32, i32, i32) {
    %c0_i32 = arith.constant 0 : i32
    %c0_i32_0 = arith.constant 0 : i32
    %c0_i32_1 = arith.constant 0 : i32
    %c0_i32_2 = arith.constant 0 : i32
    return %c0_i32, %c0_i32_0, %c0_i32_1 : i32, i32, i32
  }
  func.func @transform_8(%arg0: i32) -> (i32, i32, i32) {
    %c0_i32 = arith.constant 0 : i32
    %c0_i32_0 = arith.constant 0 : i32
    %c0_i32_1 = arith.constant 0 : i32
    %c0_i32_2 = arith.constant 0 : i32
    return %c0_i32, %c0_i32_0, %c0_i32_1 : i32, i32, i32
  }
  func.func @transform_9(%arg0: i32) -> (i32, i32, i32) {
    %c0_i32 = arith.constant 0 : i32
    %c0_i32_0 = arith.constant 0 : i32
    %c0_i32_1 = arith.constant 0 : i32
    %c0_i32_2 = arith.constant 0 : i32
    return %c0_i32, %c0_i32_0, %c0_i32_1 : i32, i32, i32
  }
  func.func @transform_10(%arg0: i32) -> (i32, i32, i32) {
    %c0_i32 = arith.constant 0 : i32
    %c0_i32_0 = arith.constant 0 : i32
    %c0_i32_1 = arith.constant 0 : i32
    %c0_i32_2 = arith.constant 0 : i32
    return %c0_i32, %c0_i32_0, %c0_i32_1 : i32, i32, i32
  }
  func.func @transform_11(%arg0: i32) -> (i32, i32, i32) {
    %c0_i32 = arith.constant 0 : i32
    %c0_i32_0 = arith.constant 0 : i32
    %c0_i32_1 = arith.constant 0 : i32
    %c0_i32_2 = arith.constant 0 : i32
    return %c0_i32, %c0_i32_0, %c0_i32_1 : i32, i32, i32
  }
  func.func @transform_12(%arg0: i32) -> (i32, i32, i32) {
    %c0_i32 = arith.constant 0 : i32
    %c0_i32_0 = arith.constant 0 : i32
    %c0_i32_1 = arith.constant 0 : i32
    %c0_i32_2 = arith.constant 0 : i32
    return %c0_i32, %c0_i32_0, %c0_i32_1 : i32, i32, i32
  }
  func.func @transform_13(%arg0: i32) -> (i32, i32, i32) {
    %c0_i32 = arith.constant 0 : i32
    %c0_i32_0 = arith.constant 0 : i32
    %c0_i32_1 = arith.constant 0 : i32
    %c0_i32_2 = arith.constant 0 : i32
    return %c0_i32, %c0_i32_0, %c0_i32_1 : i32, i32, i32
  }
  func.func @transform_14(%arg0: i32) -> (i32, i32) {
    %c0_i32 = arith.constant 0 : i32
    %c0_i32_0 = arith.constant 0 : i32
    %c0_i32_1 = arith.constant 0 : i32
    return %c0_i32, %c0_i32_0 : i32, i32
  }
  func.func @transform_15(%arg0: i32) -> (i32, i32) {
    %c0_i32 = arith.constant 0 : i32
    %c0_i32_0 = arith.constant 0 : i32
    %c0_i32_1 = arith.constant 0 : i32
    return %c0_i32, %c0_i32_0 : i32, i32
  }
  func.func @transform_16(%arg0: i32) -> (i32, i32) {
    %c0_i32 = arith.constant 0 : i32
    %c0_i32_0 = arith.constant 0 : i32
    %c0_i32_1 = arith.constant 0 : i32
    return %c0_i32, %c0_i32_0 : i32, i32
  }
  func.func @transform_17(%arg0: i32) -> (i32, i32, i32) {
    %c0_i32 = arith.constant 0 : i32
    %c0_i32_0 = arith.constant 0 : i32
    %c0_i32_1 = arith.constant 0 : i32
    return %arg0, %c0_i32, %c0_i32_0 : i32, i32, i32
  }
}

</mosaic_0001>

<llo_original>
// kernel: instruction_generation_forward.1
$region0: #{instruction_generation_forward.1}
  #allocation0 [shape = 'u32[]', space=smem, size = 0x4, offset = 0x4, fixed_abs, tag = 'smem constant byte address 0x4 - core index']
  #allocation1 [shape = 'u32[144,128]{1,0:T(1,128)}', space=vmem, size = 0x12000, scoped, tag = 'internal scratch']
  %s0 = inlined_call_operand.vmem [shape: f32[2,8,32], index: 0, kind: input, shape index: {}]
  %s1 = inlined_call_operand.vmem [shape: f32[2,1,8], index: 1, kind: input, shape index: {}]
  %s2 = inlined_call_operand.vmem [shape: f32[2,1,32], index: 2, kind: input, shape index: {}]
  %s3 = inlined_call_operand.vmem [shape: f32[2,1,32], index: 3, kind: input, shape index: {}]
  %s4 = inlined_call_operand.vmem [shape: bf16[2,32,96], index: 4, kind: input, shape index: {}]
  %s5 = inlined_call_operand.vmem [shape: f32[2,1,96], index: 5, kind: input, shape index: {}]
  %s6 = inlined_call_operand.vmem [shape: bf16[2,32,32], index: 6, kind: input, shape index: {}]
  %s7 = inlined_call_operand.vmem [shape: f32[2,1,32], index: 7, kind: input, shape index: {}]
  %s8 = inlined_call_operand.vmem [shape: f32[2,1,32], index: 8, kind: input, shape index: {}]
  %s9 = inlined_call_operand.vmem [shape: f32[2,1,32], index: 9, kind: input, shape index: {}]
  %s10 = inlined_call_operand.vmem [shape: bf16[2,32,128], index: 10, kind: input, shape index: {}]
  %s11 = inlined_call_operand.vmem [shape: f32[2,1,128], index: 11, kind: input, shape index: {}]
  %s12 = inlined_call_operand.vmem [shape: bf16[2,128,32], index: 12, kind: input, shape index: {}]
  %s13 = inlined_call_operand.vmem [shape: f32[2,1,32], index: 13, kind: input, shape index: {}]
  %s14 = inlined_call_operand.vmem [shape: f32[1,32], index: 14, kind: input, shape index: {}]
  %s15 = inlined_call_operand.vmem [shape: f32[1,32], index: 15, kind: input, shape index: {}]
  %s16 = inlined_call_operand.vmem [shape: bf16[256,32], index: 16, kind: input, shape index: {}]
  %s17 = inlined_call_operand.hbm [shape: f32[2,8,256], index: 17, kind: output, shape index: {}]
  %s18 = sld [smem:[#allocation0]]
  $region101: #{instruction_generation_forward.1} parent=0
    _
  %s20 = ssub.s32 1, %s18
  %s21 = scalar_select 0, %s20, %s18
  $region1: #{instruction_generation_forward.1} parent=0
    #allocation2 [shape = 'u8[16384]{0}', space=vmem, size = 0x4000, scoped, tag = 'output window, operand 0']
    #allocation3 [shape = 's32[2]{0}', space=sflag, size = 0x8, scoped, tag = 'scoped memory for instruction_generation_forward.1']
    %22 = vsyncpa [#allocation3], 0
    %s23 = scalar_lea.sflag [#allocation3], 1
    %24 = vsyncpa %s23, 0
    loop: start=0, step=1, limit=4
    $region2: #{instruction_generation_forward.1} parent=1 // loop_pre_header
      _
    $region3: #{instruction_generation_forward.1} parent=1 // loop_header
      %s26 = sphi 0, %s30
      %p27 = scmp.ge.s32.totalorder %s26, 4
      %s36 = sphi 0, %s38
      %s39 = sphi 0, %s36
      %s40 = sphi 0, %s39
      %s56 = sphi 0, %s40
      %s62 = sphi 0, %s64
      %s65 = sphi 0, %s62
      %s66 = sphi 0, %s65
      %s82 = sphi 0, %s66
      %s86 = sphi 0, %s86
      %s88 = sphi 0, %s86
      %s89 = sphi 0, %s88
      %s103 = sphi 0, %s89
      %s107 = sphi 0, %s107
      %s109 = sphi 0, %s107
      %s110 = sphi 0, %s109
      %s124 = sphi 0, %s110
      %s128 = sphi 0, %s128
      %s130 = sphi 0, %s128
      %s131 = sphi 0, %s130
      %s145 = sphi 0, %s131
      %s149 = sphi 0, %s149
      %s151 = sphi 0, %s149
      %s152 = sphi 0, %s151
      %s166 = sphi 0, %s152
      %s170 = sphi 0, %s170
      %s172 = sphi 0, %s170
      %s173 = sphi 0, %s172
      %s187 = sphi 0, %s173
      %s191 = sphi 0, %s191
      %s193 = sphi 0, %s191
      %s194 = sphi 0, %s193
      %s208 = sphi 0, %s194
      %s212 = sphi 0, %s212
      %s214 = sphi 0, %s212
      %s215 = sphi 0, %s214
      %s229 = sphi 0, %s215
      %s233 = sphi 0, %s233
      %s235 = sphi 0, %s233
      %s236 = sphi 0, %s235
      %s250 = sphi 0, %s236
      %s254 = sphi 0, %s254
      %s256 = sphi 0, %s254
      %s257 = sphi 0, %s256
      %s271 = sphi 0, %s257
      %s275 = sphi 0, %s275
      %s277 = sphi 0, %s275
      %s278 = sphi 0, %s277
      %s292 = sphi 0, %s278
      %s296 = sphi 0, %s296
      %s298 = sphi 0, %s296
      %s299 = sphi 0, %s298
      %s313 = sphi 0, %s299
      %s317 = sphi 0, %s317
      %s319 = sphi 0, %s317
      %s320 = sphi 0, %s319
      %s334 = sphi 0, %s320
      %s338 = sphi 0, %s338
      %s340 = sphi 0, %s338
      %s341 = sphi 0, %s340
      %s355 = sphi 0, %s341
      %s359 = sphi 0, %s359
      %s361 = sphi 0, %s359
      %s362 = sphi 0, %s361
      %s376 = sphi 0, %s362
      %s380 = sphi 0, %s380
      %s382 = sphi 0, %s380
      %s383 = sphi 0, %s382
      %s397 = sphi 0, %s383
      %s403 = sphi 0, %s405
      %s406 = sphi 0, %s403
      %s407 = sphi 0, %s406
      %s423 = sphi 0, %s407
    $region4: #{instruction_generation_forward.1} parent=1 // loop_header_branch
      %29 = sbr.rel (%p27) target = $region8
    $region5: #{instruction_generation_forward.1} parent=1 // loop_body
      %s31 = ssub.s32 %s26, 1
      %s32 = ssub.s32 %s26, 2
      %s33 = sadd.s32 %s26, 1
      %s34 = ssub.s32 %s26, %s33
      %p35 = scmp.eq.s32.totalorder %s34, 0
      %s37 = sadd.s32 %s36, 1
      %s38 = scalar_select %p35, %s36, %s37
      %p41 = pneg %p35
      %p42 = scmp.eq.s32.totalorder %s26, 1
      %p43 = por %p41, %p42
      %p44 = scmp.ne.s32.totalorder %s36, %s39
      %p45 = scmp.eq.s32.totalorder %s26, 0
      %p46 = por %p44, %p45
      %p47 = scmp.ne.s32.totalorder %s36, %s39
      %p48 = scmp.eq.s32.totalorder %s31, 1
      %p49 = por %p47, %p48
      %p50 = scmp.ne.s32.totalorder %s39, %s40
      %p51 = scmp.eq.s32.totalorder %s31, 0
      %p52 = por %p50, %p51
      %p53 = scmp.ne.s32.totalorder %s39, %s40
      %p54 = scmp.eq.s32.totalorder %s32, 1
      %p55 = por %p53, %p54
      %p57 = scmp.ne.s32.totalorder %s40, %s56
      %p58 = scmp.eq.s32.totalorder %s32, 0
      %p59 = por %p57, %p58
      %s60 = ssub.s32 %s26, %s33
      %p61 = scmp.eq.s32.totalorder %s60, 0
      %s63 = sadd.s32 %s62, 1
      %s64 = scalar_select %p61, %s62, %s63
      %p67 = pneg %p61
      %p68 = scmp.eq.s32.totalorder %s26, 1
      %p69 = por %p67, %p68
      %p70 = scmp.ne.s32.totalorder %s62, %s65
      %p71 = scmp.eq.s32.totalorder %s26, 0
      %p72 = por %p70, %p71
      %p73 = scmp.ne.s32.totalorder %s62, %s65
      %p74 = scmp.eq.s32.totalorder %s31, 1
      %p75 = por %p73, %p74
      %p76 = scmp.ne.s32.totalorder %s65, %s66
      %p77 = scmp.eq.s32.totalorder %s31, 0
      %p78 = por %p76, %p77
      %p79 = scmp.ne.s32.totalorder %s65, %s66
      %p80 = scmp.eq.s32.totalorder %s32, 1
      %p81 = por %p79, %p80
      %p83 = scmp.ne.s32.totalorder %s66, %s82
      %p84 = scmp.eq.s32.totalorder %s32, 0
      %p85 = por %p83, %p84
      %s87 = sadd.s32 %s86, 1
      %p90 = scmp.eq.s32.totalorder %s26, 1
      %p91 = scmp.ne.s32.totalorder %s86, %s88
      %p92 = scmp.eq.s32.totalorder %s26, 0
      %p93 = por %p91, %p92
      %p94 = scmp.ne.s32.totalorder %s86, %s88
      %p95 = scmp.eq.s32.totalorder %s31, 1
      %p96 = por %p94, %p95
      %p97 = scmp.ne.s32.totalorder %s88, %s89
      %p98 = scmp.eq.s32.totalorder %s31, 0
      %p99 = por %p97, %p98
      %p100 = scmp.ne.s32.totalorder %s88, %s89
      %p101 = scmp.eq.s32.totalorder %s32, 1
      %p102 = por %p100, %p101
      %p104 = scmp.ne.s32.totalorder %s89, %s103
      %p105 = scmp.eq.s32.totalorder %s32, 0
      %p106 = por %p104, %p105
      %s108 = sadd.s32 %s107, 1
      %p111 = scmp.eq.s32.totalorder %s26, 1
      %p112 = scmp.ne.s32.totalorder %s107, %s109
      %p113 = scmp.eq.s32.totalorder %s26, 0
      %p114 = por %p112, %p113
      %p115 = scmp.ne.s32.totalorder %s107, %s109
      %p116 = scmp.eq.s32.totalorder %s31, 1
      %p117 = por %p115, %p116
      %p118 = scmp.ne.s32.totalorder %s109, %s110
      %p119 = scmp.eq.s32.totalorder %s31, 0
      %p120 = por %p118, %p119
      %p121 = scmp.ne.s32.totalorder %s109, %s110
      %p122 = scmp.eq.s32.totalorder %s32, 1
      %p123 = por %p121, %p122
      %p125 = scmp.ne.s32.totalorder %s110, %s124
      %p126 = scmp.eq.s32.totalorder %s32, 0
      %p127 = por %p125, %p126
      %s129 = sadd.s32 %s128, 1
      %p132 = scmp.eq.s32.totalorder %s26, 1
      %p133 = scmp.ne.s32.totalorder %s128, %s130
      %p134 = scmp.eq.s32.totalorder %s26, 0
      %p135 = por %p133, %p134
      %p136 = scmp.ne.s32.totalorder %s128, %s130
      %p137 = scmp.eq.s32.totalorder %s31, 1
      %p138 = por %p136, %p137
      %p139 = scmp.ne.s32.totalorder %s130, %s131
      %p140 = scmp.eq.s32.totalorder %s31, 0
      %p141 = por %p139, %p140
      %p142 = scmp.ne.s32.totalorder %s130, %s131
      %p143 = scmp.eq.s32.totalorder %s32, 1
      %p144 = por %p142, %p143
      %p146 = scmp.ne.s32.totalorder %s131, %s145
      %p147 = scmp.eq.s32.totalorder %s32, 0
      %p148 = por %p146, %p147
      %s150 = sadd.s32 %s149, 1
      %p153 = scmp.eq.s32.totalorder %s26, 1
      %p154 = scmp.ne.s32.totalorder %s149, %s151
      %p155 = scmp.eq.s32.totalorder %s26, 0
      %p156 = por %p154, %p155
      %p157 = scmp.ne.s32.totalorder %s149, %s151
      %p158 = scmp.eq.s32.totalorder %s31, 1
      %p159 = por %p157, %p158
      %p160 = scmp.ne.s32.totalorder %s151, %s152
      %p161 = scmp.eq.s32.totalorder %s31, 0
      %p162 = por %p160, %p161
      %p163 = scmp.ne.s32.totalorder %s151, %s152
      %p164 = scmp.eq.s32.totalorder %s32, 1
      %p165 = por %p163, %p164
      %p167 = scmp.ne.s32.totalorder %s152, %s166
      %p168 = scmp.eq.s32.totalorder %s32, 0
      %p169 = por %p167, %p168
      %s171 = sadd.s32 %s170, 1
      %p174 = scmp.eq.s32.totalorder %s26, 1
      %p175 = scmp.ne.s32.totalorder %s170, %s172
      %p176 = scmp.eq.s32.totalorder %s26, 0
      %p177 = por %p175, %p176
      %p178 = scmp.ne.s32.totalorder %s170, %s172
      %p179 = scmp.eq.s32.totalorder %s31, 1
      %p180 = por %p178, %p179
      %p181 = scmp.ne.s32.totalorder %s172, %s173
      %p182 = scmp.eq.s32.totalorder %s31, 0
      %p183 = por %p181, %p182
      %p184 = scmp.ne.s32.totalorder %s172, %s173
      %p185 = scmp.eq.s32.totalorder %s32, 1
      %p186 = por %p184, %p185
      %p188 = scmp.ne.s32.totalorder %s173, %s187
      %p189 = scmp.eq.s32.totalorder %s32, 0
      %p190 = por %p188, %p189
      %s192 = sadd.s32 %s191, 1
      %p195 = scmp.eq.s32.totalorder %s26, 1
      %p196 = scmp.ne.s32.totalorder %s191, %s193
      %p197 = scmp.eq.s32.totalorder %s26, 0
      %p198 = por %p196, %p197
      %p199 = scmp.ne.s32.totalorder %s191, %s193
      %p200 = scmp.eq.s32.totalorder %s31, 1
      %p201 = por %p199, %p200
      %p202 = scmp.ne.s32.totalorder %s193, %s194
      %p203 = scmp.eq.s32.totalorder %s31, 0
      %p204 = por %p202, %p203
      %p205 = scmp.ne.s32.totalorder %s193, %s194
      %p206 = scmp.eq.s32.totalorder %s32, 1
      %p207 = por %p205, %p206
      %p209 = scmp.ne.s32.totalorder %s194, %s208
      %p210 = scmp.eq.s32.totalorder %s32, 0
      %p211 = por %p209, %p210
      %s213 = sadd.s32 %s212, 1
      %p216 = scmp.eq.s32.totalorder %s26, 1
      %p217 = scmp.ne.s32.totalorder %s212, %s214
      %p218 = scmp.eq.s32.totalorder %s26, 0
      %p219 = por %p217, %p218
      %p220 = scmp.ne.s32.totalorder %s212, %s214
      %p221 = scmp.eq.s32.totalorder %s31, 1
      %p222 = por %p220, %p221
      %p223 = scmp.ne.s32.totalorder %s214, %s215
      %p224 = scmp.eq.s32.totalorder %s31, 0
      %p225 = por %p223, %p224
      %p226 = scmp.ne.s32.totalorder %s214, %s215
      %p227 = scmp.eq.s32.totalorder %s32, 1
      %p228 = por %p226, %p227
      %p230 = scmp.ne.s32.totalorder %s215, %s229
      %p231 = scmp.eq.s32.totalorder %s32, 0
      %p232 = por %p230, %p231
      %s234 = sadd.s32 %s233, 1
      %p237 = scmp.eq.s32.totalorder %s26, 1
      %p238 = scmp.ne.s32.totalorder %s233, %s235
      %p239 = scmp.eq.s32.totalorder %s26, 0
      %p240 = por %p238, %p239
      %p241 = scmp.ne.s32.totalorder %s233, %s235
      %p242 = scmp.eq.s32.totalorder %s31, 1
      %p243 = por %p241, %p242
      %p244 = scmp.ne.s32.totalorder %s235, %s236
      %p245 = scmp.eq.s32.totalorder %s31, 0
      %p246 = por %p244, %p245
      %p247 = scmp.ne.s32.totalorder %s235, %s236
      %p248 = scmp.eq.s32.totalorder %s32, 1
      %p249 = por %p247, %p248
      %p251 = scmp.ne.s32.totalorder %s236, %s250
      %p252 = scmp.eq.s32.totalorder %s32, 0
      %p253 = por %p251, %p252
      %s255 = sadd.s32 %s254, 1
      %p258 = scmp.eq.s32.totalorder %s26, 1
      %p259 = scmp.ne.s32.totalorder %s254, %s256
      %p260 = scmp.eq.s32.totalorder %s26, 0
      %p261 = por %p259, %p260
      %p262 = scmp.ne.s32.totalorder %s254, %s256
      %p263 = scmp.eq.s32.totalorder %s31, 1
      %p264 = por %p262, %p263
      %p265 = scmp.ne.s32.totalorder %s256, %s257
      %p266 = scmp.eq.s32.totalorder %s31, 0
      %p267 = por %p265, %p266
      %p268 = scmp.ne.s32.totalorder %s256, %s257
      %p269 = scmp.eq.s32.totalorder %s32, 1
      %p270 = por %p268, %p269
      %p272 = scmp.ne.s32.totalorder %s257, %s271
      %p273 = scmp.eq.s32.totalorder %s32, 0
      %p274 = por %p272, %p273
      %s276 = sadd.s32 %s275, 1
      %p279 = scmp.eq.s32.totalorder %s26, 1
      %p280 = scmp.ne.s32.totalorder %s275, %s277
      %p281 = scmp.eq.s32.totalorder %s26, 0
      %p282 = por %p280, %p281
      %p283 = scmp.ne.s32.totalorder %s275, %s277
      %p284 = scmp.eq.s32.totalorder %s31, 1
      %p285 = por %p283, %p284
      %p286 = scmp.ne.s32.totalorder %s277, %s278
      %p287 = scmp.eq.s32.totalorder %s31, 0
      %p288 = por %p286, %p287
      %p289 = scmp.ne.s32.totalorder %s277, %s278
      %p290 = scmp.eq.s32.totalorder %s32, 1
      %p291 = por %p289, %p290
      %p293 = scmp.ne.s32.totalorder %s278, %s292
      %p294 = scmp.eq.s32.totalorder %s32, 0
      %p295 = por %p293, %p294
      %s297 = sadd.s32 %s296, 1
      %p300 = scmp.eq.s32.totalorder %s26, 1
      %p301 = scmp.ne.s32.totalorder %s296, %s298
      %p302 = scmp.eq.s32.totalorder %s26, 0
      %p303 = por %p301, %p302
      %p304 = scmp.ne.s32.totalorder %s296, %s298
      %p305 = scmp.eq.s32.totalorder %s31, 1
      %p306 = por %p304, %p305
      %p307 = scmp.ne.s32.totalorder %s298, %s299
      %p308 = scmp.eq.s32.totalorder %s31, 0
      %p309 = por %p307, %p308
      %p310 = scmp.ne.s32.totalorder %s298, %s299
      %p311 = scmp.eq.s32.totalorder %s32, 1
      %p312 = por %p310, %p311
      %p314 = scmp.ne.s32.totalorder %s299, %s313
      %p315 = scmp.eq.s32.totalorder %s32, 0
      %p316 = por %p314, %p315
      %s318 = sadd.s32 %s317, 1
      %p321 = scmp.eq.s32.totalorder %s26, 1
      %p322 = scmp.ne.s32.totalorder %s317, %s319
      %p323 = scmp.eq.s32.totalorder %s26, 0
      %p324 = por %p322, %p323
      %p325 = scmp.ne.s32.totalorder %s317, %s319
      %p326 = scmp.eq.s32.totalorder %s31, 1
      %p327 = por %p325, %p326
      %p328 = scmp.ne.s32.totalorder %s319, %s320
      %p329 = scmp.eq.s32.totalorder %s31, 0
      %p330 = por %p328, %p329
      %p331 = scmp.ne.s32.totalorder %s319, %s320
      %p332 = scmp.eq.s32.totalorder %s32, 1
      %p333 = por %p331, %p332
      %p335 = scmp.ne.s32.totalorder %s320, %s334
      %p336 = scmp.eq.s32.totalorder %s32, 0
      %p337 = por %p335, %p336
      %s339 = sadd.s32 %s338, 1
      %p342 = scmp.eq.s32.totalorder %s26, 1
      %p343 = scmp.ne.s32.totalorder %s338, %s340
      %p344 = scmp.eq.s32.totalorder %s26, 0
      %p345 = por %p343, %p344
      %p346 = scmp.ne.s32.totalorder %s338, %s340
      %p347 = scmp.eq.s32.totalorder %s31, 1
      %p348 = por %p346, %p347
      %p349 = scmp.ne.s32.totalorder %s340, %s341
      %p350 = scmp.eq.s32.totalorder %s31, 0
      %p351 = por %p349, %p350
      %p352 = scmp.ne.s32.totalorder %s340, %s341
      %p353 = scmp.eq.s32.totalorder %s32, 1
      %p354 = por %p352, %p353
      %p356 = scmp.ne.s32.totalorder %s341, %s355
      %p357 = scmp.eq.s32.totalorder %s32, 0
      %p358 = por %p356, %p357
      %s360 = sadd.s32 %s359, 1
      %p363 = scmp.eq.s32.totalorder %s26, 1
      %p364 = scmp.ne.s32.totalorder %s359, %s361
      %p365 = scmp.eq.s32.totalorder %s26, 0
      %p366 = por %p364, %p365
      %p367 = scmp.ne.s32.totalorder %s359, %s361
      %p368 = scmp.eq.s32.totalorder %s31, 1
      %p369 = por %p367, %p368
      %p370 = scmp.ne.s32.totalorder %s361, %s362
      %p371 = scmp.eq.s32.totalorder %s31, 0
      %p372 = por %p370, %p371
      %p373 = scmp.ne.s32.totalorder %s361, %s362
      %p374 = scmp.eq.s32.totalorder %s32, 1
      %p375 = por %p373, %p374
      %p377 = scmp.ne.s32.totalorder %s362, %s376
      %p378 = scmp.eq.s32.totalorder %s32, 0
      %p379 = por %p377, %p378
      %s381 = sadd.s32 %s380, 1
      %p384 = scmp.eq.s32.totalorder %s26, 1
      %p385 = scmp.ne.s32.totalorder %s380, %s382
      %p386 = scmp.eq.s32.totalorder %s26, 0
      %p387 = por %p385, %p386
      %p388 = scmp.ne.s32.totalorder %s380, %s382
      %p389 = scmp.eq.s32.totalorder %s31, 1
      %p390 = por %p388, %p389
      %p391 = scmp.ne.s32.totalorder %s382, %s383
      %p392 = scmp.eq.s32.totalorder %s31, 0
      %p393 = por %p391, %p392
      %p394 = scmp.ne.s32.totalorder %s382, %s383
      %p395 = scmp.eq.s32.totalorder %s32, 1
      %p396 = por %p394, %p395
      %p398 = scmp.ne.s32.totalorder %s383, %s397
      %p399 = scmp.eq.s32.totalorder %s32, 0
      %p400 = por %p398, %p399
      %s401 = ssub.s32 %s26, %s33
      %p402 = scmp.eq.s32.totalorder %s401, 0
      %s404 = sadd.s32 %s403, 1
      %s405 = scalar_select %p402, %s403, %s404
      %p408 = pneg %p402
      %p409 = scmp.eq.s32.totalorder %s26, 1
      %p410 = por %p408, %p409
      %p411 = scmp.ne.s32.totalorder %s403, %s406
      %p412 = scmp.eq.s32.totalorder %s26, 0
      %p413 = por %p411, %p412
      %p414 = scmp.ne.s32.totalorder %s403, %s406
      %p415 = scmp.eq.s32.totalorder %s31, 1
      %p416 = por %p414, %p415
      %p417 = scmp.ne.s32.totalorder %s406, %s407
      %p418 = scmp.eq.s32.totalorder %s31, 0
      %p419 = por %p417, %p418
      %p420 = scmp.ne.s32.totalorder %s406, %s407
      %p421 = scmp.eq.s32.totalorder %s32, 1
      %p422 = por %p420, %p421
      %p424 = scmp.ne.s32.totalorder %s407, %s423
      %p425 = scmp.eq.s32.totalorder %s32, 0
      %p426 = por %p424, %p425
      %p427 = scmp.le.s32.totalorder 1, %s26
      %p428 = scmp.lt.s32.totalorder %s26, 3
      %p429 = pnand %p427, %p428
      %p430 = pneg %p429
      // Predicated region
      $region9: #{instruction_generation_forward.1} parent=5 // pred_check
        _
      $region10: #{instruction_generation_forward.1} parent=5 // pred_check_branch
        %432 = sbr.rel (%p429) target = $region12
      $region11: #{instruction_generation_forward.1} parent=5 // pred_region
        %s433 = ssub.s32 %s26, 1
        // Predicated region
        $region13: #{instruction_generation_forward.1} parent=11 // pred_check
          %p434 = pneg %p99
        $region14: #{instruction_generation_forward.1} parent=11 // pred_check_branch
          %436 = sbr.rel (%p434) target = $region16
        $region15: #{instruction_generation_forward.1} parent=11 // pred_region
          _
        $region16: #{instruction_generation_forward.1} parent=11 // pred_fallthru
          _
        // Predicated region
        $region17: #{instruction_generation_forward.1} parent=11 // pred_check
          %p437 = pneg %p120
        $region18: #{instruction_generation_forward.1} parent=11 // pred_check_branch
          %439 = sbr.rel (%p437) target = $region20
        $region19: #{instruction_generation_forward.1} parent=11 // pred_region
          _
        $region20: #{instruction_generation_forward.1} parent=11 // pred_fallthru
          _
        // Predicated region
        $region21: #{instruction_generation_forward.1} parent=11 // pred_check
          %p440 = pneg %p141
        $region22: #{instruction_generation_forward.1} parent=11 // pred_check_branch
          %442 = sbr.rel (%p440) target = $region24
        $region23: #{instruction_generation_forward.1} parent=11 // pred_region
          _
        $region24: #{instruction_generation_forward.1} parent=11 // pred_fallthru
          _
        // Predicated region
        $region25: #{instruction_generation_forward.1} parent=11 // pred_check
          %p443 = pneg %p162
        $region26: #{instruction_generation_forward.1} parent=11 // pred_check_branch
          %445 = sbr.rel (%p443) target = $region28
        $region27: #{instruction_generation_forward.1} parent=11 // pred_region
          _
        $region28: #{instruction_generation_forward.1} parent=11 // pred_fallthru
          _
        // Predicated region
        $region29: #{instruction_generation_forward.1} parent=11 // pred_check
          %p446 = pneg %p183
        $region30: #{instruction_generation_forward.1} parent=11 // pred_check_branch
          %448 = sbr.rel (%p446) target = $region32
        $region31: #{instruction_generation_forward.1} parent=11 // pred_region
          _
        $region32: #{instruction_generation_forward.1} parent=11 // pred_fallthru
          _
        // Predicated region
        $region33: #{instruction_generation_forward.1} parent=11 // pred_check
          %p449 = pneg %p204
        $region34: #{instruction_generation_forward.1} parent=11 // pred_check_branch
          %451 = sbr.rel (%p449) target = $region36
        $region35: #{instruction_generation_forward.1} parent=11 // pred_region
          _
        $region36: #{instruction_generation_forward.1} parent=11 // pred_fallthru
          _
        // Predicated region
        $region37: #{instruction_generation_forward.1} parent=11 // pred_check
          %p452 = pneg %p225
        $region38: #{instruction_generation_forward.1} parent=11 // pred_check_branch
          %454 = sbr.rel (%p452) target = $region40
        $region39: #{instruction_generation_forward.1} parent=11 // pred_region
          _
        $region40: #{instruction_generation_forward.1} parent=11 // pred_fallthru
          _
        // Predicated region
        $region41: #{instruction_generation_forward.1} parent=11 // pred_check
          %p455 = pneg %p246
        $region42: #{instruction_generation_forward.1} parent=11 // pred_check_branch
          %457 = sbr.rel (%p455) target = $region44
        $region43: #{instruction_generation_forward.1} parent=11 // pred_region
          _
        $region44: #{instruction_generation_forward.1} parent=11 // pred_fallthru
          _
        // Predicated region
        $region45: #{instruction_generation_forward.1} parent=11 // pred_check
          %p458 = pneg %p267
        $region46: #{instruction_generation_forward.1} parent=11 // pred_check_branch
          %460 = sbr.rel (%p458) target = $region48
        $region47: #{instruction_generation_forward.1} parent=11 // pred_region
          _
        $region48: #{instruction_generation_forward.1} parent=11 // pred_fallthru
          _
        // Predicated region
        $region49: #{instruction_generation_forward.1} parent=11 // pred_check
          %p461 = pneg %p288
        $region50: #{instruction_generation_forward.1} parent=11 // pred_check_branch
          %463 = sbr.rel (%p461) target = $region52
        $region51: #{instruction_generation_forward.1} parent=11 // pred_region
          _
        $region52: #{instruction_generation_forward.1} parent=11 // pred_fallthru
          _
        // Predicated region
        $region53: #{instruction_generation_forward.1} parent=11 // pred_check
          %p464 = pneg %p309
        $region54: #{instruction_generation_forward.1} parent=11 // pred_check_branch
          %466 = sbr.rel (%p464) target = $region56
        $region55: #{instruction_generation_forward.1} parent=11 // pred_region
          _
        $region56: #{instruction_generation_forward.1} parent=11 // pred_fallthru
          _
        // Predicated region
        $region57: #{instruction_generation_forward.1} parent=11 // pred_check
          %p467 = pneg %p330
        $region58: #{instruction_generation_forward.1} parent=11 // pred_check_branch
          %469 = sbr.rel (%p467) target = $region60
        $region59: #{instruction_generation_forward.1} parent=11 // pred_region
          _
        $region60: #{instruction_generation_forward.1} parent=11 // pred_fallthru
          _
        // Predicated region
        $region61: #{instruction_generation_forward.1} parent=11 // pred_check
          %p470 = pneg %p351
        $region62: #{instruction_generation_forward.1} parent=11 // pred_check_branch
          %472 = sbr.rel (%p470) target = $region64
        $region63: #{instruction_generation_forward.1} parent=11 // pred_region
          _
        $region64: #{instruction_generation_forward.1} parent=11 // pred_fallthru
          _
        // Predicated region
        $region65: #{instruction_generation_forward.1} parent=11 // pred_check
          %p473 = pneg %p372
        $region66: #{instruction_generation_forward.1} parent=11 // pred_check_branch
          %475 = sbr.rel (%p473) target = $region68
        $region67: #{instruction_generation_forward.1} parent=11 // pred_region
          _
        $region68: #{instruction_generation_forward.1} parent=11 // pred_fallthru
          _
        // Predicated region
        $region69: #{instruction_generation_forward.1} parent=11 // pred_check
          %p476 = pneg %p393
        $region70: #{instruction_generation_forward.1} parent=11 // pred_check_branch
          %478 = sbr.rel (%p476) target = $region72
        $region71: #{instruction_generation_forward.1} parent=11 // pred_region
          _
        $region72: #{instruction_generation_forward.1} parent=11 // pred_fallthru
          _
      $region12: #{instruction_generation_forward.1} parent=5 // pred_fallthru
        _
      %p479 = scmp.lt.s32.totalorder %s26, 2
      // Predicated region
      $region73: #{instruction_generation_forward.1} parent=5 // pred_check
        %p480 = pneg %p479
      $region74: #{instruction_generation_forward.1} parent=5 // pred_check_branch
        %482 = sbr.rel (%p480) target = $region76
      $region75: #{instruction_generation_forward.1} parent=5 // pred_region
        // Predicated region
        $region77: #{instruction_generation_forward.1} parent=75 // pred_check
          %p483 = pneg %p46
        $region78: #{instruction_generation_forward.1} parent=75 // pred_check_branch
          %485 = sbr.rel (%p483) target = $region80
        $region79: #{instruction_generation_forward.1} parent=75 // pred_region
          %p486 = scmp.lt.s32.totalorder %s26, 1
          %s487 = scalar_select %p486, %s26, 1
          %s488 = smul.addr %s487, 8
          %s489 = scalar_lea.vmem %s0, %s488
        $region80: #{instruction_generation_forward.1} parent=75 // pred_fallthru
          _
        // Predicated region
        $region81: #{instruction_generation_forward.1} parent=75 // pred_check
          %p490 = pneg %p72
        $region82: #{instruction_generation_forward.1} parent=75 // pred_check_branch
          %492 = sbr.rel (%p490) target = $region84
        $region83: #{instruction_generation_forward.1} parent=75 // pred_region
          %p493 = scmp.lt.s32.totalorder %s26, 1
          %s494 = scalar_select %p493, %s26, 1
          %s495 = scalar_lea.vmem %s1, %s494
        $region84: #{instruction_generation_forward.1} parent=75 // pred_fallthru
          _
      $region76: #{instruction_generation_forward.1} parent=5 // pred_fallthru
        _
      %p496 = scmp.le.s32.totalorder 1, %s26
      %p497 = scmp.lt.s32.totalorder %s26, 3
      %p498 = pnand %p496, %p497
      %p499 = pneg %p498
      // Predicated region
      $region85: #{instruction_generation_forward.1} parent=5 // pred_check
        _
      $region86: #{instruction_generation_forward.1} parent=5 // pred_check_branch
        %501 = sbr.rel (%p498) target = $region88
      $region87: #{instruction_generation_forward.1} parent=5 // pred_region
        %s502 = ssub.s32 %s26, 1
        %p503 = scmp.lt.s32.totalorder %s31, 1
        %s504 = scalar_select %p503, %s31, 1
        %s505 = smul.addr %s504, 8
        %s506 = scalar_lea.vmem %s0, %s505
        %p507 = pneg %p52
        %p508 = pneg %p49
        %p509 = scmp.lt.s32.totalorder %s31, 1
        %s510 = scalar_select %p509, %s31, 1
        %s511 = scalar_lea.vmem %s1, %s510
        %p512 = pneg %p78
        %p513 = pneg %p75
        %p514 = pneg %p99
        %p515 = pneg %p96
        %p516 = pneg %p120
        %p517 = pneg %p117
        %p518 = pneg %p141
        %p519 = pneg %p138
        %p520 = pneg %p162
        %p521 = pneg %p159
        %p522 = pneg %p183
        %p523 = pneg %p180
        %p524 = pneg %p204
        %p525 = pneg %p201
        %p526 = pneg %p225
        %p527 = pneg %p222
        %p528 = pneg %p246
        %p529 = pneg %p243
        %p530 = pneg %p267
        %p531 = pneg %p264
        %p532 = pneg %p288
        %p533 = pneg %p285
        %p534 = pneg %p309
        %p535 = pneg %p306
        %p536 = pneg %p330
        %p537 = pneg %p327
        %p538 = pneg %p351
        %p539 = pneg %p348
        %p540 = pneg %p372
        %p541 = pneg %p369
        %p542 = pneg %p393
        %p543 = pneg %p390
        %p544 = pneg %p419
        %p545 = pneg %p416
        %s546 = sand.u32 %s406, 1
        %s547 = scalar_lea.sflag [#allocation3], %s546
        %s548 = sand.u32 %s406, 1
        %s549 = smul.addr %s548, 16
        %s550 = scalar_lea.vmem [#allocation2], %s549
        %p551 = scmp.lt.s32.totalorder %s31, 1
        %s552 = scalar_select %p551, %s31, 1
        %s553 = smul.addr %s552, 8
        %s554 = scalar_lea.vmem %s0, %s553
        %p555 = scmp.lt.s32.totalorder %s31, 1
        %s556 = scalar_select %p555, %s31, 1
        %s557 = scalar_lea.vmem %s1, %s556
        %v559 = vld [vmem:[%s554] sm:$0xff]
        %v560 = vlaneseq
        %v561 = vshrl.u32 %v560, 7
        %v562 = vlaneseq
        %v563 = vand.u32 %v562, 127
        %vm564 = vcmp.ge.s32.totalorder %v561, %v563
        %v565 = vld [vmem:[%s557] sm:$0x1]
        %vm566 = vcmp.gt.f32.partialorder %v565, 0.5
        %v567 = vsel %vm566, 1, 0
        %v568 = vlaneseq
        %v569 = vshrl.u32 %v568, 7
        %v570 = vsub.s32 0, %v569
        %v571 = vrot.slane %v567, %v570
        %vm572 = vcmp.eq.s32.totalorder %v571, 1
        %vm573 = vmand %vm564, %vm572
        %v574 = vsel %vm573, 0.0, -1e+09
        %v575 = vld [vmem:[%s2] sm:$0x1]
        %v576 = vld [vmem:[%s3] sm:$0x1]
        %vm577 = vcmask 261120
        %v578 = vsel %vm577, %v559, 0.0
        %579 = vadd.xlane.f32.xlu0 %v578
        %v580 = vpop.xlane.xlu0 %579
        %v581 = vrcp.pop 32.0
        %v582 = vmul.f32 %v580, %v581
        %v583 = vsub.f32 %v559, %v582
        %v584 = vmul.f32 %v583, %v583
        %v585 = vsel %vm577, %v584, 0.0
        %586 = vadd.xlane.f32.xlu0 %v585
        %v587 = vpop.xlane.xlu0 %586
        %v588 = vmul.f32 %v587, %v581
        %v589 = vadd.f32 %v588, 1e-05
        %v590 = vrsqrt.pop %v589
        %v591 = vmul.f32 %v583, %v590
        %v593 = vlaneseq
        %v594 = vshrl.u32 %v593, 7
        %v595 = vsub.s32 0, %v594
        %v596 = vrot.slane %v575, %v595
        %v598 = vmul.f32 %v591, %v596
        %v600 = vlaneseq
        %v601 = vshrl.u32 %v600, 7
        %v602 = vsub.s32 0, %v601
        %v603 = vrot.slane %v576, %v602
        %v605 = vadd.f32 %v598, %v603
        %v606 = vpack.c.bf16 %v605, %v605
        %v607 = vld [vmem:[%s4] sm:$0xf]
        %v608 = vld [vmem:[%s4 + $0x4] sm:$0xf]
        %v609 = vld [vmem:[%s4 + $0x8] sm:$0xf]
        %v610 = vld [vmem:[%s4 + $0xc] sm:$0xf]
        %v611 = vld [vmem:[%s5] sm:$0x1]
        %v613 = vlaneseq
        %v614 = vshrl.u32 %v613, 7
        %v615 = vsub.s32 0, %v614
        %v616 = vrot.slane %v611, %v615
        %v622 = vunpack.c.l.b16 %v607
        %v623 = vunpack.c.l.b16 %v608
        %v624 = vunpack.c.l.b16 %v609
        %v625 = vunpack.c.l.b16 %v610
        %v626 = vpack.c.b16 %v623, %v622
        %v627 = vpack.c.b16 %v625, %v624
        %v631 = vsel %vm577, %v606, 0
        %633 = vmatprep.subr.bf16.mxu0 0
        %634 = vmatpush1.bf16.msra.mxu0 0
        %635 = vmatprep.subr.bf16.mxu0 0
        %636 = vmatpush1.bf16.msra.mxu0 0
        %637 = vmatprep.subr.bf16.mxu0 0
        %638 = vmatpush1.bf16.msra.mxu0 0
        %639 = vmatprep.subr.bf16.mxu0 0
        %640 = vmatpush1.bf16.msra.mxu0 0
        %641 = vmatprep.subr.bf16.mxu0 0
        %642 = vmatpush1.bf16.msra.mxu0 0
        %643 = vmatprep.subr.bf16.mxu0 0
        %644 = vmatpush1.bf16.msra.mxu0 0
        %645 = vmatprep.subr.bf16.mxu0 0
        %646 = vmatpush1.bf16.msra.mxu0 %v627
        %647 = vmatprep.subr.bf16.mxu0 0
        %648 = vmatpush1.bf16.msra.mxu0 %v626
        %649 = vmatprep.subr.bf16.mxu0 0
        %650 = vmatpush2.bf16.msra.mxu0 0
        %651 = vmatprep.subr.bf16.mxu0 0
        %652 = vmatpush2.bf16.msra.mxu0 0
        %653 = vmatprep.subr.bf16.mxu0 0
        %654 = vmatpush2.bf16.msra.mxu0 0
        %655 = vmatprep.subr.bf16.mxu0 0
        %656 = vmatpush2.bf16.msra.mxu0 0
        %657 = vmatprep.subr.bf16.mxu0 0
        %658 = vmatpush2.bf16.msra.mxu0 0
        %659 = vmatprep.subr.bf16.mxu0 0
        %660 = vmatpush2.bf16.msra.mxu0 0
        %661 = vmatprep.subr.bf16.mxu0 0
        %662 = vmatpush2.bf16.msra.mxu0 0
        %663 = vmatprep.subr.bf16.mxu0 0
        %664 = vmatpush2.bf16.msra.mxu0 0
        %665 = vmatprep.mubr.bf16.mxu0 0
        %666 = vmatmul.mubr.bf16.gmra.mxu0 %v631
        %v667 = vpop.f32.mrf.mxu0
        %v668 = vadd.f32 %v616, %v667
        %v669 = vpop.f32.mrf.mxu0
        %v670 = vpop.f32.mrf.mxu0
        %v671 = vpop.f32.mrf.mxu0
        %672 = vdwg.mxu0
        %v673 = vld [vmem:[%s6] sm:$0xf]
        %v674 = vld [vmem:[%s6 + $0x4] sm:$0xf]
        %v675 = vld [vmem:[%s6 + $0x8] sm:$0xf]
        %v676 = vld [vmem:[%s6 + $0xc] sm:$0xf]
        %v677 = vpack.c.bf16 %v668, %v668
        %679 = vrot.lane.b32.xlu0 %v677, 96
        %v680 = vpop.permute.xlu0 %679
        %vm681 = vcmask 64512
        %v683 = vsel %vm681, %v677, 0
        %v686 = vsel %vm681, %v680, 0
        %688 = vmatprep.subr.bf16.mxu0 0
        %689 = vmatpush1.bf16.xpose.msra.mxu0 0
        %690 = vmatprep.subr.bf16.mxu0 0
        %691 = vmatpush1.bf16.xpose.msra.mxu0 0
        %692 = vmatprep.subr.bf16.mxu0 0
        %693 = vmatpush1.bf16.xpose.msra.mxu0 0
        %694 = vmatprep.subr.bf16.mxu0 0
        %695 = vmatpush1.bf16.xpose.msra.mxu0 0
        %696 = vmatprep.subr.bf16.mxu0 0
        %697 = vmatpush1.bf16.xpose.msra.mxu0 0
        %698 = vmatprep.subr.bf16.mxu0 0
        %699 = vmatpush1.bf16.xpose.msra.mxu0 0
        %700 = vmatprep.subr.bf16.mxu0 0
        %701 = vmatpush1.bf16.xpose.msra.mxu0 0
        %702 = vmatprep.subr.bf16.mxu0 0
        %703 = vmatpush1.bf16.xpose.msra.mxu0 %v686
        %704 = vmatprep.subr.bf16.mxu0 0
        %705 = vmatpush2.bf16.xpose.msra.mxu0 0
        %706 = vmatprep.subr.bf16.mxu0 0
        %707 = vmatpush2.bf16.xpose.msra.mxu0 0
        %708 = vmatprep.subr.bf16.mxu0 0
        %709 = vmatpush2.bf16.xpose.msra.mxu0 0
        %710 = vmatprep.subr.bf16.mxu0 0
        %711 = vmatpush2.bf16.xpose.msra.mxu0 0
        %712 = vmatprep.subr.bf16.mxu0 0
        %713 = vmatpush2.bf16.xpose.msra.mxu0 0
        %714 = vmatprep.subr.bf16.mxu0 0
        %715 = vmatpush2.bf16.xpose.msra.mxu0 0
        %716 = vmatprep.subr.bf16.mxu0 0
        %717 = vmatpush2.bf16.xpose.msra.mxu0 0
        %718 = vmatprep.subr.bf16.mxu0 0
        %719 = vmatpush2.bf16.xpose.msra.mxu0 0
        %720 = vmatprep.mubr.bf16.mxu0 0
        %721 = vmatmul.mubr.bf16.gmra.mxu0 %v683
        %v722 = vpop.f32.mrf.mxu0
        %v723 = vadd.f32 0.0, %v722
        %v724 = vpop.f32.mrf.mxu0
        %v725 = vpop.f32.mrf.mxu0
        %v726 = vpop.f32.mrf.mxu0
        %727 = vdwg.mxu0
        %v728 = vmul.f32 %v723, 0.35355338
        %v729 = vadd.f32 %v728, %v574
        %v730 = vsel %vm681, %v729, -inf
        %731 = vmax.xlane.f32.xlu0 %v730
        %v732 = vpop.xlane.xlu0 %731
        %v733 = vsub.f32 %v729, %v732
        %v734 = vmul.f32 %v733, 1.442695
        %v735 = vpow.pop %v734
        %v736 = vsel %vm681, %v735, 0.0
        %737 = vadd.xlane.f32.xlu0 %v736
        %v738 = vpop.xlane.xlu0 %737
        %v739 = vrcp.pop %v738
        %v740 = vmul.f32 %v735, %v739
        %v741 = vpack.c.bf16 %v740, %v740
        %742 = vrot.lane.b32.xlu0 %v677, 64
        %v743 = vpop.permute.xlu0 %742
        %v745 = vsel %vm681, %v741, 0
        %vm747 = vcmask 1043456
        %v749 = vsel %vm747, %v743, 0
        %751 = vmatprep.subr.bf16.mxu0 0
        %752 = vmatpush1.bf16.msra.mxu0 0
        %753 = vmatprep.subr.bf16.mxu0 0
        %754 = vmatpush1.bf16.msra.mxu0 0
        %755 = vmatprep.subr.bf16.mxu0 0
        %756 = vmatpush1.bf16.msra.mxu0 0
        %757 = vmatprep.subr.bf16.mxu0 0
        %758 = vmatpush1.bf16.msra.mxu0 0
        %759 = vmatprep.subr.bf16.mxu0 0
        %760 = vmatpush1.bf16.msra.mxu0 0
        %761 = vmatprep.subr.bf16.mxu0 0
        %762 = vmatpush1.bf16.msra.mxu0 0
        %763 = vmatprep.subr.bf16.mxu0 0
        %764 = vmatpush1.bf16.msra.mxu0 0
        %765 = vmatprep.subr.bf16.mxu0 0
        %766 = vmatpush1.bf16.msra.mxu0 %v749
        %767 = vmatprep.subr.bf16.mxu0 0
        %768 = vmatpush2.bf16.msra.mxu0 0
        %769 = vmatprep.subr.bf16.mxu0 0
        %770 = vmatpush2.bf16.msra.mxu0 0
        %771 = vmatprep.subr.bf16.mxu0 0
        %772 = vmatpush2.bf16.msra.mxu0 0
        %773 = vmatprep.subr.bf16.mxu0 0
        %774 = vmatpush2.bf16.msra.mxu0 0
        %775 = vmatprep.subr.bf16.mxu0 0
        %776 = vmatpush2.bf16.msra.mxu0 0
        %777 = vmatprep.subr.bf16.mxu0 0
        %778 = vmatpush2.bf16.msra.mxu0 0
        %779 = vmatprep.subr.bf16.mxu0 0
        %780 = vmatpush2.bf16.msra.mxu0 0
        %781 = vmatprep.subr.bf16.mxu0 0
        %782 = vmatpush2.bf16.msra.mxu0 0
        %783 = vmatprep.mubr.bf16.mxu0 0
        %784 = vmatmul.mubr.bf16.gmra.mxu0 %v745
        %v785 = vpop.f32.mrf.mxu0
        %v786 = vadd.f32 0.0, %v785
        %v787 = vpop.f32.mrf.mxu0
        %v788 = vpop.f32.mrf.mxu0
        %v789 = vpop.f32.mrf.mxu0
        %790 = vdwg.mxu0
        %v791 = vpack.c.bf16 %v786, %v786
        %792 = vrot.lane.b32.xlu0 %v677, 120
        %v793 = vpop.permute.xlu0 %792
        %794 = vrot.lane.b32.xlu0 %v677, 88
        %v795 = vpop.permute.xlu0 %794
        %v797 = vsel %vm681, %v793, 0
        %v800 = vsel %vm681, %v795, 0
        %802 = vmatprep.subr.bf16.mxu0 0
        %803 = vmatpush1.bf16.xpose.msra.mxu0 0
        %804 = vmatprep.subr.bf16.mxu0 0
        %805 = vmatpush1.bf16.xpose.msra.mxu0 0
        %806 = vmatprep.subr.bf16.mxu0 0
        %807 = vmatpush1.bf16.xpose.msra.mxu0 0
        %808 = vmatprep.subr.bf16.mxu0 0
        %809 = vmatpush1.bf16.xpose.msra.mxu0 0
        %810 = vmatprep.subr.bf16.mxu0 0
        %811 = vmatpush1.bf16.xpose.msra.mxu0 0
        %812 = vmatprep.subr.bf16.mxu0 0
        %813 = vmatpush1.bf16.xpose.msra.mxu0 0
        %814 = vmatprep.subr.bf16.mxu0 0
        %815 = vmatpush1.bf16.xpose.msra.mxu0 0
        %816 = vmatprep.subr.bf16.mxu0 0
        %817 = vmatpush1.bf16.xpose.msra.mxu0 %v800
        %818 = vmatprep.subr.bf16.mxu0 0
        %819 = vmatpush2.bf16.xpose.msra.mxu0 0
        %820 = vmatprep.subr.bf16.mxu0 0
        %821 = vmatpush2.bf16.xpose.msra.mxu0 0
        %822 = vmatprep.subr.bf16.mxu0 0
        %823 = vmatpush2.bf16.xpose.msra.mxu0 0
        %824 = vmatprep.subr.bf16.mxu0 0
        %825 = vmatpush2.bf16.xpose.msra.mxu0 0
        %826 = vmatprep.subr.bf16.mxu0 0
        %827 = vmatpush2.bf16.xpose.msra.mxu0 0
        %828 = vmatprep.subr.bf16.mxu0 0
        %829 = vmatpush2.bf16.xpose.msra.mxu0 0
        %830 = vmatprep.subr.bf16.mxu0 0
        %831 = vmatpush2.bf16.xpose.msra.mxu0 0
        %832 = vmatprep.subr.bf16.mxu0 0
        %833 = vmatpush2.bf16.xpose.msra.mxu0 0
        %834 = vmatprep.mubr.bf16.mxu0 0
        %835 = vmatmul.mubr.bf16.gmra.mxu0 %v797
        %v836 = vpop.f32.mrf.mxu0
        %v837 = vadd.f32 0.0, %v836
        %v838 = vpop.f32.mrf.mxu0
        %v839 = vpop.f32.mrf.mxu0
        %v840 = vpop.f32.mrf.mxu0
        %841 = vdwg.mxu0
        %v842 = vmul.f32 %v837, 0.35355338
        %v843 = vadd.f32 %v842, %v574
        %v844 = vsel %vm681, %v843, -inf
        %845 = vmax.xlane.f32.xlu0 %v844
        %v846 = vpop.xlane.xlu0 %845
        %v847 = vsub.f32 %v843, %v846
        %v848 = vmul.f32 %v847, 1.442695
        %v849 = vpow.pop %v848
        %v850 = vsel %vm681, %v849, 0.0
        %851 = vadd.xlane.f32.xlu0 %v850
        %v852 = vpop.xlane.xlu0 %851
        %v853 = vrcp.pop %v852
        %v854 = vmul.f32 %v849, %v853
        %v855 = vpack.c.bf16 %v854, %v854
        %856 = vrot.lane.b32.xlu0 %v677, 56
        %v857 = vpop.permute.xlu0 %856
        %v859 = vsel %vm681, %v855, 0
        %v862 = vsel %vm747, %v857, 0
        %864 = vmatprep.subr.bf16.mxu0 0
        %865 = vmatpush1.bf16.msra.mxu0 0
        %866 = vmatprep.subr.bf16.mxu0 0
        %867 = vmatpush1.bf16.msra.mxu0 0
        %868 = vmatprep.subr.bf16.mxu0 0
        %869 = vmatpush1.bf16.msra.mxu0 0
        %870 = vmatprep.subr.bf16.mxu0 0
        %871 = vmatpush1.bf16.msra.mxu0 0
        %872 = vmatprep.subr.bf16.mxu0 0
        %873 = vmatpush1.bf16.msra.mxu0 0
        %874 = vmatprep.subr.bf16.mxu0 0
        %875 = vmatpush1.bf16.msra.mxu0 0
        %876 = vmatprep.subr.bf16.mxu0 0
        %877 = vmatpush1.bf16.msra.mxu0 0
        %878 = vmatprep.subr.bf16.mxu0 0
        %879 = vmatpush1.bf16.msra.mxu0 %v862
        %880 = vmatprep.subr.bf16.mxu0 0
        %881 = vmatpush2.bf16.msra.mxu0 0
        %882 = vmatprep.subr.bf16.mxu0 0
        %883 = vmatpush2.bf16.msra.mxu0 0
        %884 = vmatprep.subr.bf16.mxu0 0
        %885 = vmatpush2.bf16.msra.mxu0 0
        %886 = vmatprep.subr.bf16.mxu0 0
        %887 = vmatpush2.bf16.msra.mxu0 0
        %888 = vmatprep.subr.bf16.mxu0 0
        %889 = vmatpush2.bf16.msra.mxu0 0
        %890 = vmatprep.subr.bf16.mxu0 0
        %891 = vmatpush2.bf16.msra.mxu0 0
        %892 = vmatprep.subr.bf16.mxu0 0
        %893 = vmatpush2.bf16.msra.mxu0 0
        %894 = vmatprep.subr.bf16.mxu0 0
        %895 = vmatpush2.bf16.msra.mxu0 0
        %896 = vmatprep.mubr.bf16.mxu0 0
        %897 = vmatmul.mubr.bf16.gmra.mxu0 %v859
        %v898 = vpop.f32.mrf.mxu0
        %v899 = vadd.f32 0.0, %v898
        %v900 = vpop.f32.mrf.mxu0
        %v901 = vpop.f32.mrf.mxu0
        %v902 = vpop.f32.mrf.mxu0
        %903 = vdwg.mxu0
        %v904 = vpack.c.bf16 %v899, %v899
        %v906 = vsel %vm681, %v904, 0
        %v909 = vsel %vm747, %v674, 0
        %911 = vmatprep.subr.bf16.mxu0 0
        %912 = vmatpush1.bf16.msra.mxu0 0
        %913 = vmatprep.subr.bf16.mxu0 0
        %914 = vmatpush1.bf16.msra.mxu0 0
        %915 = vmatprep.subr.bf16.mxu0 0
        %916 = vmatpush1.bf16.msra.mxu0 0
        %917 = vmatprep.subr.bf16.mxu0 0
        %918 = vmatpush1.bf16.msra.mxu0 0
        %919 = vmatprep.subr.bf16.mxu0 0
        %920 = vmatpush1.bf16.msra.mxu0 0
        %921 = vmatprep.subr.bf16.mxu0 0
        %922 = vmatpush1.bf16.msra.mxu0 0
        %923 = vmatprep.subr.bf16.mxu0 0
        %924 = vmatpush1.bf16.msra.mxu0 0
        %925 = vmatprep.subr.bf16.mxu0 0
        %926 = vmatpush1.bf16.msra.mxu0 %v909
        %927 = vmatprep.subr.bf16.mxu0 0
        %928 = vmatpush2.bf16.msra.mxu0 0
        %929 = vmatprep.subr.bf16.mxu0 0
        %930 = vmatpush2.bf16.msra.mxu0 0
        %931 = vmatprep.subr.bf16.mxu0 0
        %932 = vmatpush2.bf16.msra.mxu0 0
        %933 = vmatprep.subr.bf16.mxu0 0
        %934 = vmatpush2.bf16.msra.mxu0 0
        %935 = vmatprep.subr.bf16.mxu0 0
        %936 = vmatpush2.bf16.msra.mxu0 0
        %937 = vmatprep.subr.bf16.mxu0 0
        %938 = vmatpush2.bf16.msra.mxu0 0
        %939 = vmatprep.subr.bf16.mxu0 0
        %940 = vmatpush2.bf16.msra.mxu0 0
        %941 = vmatprep.subr.bf16.mxu0 0
        %942 = vmatpush2.bf16.msra.mxu0 0
        %943 = vmatprep.mubr.bf16.mxu0 0
        %944 = vmatmul.mubr.bf16.gmra.mxu0 %v906
        %v945 = vpop.f32.mrf.mxu0
        %v946 = vadd.f32 0.0, %v945
        %v947 = vpop.f32.mrf.mxu0
        %v948 = vpop.f32.mrf.mxu0
        %v949 = vpop.f32.mrf.mxu0
        %950 = vdwg.mxu0
        %v952 = vsel %vm681, %v791, 0
        %v955 = vsel %vm747, %v673, 0
        %957 = vmatprep.subr.bf16.mxu0 0
        %958 = vmatpush1.bf16.msra.mxu0 0
        %959 = vmatprep.subr.bf16.mxu0 0
        %960 = vmatpush1.bf16.msra.mxu0 0
        %961 = vmatprep.subr.bf16.mxu0 0
        %962 = vmatpush1.bf16.msra.mxu0 0
        %963 = vmatprep.subr.bf16.mxu0 0
        %964 = vmatpush1.bf16.msra.mxu0 0
        %965 = vmatprep.subr.bf16.mxu0 0
        %966 = vmatpush1.bf16.msra.mxu0 0
        %967 = vmatprep.subr.bf16.mxu0 0
        %968 = vmatpush1.bf16.msra.mxu0 0
        %969 = vmatprep.subr.bf16.mxu0 0
        %970 = vmatpush1.bf16.msra.mxu0 0
        %971 = vmatprep.subr.bf16.mxu0 0
        %972 = vmatpush1.bf16.msra.mxu0 %v955
        %973 = vmatprep.subr.bf16.mxu0 0
        %974 = vmatpush2.bf16.msra.mxu0 0
        %975 = vmatprep.subr.bf16.mxu0 0
        %976 = vmatpush2.bf16.msra.mxu0 0
        %977 = vmatprep.subr.bf16.mxu0 0
        %978 = vmatpush2.bf16.msra.mxu0 0
        %979 = vmatprep.subr.bf16.mxu0 0
        %980 = vmatpush2.bf16.msra.mxu0 0
        %981 = vmatprep.subr.bf16.mxu0 0
        %982 = vmatpush2.bf16.msra.mxu0 0
        %983 = vmatprep.subr.bf16.mxu0 0
        %984 = vmatpush2.bf16.msra.mxu0 0
        %985 = vmatprep.subr.bf16.mxu0 0
        %986 = vmatpush2.bf16.msra.mxu0 0
        %987 = vmatprep.subr.bf16.mxu0 0
        %988 = vmatpush2.bf16.msra.mxu0 0
        %989 = vmatprep.mubr.bf16.mxu0 0
        %990 = vmatmul.mubr.bf16.gmra.mxu0 %v952
        %v991 = vpop.f32.mrf.mxu0
        %v992 = vadd.f32 %v946, %v991
        %v993 = vpop.f32.mrf.mxu0
        %v994 = vpop.f32.mrf.mxu0
        %v995 = vpop.f32.mrf.mxu0
        %996 = vdwg.mxu0
        %997 = vrot.lane.b32.xlu0 %v677, 112
        %v998 = vpop.permute.xlu0 %997
        %999 = vrot.lane.b32.xlu0 %v677, 80
        %v1000 = vpop.permute.xlu0 %999
        %v1002 = vsel %vm681, %v998, 0
        %v1005 = vsel %vm681, %v1000, 0
        %1007 = vmatprep.subr.bf16.mxu0 0
        %1008 = vmatpush1.bf16.xpose.msra.mxu0 0
        %1009 = vmatprep.subr.bf16.mxu0 0
        %1010 = vmatpush1.bf16.xpose.msra.mxu0 0
        %1011 = vmatprep.subr.bf16.mxu0 0
        %1012 = vmatpush1.bf16.xpose.msra.mxu0 0
        %1013 = vmatprep.subr.bf16.mxu0 0
        %1014 = vmatpush1.bf16.xpose.msra.mxu0 0
        %1015 = vmatprep.subr.bf16.mxu0 0
        %1016 = vmatpush1.bf16.xpose.msra.mxu0 0
        %1017 = vmatprep.subr.bf16.mxu0 0
        %1018 = vmatpush1.bf16.xpose.msra.mxu0 0
        %1019 = vmatprep.subr.bf16.mxu0 0
        %1020 = vmatpush1.bf16.xpose.msra.mxu0 0
        %1021 = vmatprep.subr.bf16.mxu0 0
        %1022 = vmatpush1.bf16.xpose.msra.mxu0 %v1005
        %1023 = vmatprep.subr.bf16.mxu0 0
        %1024 = vmatpush2.bf16.xpose.msra.mxu0 0
        %1025 = vmatprep.subr.bf16.mxu0 0
        %1026 = vmatpush2.bf16.xpose.msra.mxu0 0
        %1027 = vmatprep.subr.bf16.mxu0 0
        %1028 = vmatpush2.bf16.xpose.msra.mxu0 0
        %1029 = vmatprep.subr.bf16.mxu0 0
        %1030 = vmatpush2.bf16.xpose.msra.mxu0 0
        %1031 = vmatprep.subr.bf16.mxu0 0
        %1032 = vmatpush2.bf16.xpose.msra.mxu0 0
        %1033 = vmatprep.subr.bf16.mxu0 0
        %1034 = vmatpush2.bf16.xpose.msra.mxu0 0
        %1035 = vmatprep.subr.bf16.mxu0 0
        %1036 = vmatpush2.bf16.xpose.msra.mxu0 0
        %1037 = vmatprep.subr.bf16.mxu0 0
        %1038 = vmatpush2.bf16.xpose.msra.mxu0 0
        %1039 = vmatprep.mubr.bf16.mxu0 0
        %1040 = vmatmul.mubr.bf16.gmra.mxu0 %v1002
        %v1041 = vpop.f32.mrf.mxu0
        %v1042 = vadd.f32 0.0, %v1041
        %v1043 = vpop.f32.mrf.mxu0
        %v1044 = vpop.f32.mrf.mxu0
        %v1045 = vpop.f32.mrf.mxu0
        %1046 = vdwg.mxu0
        %v1047 = vmul.f32 %v1042, 0.35355338
        %v1048 = vadd.f32 %v1047, %v574
        %v1049 = vsel %vm681, %v1048, -inf
        %1050 = vmax.xlane.f32.xlu0 %v1049
        %v1051 = vpop.xlane.xlu0 %1050
        %v1052 = vsub.f32 %v1048, %v1051
        %v1053 = vmul.f32 %v1052, 1.442695
        %v1054 = vpow.pop %v1053
        %v1055 = vsel %vm681, %v1054, 0.0
        %1056 = vadd.xlane.f32.xlu0 %v1055
        %v1057 = vpop.xlane.xlu0 %1056
        %v1058 = vrcp.pop %v1057
        %v1059 = vmul.f32 %v1054, %v1058
        %v1060 = vpack.c.bf16 %v1059, %v1059
        %1061 = vrot.lane.b32.xlu0 %v677, 48
        %v1062 = vpop.permute.xlu0 %1061
        %v1064 = vsel %vm681, %v1060, 0
        %v1067 = vsel %vm747, %v1062, 0
        %1069 = vmatprep.subr.bf16.mxu0 0
        %1070 = vmatpush1.bf16.msra.mxu0 0
        %1071 = vmatprep.subr.bf16.mxu0 0
        %1072 = vmatpush1.bf16.msra.mxu0 0
        %1073 = vmatprep.subr.bf16.mxu0 0
        %1074 = vmatpush1.bf16.msra.mxu0 0
        %1075 = vmatprep.subr.bf16.mxu0 0
        %1076 = vmatpush1.bf16.msra.mxu0 0
        %1077 = vmatprep.subr.bf16.mxu0 0
        %1078 = vmatpush1.bf16.msra.mxu0 0
        %1079 = vmatprep.subr.bf16.mxu0 0
        %1080 = vmatpush1.bf16.msra.mxu0 0
        %1081 = vmatprep.subr.bf16.mxu0 0
        %1082 = vmatpush1.bf16.msra.mxu0 0
        %1083 = vmatprep.subr.bf16.mxu0 0
        %1084 = vmatpush1.bf16.msra.mxu0 %v1067
        %1085 = vmatprep.subr.bf16.mxu0 0
        %1086 = vmatpush2.bf16.msra.mxu0 0
        %1087 = vmatprep.subr.bf16.mxu0 0
        %1088 = vmatpush2.bf16.msra.mxu0 0
        %1089 = vmatprep.subr.bf16.mxu0 0
        %1090 = vmatpush2.bf16.msra.mxu0 0
        %1091 = vmatprep.subr.bf16.mxu0 0
        %1092 = vmatpush2.bf16.msra.mxu0 0
        %1093 = vmatprep.subr.bf16.mxu0 0
        %1094 = vmatpush2.bf16.msra.mxu0 0
        %1095 = vmatprep.subr.bf16.mxu0 0
        %1096 = vmatpush2.bf16.msra.mxu0 0
        %1097 = vmatprep.subr.bf16.mxu0 0
        %1098 = vmatpush2.bf16.msra.mxu0 0
        %1099 = vmatprep.subr.bf16.mxu0 0
        %1100 = vmatpush2.bf16.msra.mxu0 0
        %1101 = vmatprep.mubr.bf16.mxu0 0
        %1102 = vmatmul.mubr.bf16.gmra.mxu0 %v1064
        %v1103 = vpop.f32.mrf.mxu0
        %v1104 = vadd.f32 0.0, %v1103
        %v1105 = vpop.f32.mrf.mxu0
        %v1106 = vpop.f32.mrf.mxu0
        %v1107 = vpop.f32.mrf.mxu0
        %1108 = vdwg.mxu0
        %v1109 = vpack.c.bf16 %v1104, %v1104
        %v1111 = vsel %vm681, %v1109, 0
        %v1114 = vsel %vm747, %v675, 0
        %1116 = vmatprep.subr.bf16.mxu0 0
        %1117 = vmatpush1.bf16.msra.mxu0 0
        %1118 = vmatprep.subr.bf16.mxu0 0
        %1119 = vmatpush1.bf16.msra.mxu0 0
        %1120 = vmatprep.subr.bf16.mxu0 0
        %1121 = vmatpush1.bf16.msra.mxu0 0
        %1122 = vmatprep.subr.bf16.mxu0 0
        %1123 = vmatpush1.bf16.msra.mxu0 0
        %1124 = vmatprep.subr.bf16.mxu0 0
        %1125 = vmatpush1.bf16.msra.mxu0 0
        %1126 = vmatprep.subr.bf16.mxu0 0
        %1127 = vmatpush1.bf16.msra.mxu0 0
        %1128 = vmatprep.subr.bf16.mxu0 0
        %1129 = vmatpush1.bf16.msra.mxu0 0
        %1130 = vmatprep.subr.bf16.mxu0 0
        %1131 = vmatpush1.bf16.msra.mxu0 %v1114
        %1132 = vmatprep.subr.bf16.mxu0 0
        %1133 = vmatpush2.bf16.msra.mxu0 0
        %1134 = vmatprep.subr.bf16.mxu0 0
        %1135 = vmatpush2.bf16.msra.mxu0 0
        %1136 = vmatprep.subr.bf16.mxu0 0
        %1137 = vmatpush2.bf16.msra.mxu0 0
        %1138 = vmatprep.subr.bf16.mxu0 0
        %1139 = vmatpush2.bf16.msra.mxu0 0
        %1140 = vmatprep.subr.bf16.mxu0 0
        %1141 = vmatpush2.bf16.msra.mxu0 0
        %1142 = vmatprep.subr.bf16.mxu0 0
        %1143 = vmatpush2.bf16.msra.mxu0 0
        %1144 = vmatprep.subr.bf16.mxu0 0
        %1145 = vmatpush2.bf16.msra.mxu0 0
        %1146 = vmatprep.subr.bf16.mxu0 0
        %1147 = vmatpush2.bf16.msra.mxu0 0
        %1148 = vmatprep.mubr.bf16.mxu0 0
        %1149 = vmatmul.mubr.bf16.gmra.mxu0 %v1111
        %v1150 = vpop.f32.mrf.mxu0
        %v1151 = vadd.f32 0.0, %v1150
        %v1152 = vpop.f32.mrf.mxu0
        %v1153 = vpop.f32.mrf.mxu0
        %v1154 = vpop.f32.mrf.mxu0
        %1155 = vdwg.mxu0
        %v1156 = vadd.f32 %v992, %v1151
        %1157 = vrot.lane.b32.xlu0 %v677, 104
        %v1158 = vpop.permute.xlu0 %1157
        %1159 = vrot.lane.b32.xlu0 %v677, 72
        %v1160 = vpop.permute.xlu0 %1159
        %v1162 = vsel %vm681, %v1158, 0
        %v1165 = vsel %vm681, %v1160, 0
        %1167 = vmatprep.subr.bf16.mxu0 0
        %1168 = vmatpush1.bf16.xpose.msra.mxu0 0
        %1169 = vmatprep.subr.bf16.mxu0 0
        %1170 = vmatpush1.bf16.xpose.msra.mxu0 0
        %1171 = vmatprep.subr.bf16.mxu0 0
        %1172 = vmatpush1.bf16.xpose.msra.mxu0 0
        %1173 = vmatprep.subr.bf16.mxu0 0
        %1174 = vmatpush1.bf16.xpose.msra.mxu0 0
        %1175 = vmatprep.subr.bf16.mxu0 0
        %1176 = vmatpush1.bf16.xpose.msra.mxu0 0
        %1177 = vmatprep.subr.bf16.mxu0 0
        %1178 = vmatpush1.bf16.xpose.msra.mxu0 0
        %1179 = vmatprep.subr.bf16.mxu0 0
        %1180 = vmatpush1.bf16.xpose.msra.mxu0 0
        %1181 = vmatprep.subr.bf16.mxu0 0
        %1182 = vmatpush1.bf16.xpose.msra.mxu0 %v1165
        %1183 = vmatprep.subr.bf16.mxu0 0
        %1184 = vmatpush2.bf16.xpose.msra.mxu0 0
        %1185 = vmatprep.subr.bf16.mxu0 0
        %1186 = vmatpush2.bf16.xpose.msra.mxu0 0
        %1187 = vmatprep.subr.bf16.mxu0 0
        %1188 = vmatpush2.bf16.xpose.msra.mxu0 0
        %1189 = vmatprep.subr.bf16.mxu0 0
        %1190 = vmatpush2.bf16.xpose.msra.mxu0 0
        %1191 = vmatprep.subr.bf16.mxu0 0
        %1192 = vmatpush2.bf16.xpose.msra.mxu0 0
        %1193 = vmatprep.subr.bf16.mxu0 0
        %1194 = vmatpush2.bf16.xpose.msra.mxu0 0
        %1195 = vmatprep.subr.bf16.mxu0 0
        %1196 = vmatpush2.bf16.xpose.msra.mxu0 0
        %1197 = vmatprep.subr.bf16.mxu0 0
        %1198 = vmatpush2.bf16.xpose.msra.mxu0 0
        %1199 = vmatprep.mubr.bf16.mxu0 0
        %1200 = vmatmul.mubr.bf16.gmra.mxu0 %v1162
        %v1201 = vpop.f32.mrf.mxu0
        %v1202 = vadd.f32 0.0, %v1201
        %v1203 = vpop.f32.mrf.mxu0
        %v1204 = vpop.f32.mrf.mxu0
        %v1205 = vpop.f32.mrf.mxu0
        %1206 = vdwg.mxu0
        %v1207 = vmul.f32 %v1202, 0.35355338
        %v1208 = vadd.f32 %v1207, %v574
        %v1209 = vsel %vm681, %v1208, -inf
        %1210 = vmax.xlane.f32.xlu0 %v1209
        %v1211 = vpop.xlane.xlu0 %1210
        %v1212 = vsub.f32 %v1208, %v1211
        %v1213 = vmul.f32 %v1212, 1.442695
        %v1214 = vpow.pop %v1213
        %v1215 = vsel %vm681, %v1214, 0.0
        %1216 = vadd.xlane.f32.xlu0 %v1215
        %v1217 = vpop.xlane.xlu0 %1216
        %v1218 = vrcp.pop %v1217
        %v1219 = vmul.f32 %v1214, %v1218
        %v1220 = vpack.c.bf16 %v1219, %v1219
        %1221 = vrot.lane.b32.xlu0 %v677, 40
        %v1222 = vpop.permute.xlu0 %1221
        %v1224 = vsel %vm681, %v1220, 0
        %v1227 = vsel %vm747, %v1222, 0
        %1229 = vmatprep.subr.bf16.mxu0 0
        %1230 = vmatpush1.bf16.msra.mxu0 0
        %1231 = vmatprep.subr.bf16.mxu0 0
        %1232 = vmatpush1.bf16.msra.mxu0 0
        %1233 = vmatprep.subr.bf16.mxu0 0
        %1234 = vmatpush1.bf16.msra.mxu0 0
        %1235 = vmatprep.subr.bf16.mxu0 0
        %1236 = vmatpush1.bf16.msra.mxu0 0
        %1237 = vmatprep.subr.bf16.mxu0 0
        %1238 = vmatpush1.bf16.msra.mxu0 0
        %1239 = vmatprep.subr.bf16.mxu0 0
        %1240 = vmatpush1.bf16.msra.mxu0 0
        %1241 = vmatprep.subr.bf16.mxu0 0
        %1242 = vmatpush1.bf16.msra.mxu0 0
        %1243 = vmatprep.subr.bf16.mxu0 0
        %1244 = vmatpush1.bf16.msra.mxu0 %v1227
        %1245 = vmatprep.subr.bf16.mxu0 0
        %1246 = vmatpush2.bf16.msra.mxu0 0
        %1247 = vmatprep.subr.bf16.mxu0 0
        %1248 = vmatpush2.bf16.msra.mxu0 0
        %1249 = vmatprep.subr.bf16.mxu0 0
        %1250 = vmatpush2.bf16.msra.mxu0 0
        %1251 = vmatprep.subr.bf16.mxu0 0
        %1252 = vmatpush2.bf16.msra.mxu0 0
        %1253 = vmatprep.subr.bf16.mxu0 0
        %1254 = vmatpush2.bf16.msra.mxu0 0
        %1255 = vmatprep.subr.bf16.mxu0 0
        %1256 = vmatpush2.bf16.msra.mxu0 0
        %1257 = vmatprep.subr.bf16.mxu0 0
        %1258 = vmatpush2.bf16.msra.mxu0 0
        %1259 = vmatprep.subr.bf16.mxu0 0
        %1260 = vmatpush2.bf16.msra.mxu0 0
        %1261 = vmatprep.mubr.bf16.mxu0 0
        %1262 = vmatmul.mubr.bf16.gmra.mxu0 %v1224
        %v1263 = vpop.f32.mrf.mxu0
        %v1264 = vadd.f32 0.0, %v1263
        %v1265 = vpop.f32.mrf.mxu0
        %v1266 = vpop.f32.mrf.mxu0
        %v1267 = vpop.f32.mrf.mxu0
        %1268 = vdwg.mxu0
        %v1269 = vpack.c.bf16 %v1264, %v1264
        %v1271 = vsel %vm681, %v1269, 0
        %v1274 = vsel %vm747, %v676, 0
        %1276 = vmatprep.subr.bf16.mxu0 0
        %1277 = vmatpush1.bf16.msra.mxu0 0
        %1278 = vmatprep.subr.bf16.mxu0 0
        %1279 = vmatpush1.bf16.msra.mxu0 0
        %1280 = vmatprep.subr.bf16.mxu0 0
        %1281 = vmatpush1.bf16.msra.mxu0 0
        %1282 = vmatprep.subr.bf16.mxu0 0
        %1283 = vmatpush1.bf16.msra.mxu0 0
        %1284 = vmatprep.subr.bf16.mxu0 0
        %1285 = vmatpush1.bf16.msra.mxu0 0
        %1286 = vmatprep.subr.bf16.mxu0 0
        %1287 = vmatpush1.bf16.msra.mxu0 0
        %1288 = vmatprep.subr.bf16.mxu0 0
        %1289 = vmatpush1.bf16.msra.mxu0 0
        %1290 = vmatprep.subr.bf16.mxu0 0
        %1291 = vmatpush1.bf16.msra.mxu0 %v1274
        %1292 = vmatprep.subr.bf16.mxu0 0
        %1293 = vmatpush2.bf16.msra.mxu0 0
        %1294 = vmatprep.subr.bf16.mxu0 0
        %1295 = vmatpush2.bf16.msra.mxu0 0
        %1296 = vmatprep.subr.bf16.mxu0 0
        %1297 = vmatpush2.bf16.msra.mxu0 0
        %1298 = vmatprep.subr.bf16.mxu0 0
        %1299 = vmatpush2.bf16.msra.mxu0 0
        %1300 = vmatprep.subr.bf16.mxu0 0
        %1301 = vmatpush2.bf16.msra.mxu0 0
        %1302 = vmatprep.subr.bf16.mxu0 0
        %1303 = vmatpush2.bf16.msra.mxu0 0
        %1304 = vmatprep.subr.bf16.mxu0 0
        %1305 = vmatpush2.bf16.msra.mxu0 0
        %1306 = vmatprep.subr.bf16.mxu0 0
        %1307 = vmatpush2.bf16.msra.mxu0 0
        %1308 = vmatprep.mubr.bf16.mxu0 0
        %1309 = vmatmul.mubr.bf16.gmra.mxu0 %v1271
        %v1310 = vpop.f32.mrf.mxu0
        %v1311 = vadd.f32 0.0, %v1310
        %v1312 = vpop.f32.mrf.mxu0
        %v1313 = vpop.f32.mrf.mxu0
        %v1314 = vpop.f32.mrf.mxu0
        %1315 = vdwg.mxu0
        %v1316 = vadd.f32 %v1156, %v1311
        %v1317 = vadd.f32 %v559, %v1316
        %v1318 = vld [vmem:[%s7] sm:$0x1]
        %v1320 = vlaneseq
        %v1321 = vshrl.u32 %v1320, 7
        %v1322 = vsub.s32 0, %v1321
        %v1323 = vrot.slane %v1318, %v1322
        %v1325 = vadd.f32 %v1317, %v1323
        %v1326 = vld [vmem:[%s8] sm:$0x1]
        %v1327 = vld [vmem:[%s9] sm:$0x1]
        %v1328 = vsel %vm577, %v1325, 0.0
        %1329 = vadd.xlane.f32.xlu0 %v1328
        %v1330 = vpop.xlane.xlu0 %1329
        %v1331 = vmul.f32 %v1330, %v581
        %v1332 = vsub.f32 %v1325, %v1331
        %v1333 = vmul.f32 %v1332, %v1332
        %v1334 = vsel %vm577, %v1333, 0.0
        %1335 = vadd.xlane.f32.xlu0 %v1334
        %v1336 = vpop.xlane.xlu0 %1335
        %v1337 = vmul.f32 %v1336, %v581
        %v1338 = vadd.f32 %v1337, 1e-05
        %v1339 = vrsqrt.pop %v1338
        %v1340 = vmul.f32 %v1332, %v1339
        %v1342 = vlaneseq
        %v1343 = vshrl.u32 %v1342, 7
        %v1344 = vsub.s32 0, %v1343
        %v1345 = vrot.slane %v1326, %v1344
        %v1347 = vmul.f32 %v1340, %v1345
        %v1349 = vlaneseq
        %v1350 = vshrl.u32 %v1349, 7
        %v1351 = vsub.s32 0, %v1350
        %v1352 = vrot.slane %v1327, %v1351
        %v1354 = vadd.f32 %v1347, %v1352
        %v1355 = vpack.c.bf16 %v1354, %v1354
        %v1356 = vld [vmem:[%s10] sm:$0xf]
        %v1357 = vld [vmem:[%s10 + $0x4] sm:$0xf]
        %v1358 = vld [vmem:[%s10 + $0x8] sm:$0xf]
        %v1359 = vld [vmem:[%s10 + $0xc] sm:$0xf]
        %v1360 = vld [vmem:[%s11] sm:$0x1]
        %v1362 = vlaneseq
        %v1363 = vshrl.u32 %v1362, 7
        %v1364 = vsub.s32 0, %v1363
        %v1365 = vrot.slane %v1360, %v1364
        %v1371 = vunpack.c.l.b16 %v1356
        %v1372 = vunpack.c.l.b16 %v1357
        %v1373 = vunpack.c.l.b16 %v1358
        %v1374 = vunpack.c.l.b16 %v1359
        %v1375 = vpack.c.b16 %v1372, %v1371
        %v1376 = vpack.c.b16 %v1374, %v1373
        %v1380 = vsel %vm577, %v1355, 0
        %1382 = vmatprep.subr.bf16.mxu0 0
        %1383 = vmatpush1.bf16.msra.mxu0 0
        %1384 = vmatprep.subr.bf16.mxu0 0
        %1385 = vmatpush1.bf16.msra.mxu0 0
        %1386 = vmatprep.subr.bf16.mxu0 0
        %1387 = vmatpush1.bf16.msra.mxu0 0
        %1388 = vmatprep.subr.bf16.mxu0 0
        %1389 = vmatpush1.bf16.msra.mxu0 0
        %1390 = vmatprep.subr.bf16.mxu0 0
        %1391 = vmatpush1.bf16.msra.mxu0 0
        %1392 = vmatprep.subr.bf16.mxu0 0
        %1393 = vmatpush1.bf16.msra.mxu0 0
        %1394 = vmatprep.subr.bf16.mxu0 0
        %1395 = vmatpush1.bf16.msra.mxu0 %v1376
        %1396 = vmatprep.subr.bf16.mxu0 0
        %1397 = vmatpush1.bf16.msra.mxu0 %v1375
        %1398 = vmatprep.subr.bf16.mxu0 0
        %1399 = vmatpush2.bf16.msra.mxu0 0
        %1400 = vmatprep.subr.bf16.mxu0 0
        %1401 = vmatpush2.bf16.msra.mxu0 0
        %1402 = vmatprep.subr.bf16.mxu0 0
        %1403 = vmatpush2.bf16.msra.mxu0 0
        %1404 = vmatprep.subr.bf16.mxu0 0
        %1405 = vmatpush2.bf16.msra.mxu0 0
        %1406 = vmatprep.subr.bf16.mxu0 0
        %1407 = vmatpush2.bf16.msra.mxu0 0
        %1408 = vmatprep.subr.bf16.mxu0 0
        %1409 = vmatpush2.bf16.msra.mxu0 0
        %1410 = vmatprep.subr.bf16.mxu0 0
        %1411 = vmatpush2.bf16.msra.mxu0 0
        %1412 = vmatprep.subr.bf16.mxu0 0
        %1413 = vmatpush2.bf16.msra.mxu0 0
        %1414 = vmatprep.mubr.bf16.mxu0 0
        %1415 = vmatmul.mubr.bf16.gmra.mxu0 %v1380
        %v1416 = vpop.f32.mrf.mxu0
        %v1417 = vadd.f32 %v1365, %v1416
        %v1418 = vpop.f32.mrf.mxu0
        %v1419 = vpop.f32.mrf.mxu0
        %v1420 = vpop.f32.mrf.mxu0
        %1421 = vdwg.mxu0
        %v1422 = vmul.f32 %v1417, 0.5
        %v1423 = vmul.f32 %v1417, 0.044715
        %v1424 = vmul.f32 %v1423, %v1417
        %v1425 = vmul.f32 %v1424, %v1417
        %v1426 = vadd.f32 %v1417, %v1425
        %v1427 = vmul.f32 %v1426, 0.7978846
        %v1428 = vtanh.pop %v1427
        %v1429 = vadd.f32 %v1428, 1.0
        %v1430 = vmul.f32 %v1422, %v1429
        %v1431 = vpack.c.bf16 %v1430, %v1430
        %v1432 = vld [vmem:[%s12] sm:$0xf]
        %v1433 = vld [vmem:[%s12 + $0x4] sm:$0xf]
        %v1434 = vld [vmem:[%s12 + $0x8] sm:$0xf]
        %v1435 = vld [vmem:[%s12 + $0xc] sm:$0xf]
        %v1436 = vld [vmem:[%s12 + $0x10] sm:$0xf]
        %v1437 = vld [vmem:[%s12 + $0x14] sm:$0xf]
        %v1438 = vld [vmem:[%s12 + $0x18] sm:$0xf]
        %v1439 = vld [vmem:[%s12 + $0x1c] sm:$0xf]
        %v1440 = vld [vmem:[%s12 + $0x20] sm:$0xf]
        %v1441 = vld [vmem:[%s12 + $0x24] sm:$0xf]
        %v1442 = vld [vmem:[%s12 + $0x28] sm:$0xf]
        %v1443 = vld [vmem:[%s12 + $0x2c] sm:$0xf]
        %v1444 = vld [vmem:[%s12 + $0x30] sm:$0xf]
        %v1445 = vld [vmem:[%s12 + $0x34] sm:$0xf]
        %v1446 = vld [vmem:[%s12 + $0x38] sm:$0xf]
        %v1447 = vld [vmem:[%s12 + $0x3c] sm:$0xf]
        %v1464 = vunpack.c.l.b16 %v1432
        %v1465 = vunpack.c.l.b16 %v1433
        %v1466 = vunpack.c.l.b16 %v1434
        %v1467 = vunpack.c.l.b16 %v1435
        %v1468 = vunpack.c.l.b16 %v1436
        %v1469 = vunpack.c.l.b16 %v1437
        %v1470 = vunpack.c.l.b16 %v1438
        %v1471 = vunpack.c.l.b16 %v1439
        %v1472 = vunpack.c.l.b16 %v1440
        %v1473 = vunpack.c.l.b16 %v1441
        %v1474 = vunpack.c.l.b16 %v1442
        %v1475 = vunpack.c.l.b16 %v1443
        %v1476 = vunpack.c.l.b16 %v1444
        %v1477 = vunpack.c.l.b16 %v1445
        %v1478 = vunpack.c.l.b16 %v1446
        %v1479 = vunpack.c.l.b16 %v1447
        %v1480 = vpack.c.b16 %v1465, %v1464
        %v1481 = vpack.c.b16 %v1467, %v1466
        %v1482 = vpack.c.b16 %v1469, %v1468
        %v1483 = vpack.c.b16 %v1471, %v1470
        %v1484 = vpack.c.b16 %v1473, %v1472
        %v1485 = vpack.c.b16 %v1475, %v1474
        %v1486 = vpack.c.b16 %v1477, %v1476
        %v1487 = vpack.c.b16 %v1479, %v1478
        %1496 = vmatprep.subr.bf16.mxu0 0
        %1497 = vmatpush1.bf16.msra.mxu0 %v1487
        %1498 = vmatprep.subr.bf16.mxu0 0
        %1499 = vmatpush1.bf16.msra.mxu0 %v1486
        %1500 = vmatprep.subr.bf16.mxu0 0
        %1501 = vmatpush1.bf16.msra.mxu0 %v1485
        %1502 = vmatprep.subr.bf16.mxu0 0
        %1503 = vmatpush1.bf16.msra.mxu0 %v1484
        %1504 = vmatprep.subr.bf16.mxu0 0
        %1505 = vmatpush1.bf16.msra.mxu0 %v1483
        %1506 = vmatprep.subr.bf16.mxu0 0
        %1507 = vmatpush1.bf16.msra.mxu0 %v1482
        %1508 = vmatprep.subr.bf16.mxu0 0
        %1509 = vmatpush1.bf16.msra.mxu0 %v1481
        %1510 = vmatprep.subr.bf16.mxu0 0
        %1511 = vmatpush1.bf16.msra.mxu0 %v1480
        %1512 = vmatprep.subr.bf16.mxu0 0
        %1513 = vmatpush2.bf16.msra.mxu0 0
        %1514 = vmatprep.subr.bf16.mxu0 0
        %1515 = vmatpush2.bf16.msra.mxu0 0
        %1516 = vmatprep.subr.bf16.mxu0 0
        %1517 = vmatpush2.bf16.msra.mxu0 0
        %1518 = vmatprep.subr.bf16.mxu0 0
        %1519 = vmatpush2.bf16.msra.mxu0 0
        %1520 = vmatprep.subr.bf16.mxu0 0
        %1521 = vmatpush2.bf16.msra.mxu0 0
        %1522 = vmatprep.subr.bf16.mxu0 0
        %1523 = vmatpush2.bf16.msra.mxu0 0
        %1524 = vmatprep.subr.bf16.mxu0 0
        %1525 = vmatpush2.bf16.msra.mxu0 0
        %1526 = vmatprep.subr.bf16.mxu0 0
        %1527 = vmatpush2.bf16.msra.mxu0 0
        %1528 = vmatprep.mubr.bf16.mxu0 0
        %1529 = vmatmul.mubr.bf16.gmra.mxu0 %v1431
        %v1530 = vpop.f32.mrf.mxu0
        %v1531 = vadd.f32 0.0, %v1530
        %v1532 = vpop.f32.mrf.mxu0
        %v1533 = vpop.f32.mrf.mxu0
        %v1534 = vpop.f32.mrf.mxu0
        %1535 = vdwg.mxu0
        %v1536 = vadd.f32 %v1325, %v1531
        %v1537 = vld [vmem:[%s13] sm:$0x1]
        %v1539 = vlaneseq
        %v1540 = vshrl.u32 %v1539, 7
        %v1541 = vsub.s32 0, %v1540
        %v1542 = vrot.slane %v1537, %v1541
        %v1544 = vadd.f32 %v1536, %v1542
        %s1545 = scalar_lea.vmem %s2, 1
        %v1546 = vld [vmem:[%s1545] sm:$0x1]
        %s1547 = scalar_lea.vmem %s3, 1
        %v1548 = vld [vmem:[%s1547] sm:$0x1]
        %v1549 = vsel %vm577, %v1544, 0.0
        %1550 = vadd.xlane.f32.xlu0 %v1549
        %v1551 = vpop.xlane.xlu0 %1550
        %v1552 = vmul.f32 %v1551, %v581
        %v1553 = vsub.f32 %v1544, %v1552
        %v1554 = vmul.f32 %v1553, %v1553
        %v1555 = vsel %vm577, %v1554, 0.0
        %1556 = vadd.xlane.f32.xlu0 %v1555
        %v1557 = vpop.xlane.xlu0 %1556
        %v1558 = vmul.f32 %v1557, %v581
        %v1559 = vadd.f32 %v1558, 1e-05
        %v1560 = vrsqrt.pop %v1559
        %v1561 = vmul.f32 %v1553, %v1560
        %v1563 = vlaneseq
        %v1564 = vshrl.u32 %v1563, 7
        %v1565 = vsub.s32 0, %v1564
        %v1566 = vrot.slane %v1546, %v1565
        %v1568 = vmul.f32 %v1561, %v1566
        %v1570 = vlaneseq
        %v1571 = vshrl.u32 %v1570, 7
        %v1572 = vsub.s32 0, %v1571
        %v1573 = vrot.slane %v1548, %v1572
        %v1575 = vadd.f32 %v1568, %v1573
        %v1576 = vpack.c.bf16 %v1575, %v1575
        %s1577 = scalar_lea.vmem %s4, 16
        %v1578 = vld [vmem:[%s1577] sm:$0xf]
        %v1579 = vld [vmem:[%s1577 + $0x4] sm:$0xf]
        %v1580 = vld [vmem:[%s1577 + $0x8] sm:$0xf]
        %v1581 = vld [vmem:[%s1577 + $0xc] sm:$0xf]
        %s1582 = scalar_lea.vmem %s5, 1
        %v1583 = vld [vmem:[%s1582] sm:$0x1]
        %v1585 = vlaneseq
        %v1586 = vshrl.u32 %v1585, 7
        %v1587 = vsub.s32 0, %v1586
        %v1588 = vrot.slane %v1583, %v1587
        %v1594 = vunpack.c.l.b16 %v1578
        %v1595 = vunpack.c.l.b16 %v1579
        %v1596 = vunpack.c.l.b16 %v1580
        %v1597 = vunpack.c.l.b16 %v1581
        %v1598 = vpack.c.b16 %v1595, %v1594
        %v1599 = vpack.c.b16 %v1597, %v1596
        %v1603 = vsel %vm577, %v1576, 0
        %1605 = vmatprep.subr.bf16.mxu0 0
        %1606 = vmatpush1.bf16.msra.mxu0 0
        %1607 = vmatprep.subr.bf16.mxu0 0
        %1608 = vmatpush1.bf16.msra.mxu0 0
        %1609 = vmatprep.subr.bf16.mxu0 0
        %1610 = vmatpush1.bf16.msra.mxu0 0
        %1611 = vmatprep.subr.bf16.mxu0 0
        %1612 = vmatpush1.bf16.msra.mxu0 0
        %1613 = vmatprep.subr.bf16.mxu0 0
        %1614 = vmatpush1.bf16.msra.mxu0 0
        %1615 = vmatprep.subr.bf16.mxu0 0
        %1616 = vmatpush1.bf16.msra.mxu0 0
        %1617 = vmatprep.subr.bf16.mxu0 0
        %1618 = vmatpush1.bf16.msra.mxu0 %v1599
        %1619 = vmatprep.subr.bf16.mxu0 0
        %1620 = vmatpush1.bf16.msra.mxu0 %v1598
        %1621 = vmatprep.subr.bf16.mxu0 0
        %1622 = vmatpush2.bf16.msra.mxu0 0
        %1623 = vmatprep.subr.bf16.mxu0 0
        %1624 = vmatpush2.bf16.msra.mxu0 0
        %1625 = vmatprep.subr.bf16.mxu0 0
        %1626 = vmatpush2.bf16.msra.mxu0 0
        %1627 = vmatprep.subr.bf16.mxu0 0
        %1628 = vmatpush2.bf16.msra.mxu0 0
        %1629 = vmatprep.subr.bf16.mxu0 0
        %1630 = vmatpush2.bf16.msra.mxu0 0
        %1631 = vmatprep.subr.bf16.mxu0 0
        %1632 = vmatpush2.bf16.msra.mxu0 0
        %1633 = vmatprep.subr.bf16.mxu0 0
        %1634 = vmatpush2.bf16.msra.mxu0 0
        %1635 = vmatprep.subr.bf16.mxu0 0
        %1636 = vmatpush2.bf16.msra.mxu0 0
        %1637 = vmatprep.mubr.bf16.mxu0 0
        %1638 = vmatmul.mubr.bf16.gmra.mxu0 %v1603
        %v1639 = vpop.f32.mrf.mxu0
        %v1640 = vadd.f32 %v1588, %v1639
        %v1641 = vpop.f32.mrf.mxu0
        %v1642 = vpop.f32.mrf.mxu0
        %v1643 = vpop.f32.mrf.mxu0
        %1644 = vdwg.mxu0
        %s1645 = scalar_lea.vmem %s6, 16
        %v1646 = vld [vmem:[%s1645] sm:$0xf]
        %v1647 = vld [vmem:[%s1645 + $0x4] sm:$0xf]
        %v1648 = vld [vmem:[%s1645 + $0x8] sm:$0xf]
        %v1649 = vld [vmem:[%s1645 + $0xc] sm:$0xf]
        %v1650 = vpack.c.bf16 %v1640, %v1640
        %1652 = vrot.lane.b32.xlu0 %v1650, 96
        %v1653 = vpop.permute.xlu0 %1652
        %v1655 = vsel %vm681, %v1650, 0
        %v1658 = vsel %vm681, %v1653, 0
        %1660 = vmatprep.subr.bf16.mxu0 0
        %1661 = vmatpush1.bf16.xpose.msra.mxu0 0
        %1662 = vmatprep.subr.bf16.mxu0 0
        %1663 = vmatpush1.bf16.xpose.msra.mxu0 0
        %1664 = vmatprep.subr.bf16.mxu0 0
        %1665 = vmatpush1.bf16.xpose.msra.mxu0 0
        %1666 = vmatprep.subr.bf16.mxu0 0
        %1667 = vmatpush1.bf16.xpose.msra.mxu0 0
        %1668 = vmatprep.subr.bf16.mxu0 0
        %1669 = vmatpush1.bf16.xpose.msra.mxu0 0
        %1670 = vmatprep.subr.bf16.mxu0 0
        %1671 = vmatpush1.bf16.xpose.msra.mxu0 0
        %1672 = vmatprep.subr.bf16.mxu0 0
        %1673 = vmatpush1.bf16.xpose.msra.mxu0 0
        %1674 = vmatprep.subr.bf16.mxu0 0
        %1675 = vmatpush1.bf16.xpose.msra.mxu0 %v1658
        %1676 = vmatprep.subr.bf16.mxu0 0
        %1677 = vmatpush2.bf16.xpose.msra.mxu0 0
        %1678 = vmatprep.subr.bf16.mxu0 0
        %1679 = vmatpush2.bf16.xpose.msra.mxu0 0
        %1680 = vmatprep.subr.bf16.mxu0 0
        %1681 = vmatpush2.bf16.xpose.msra.mxu0 0
        %1682 = vmatprep.subr.bf16.mxu0 0
        %1683 = vmatpush2.bf16.xpose.msra.mxu0 0
        %1684 = vmatprep.subr.bf16.mxu0 0
        %1685 = vmatpush2.bf16.xpose.msra.mxu0 0
        %1686 = vmatprep.subr.bf16.mxu0 0
        %1687 = vmatpush2.bf16.xpose.msra.mxu0 0
        %1688 = vmatprep.subr.bf16.mxu0 0
        %1689 = vmatpush2.bf16.xpose.msra.mxu0 0
        %1690 = vmatprep.subr.bf16.mxu0 0
        %1691 = vmatpush2.bf16.xpose.msra.mxu0 0
        %1692 = vmatprep.mubr.bf16.mxu0 0
        %1693 = vmatmul.mubr.bf16.gmra.mxu0 %v1655
        %v1694 = vpop.f32.mrf.mxu0
        %v1695 = vadd.f32 0.0, %v1694
        %v1696 = vpop.f32.mrf.mxu0
        %v1697 = vpop.f32.mrf.mxu0
        %v1698 = vpop.f32.mrf.mxu0
        %1699 = vdwg.mxu0
        %v1700 = vmul.f32 %v1695, 0.35355338
        %v1701 = vadd.f32 %v1700, %v574
        %v1702 = vsel %vm681, %v1701, -inf
        %1703 = vmax.xlane.f32.xlu0 %v1702
        %v1704 = vpop.xlane.xlu0 %1703
        %v1705 = vsub.f32 %v1701, %v1704
        %v1706 = vmul.f32 %v1705, 1.442695
        %v1707 = vpow.pop %v1706
        %v1708 = vsel %vm681, %v1707, 0.0
        %1709 = vadd.xlane.f32.xlu0 %v1708
        %v1710 = vpop.xlane.xlu0 %1709
        %v1711 = vrcp.pop %v1710
        %v1712 = vmul.f32 %v1707, %v1711
        %v1713 = vpack.c.bf16 %v1712, %v1712
        %1714 = vrot.lane.b32.xlu0 %v1650, 64
        %v1715 = vpop.permute.xlu0 %1714
        %v1717 = vsel %vm681, %v1713, 0
        %v1720 = vsel %vm747, %v1715, 0
        %1722 = vmatprep.subr.bf16.mxu0 0
        %1723 = vmatpush1.bf16.msra.mxu0 0
        %1724 = vmatprep.subr.bf16.mxu0 0
        %1725 = vmatpush1.bf16.msra.mxu0 0
        %1726 = vmatprep.subr.bf16.mxu0 0
        %1727 = vmatpush1.bf16.msra.mxu0 0
        %1728 = vmatprep.subr.bf16.mxu0 0
        %1729 = vmatpush1.bf16.msra.mxu0 0
        %1730 = vmatprep.subr.bf16.mxu0 0
        %1731 = vmatpush1.bf16.msra.mxu0 0
        %1732 = vmatprep.subr.bf16.mxu0 0
        %1733 = vmatpush1.bf16.msra.mxu0 0
        %1734 = vmatprep.subr.bf16.mxu0 0
        %1735 = vmatpush1.bf16.msra.mxu0 0
        %1736 = vmatprep.subr.bf16.mxu0 0
        %1737 = vmatpush1.bf16.msra.mxu0 %v1720
        %1738 = vmatprep.subr.bf16.mxu0 0
        %1739 = vmatpush2.bf16.msra.mxu0 0
        %1740 = vmatprep.subr.bf16.mxu0 0
        %1741 = vmatpush2.bf16.msra.mxu0 0
        %1742 = vmatprep.subr.bf16.mxu0 0
        %1743 = vmatpush2.bf16.msra.mxu0 0
        %1744 = vmatprep.subr.bf16.mxu0 0
        %1745 = vmatpush2.bf16.msra.mxu0 0
        %1746 = vmatprep.subr.bf16.mxu0 0
        %1747 = vmatpush2.bf16.msra.mxu0 0
        %1748 = vmatprep.subr.bf16.mxu0 0
        %1749 = vmatpush2.bf16.msra.mxu0 0
        %1750 = vmatprep.subr.bf16.mxu0 0
        %1751 = vmatpush2.bf16.msra.mxu0 0
        %1752 = vmatprep.subr.bf16.mxu0 0
        %1753 = vmatpush2.bf16.msra.mxu0 0
        %1754 = vmatprep.mubr.bf16.mxu0 0
        %1755 = vmatmul.mubr.bf16.gmra.mxu0 %v1717
        %v1756 = vpop.f32.mrf.mxu0
        %v1757 = vadd.f32 0.0, %v1756
        %v1758 = vpop.f32.mrf.mxu0
        %v1759 = vpop.f32.mrf.mxu0
        %v1760 = vpop.f32.mrf.mxu0
        %1761 = vdwg.mxu0
        %v1762 = vpack.c.bf16 %v1757, %v1757
        %1763 = vrot.lane.b32.xlu0 %v1650, 120
        %v1764 = vpop.permute.xlu0 %1763
        %1765 = vrot.lane.b32.xlu0 %v1650, 88
        %v1766 = vpop.permute.xlu0 %1765
        %v1768 = vsel %vm681, %v1764, 0
        %v1771 = vsel %vm681, %v1766, 0
        %1773 = vmatprep.subr.bf16.mxu0 0
        %1774 = vmatpush1.bf16.xpose.msra.mxu0 0
        %1775 = vmatprep.subr.bf16.mxu0 0
        %1776 = vmatpush1.bf16.xpose.msra.mxu0 0
        %1777 = vmatprep.subr.bf16.mxu0 0
        %1778 = vmatpush1.bf16.xpose.msra.mxu0 0
        %1779 = vmatprep.subr.bf16.mxu0 0
        %1780 = vmatpush1.bf16.xpose.msra.mxu0 0
        %1781 = vmatprep.subr.bf16.mxu0 0
        %1782 = vmatpush1.bf16.xpose.msra.mxu0 0
        %1783 = vmatprep.subr.bf16.mxu0 0
        %1784 = vmatpush1.bf16.xpose.msra.mxu0 0
        %1785 = vmatprep.subr.bf16.mxu0 0
        %1786 = vmatpush1.bf16.xpose.msra.mxu0 0
        %1787 = vmatprep.subr.bf16.mxu0 0
        %1788 = vmatpush1.bf16.xpose.msra.mxu0 %v1771
        %1789 = vmatprep.subr.bf16.mxu0 0
        %1790 = vmatpush2.bf16.xpose.msra.mxu0 0
        %1791 = vmatprep.subr.bf16.mxu0 0
        %1792 = vmatpush2.bf16.xpose.msra.mxu0 0
        %1793 = vmatprep.subr.bf16.mxu0 0
        %1794 = vmatpush2.bf16.xpose.msra.mxu0 0
        %1795 = vmatprep.subr.bf16.mxu0 0
        %1796 = vmatpush2.bf16.xpose.msra.mxu0 0
        %1797 = vmatprep.subr.bf16.mxu0 0
        %1798 = vmatpush2.bf16.xpose.msra.mxu0 0
        %1799 = vmatprep.subr.bf16.mxu0 0
        %1800 = vmatpush2.bf16.xpose.msra.mxu0 0
        %1801 = vmatprep.subr.bf16.mxu0 0
        %1802 = vmatpush2.bf16.xpose.msra.mxu0 0
        %1803 = vmatprep.subr.bf16.mxu0 0
        %1804 = vmatpush2.bf16.xpose.msra.mxu0 0
        %1805 = vmatprep.mubr.bf16.mxu0 0
        %1806 = vmatmul.mubr.bf16.gmra.mxu0 %v1768
        %v1807 = vpop.f32.mrf.mxu0
        %v1808 = vadd.f32 0.0, %v1807
        %v1809 = vpop.f32.mrf.mxu0
        %v1810 = vpop.f32.mrf.mxu0
        %v1811 = vpop.f32.mrf.mxu0
        %1812 = vdwg.mxu0
        %v1813 = vmul.f32 %v1808, 0.35355338
        %v1814 = vadd.f32 %v1813, %v574
        %v1815 = vsel %vm681, %v1814, -inf
        %1816 = vmax.xlane.f32.xlu0 %v1815
        %v1817 = vpop.xlane.xlu0 %1816
        %v1818 = vsub.f32 %v1814, %v1817
        %v1819 = vmul.f32 %v1818, 1.442695
        %v1820 = vpow.pop %v1819
        %v1821 = vsel %vm681, %v1820, 0.0
        %1822 = vadd.xlane.f32.xlu0 %v1821
        %v1823 = vpop.xlane.xlu0 %1822
        %v1824 = vrcp.pop %v1823
        %v1825 = vmul.f32 %v1820, %v1824
        %v1826 = vpack.c.bf16 %v1825, %v1825
        %1827 = vrot.lane.b32.xlu0 %v1650, 56
        %v1828 = vpop.permute.xlu0 %1827
        %v1830 = vsel %vm681, %v1826, 0
        %v1833 = vsel %vm747, %v1828, 0
        %1835 = vmatprep.subr.bf16.mxu0 0
        %1836 = vmatpush1.bf16.msra.mxu0 0
        %1837 = vmatprep.subr.bf16.mxu0 0
        %1838 = vmatpush1.bf16.msra.mxu0 0
        %1839 = vmatprep.subr.bf16.mxu0 0
        %1840 = vmatpush1.bf16.msra.mxu0 0
        %1841 = vmatprep.subr.bf16.mxu0 0
        %1842 = vmatpush1.bf16.msra.mxu0 0
        %1843 = vmatprep.subr.bf16.mxu0 0
        %1844 = vmatpush1.bf16.msra.mxu0 0
        %1845 = vmatprep.subr.bf16.mxu0 0
        %1846 = vmatpush1.bf16.msra.mxu0 0
        %1847 = vmatprep.subr.bf16.mxu0 0
        %1848 = vmatpush1.bf16.msra.mxu0 0
        %1849 = vmatprep.subr.bf16.mxu0 0
        %1850 = vmatpush1.bf16.msra.mxu0 %v1833
        %1851 = vmatprep.subr.bf16.mxu0 0
        %1852 = vmatpush2.bf16.msra.mxu0 0
        %1853 = vmatprep.subr.bf16.mxu0 0
        %1854 = vmatpush2.bf16.msra.mxu0 0
        %1855 = vmatprep.subr.bf16.mxu0 0
        %1856 = vmatpush2.bf16.msra.mxu0 0
        %1857 = vmatprep.subr.bf16.mxu0 0
        %1858 = vmatpush2.bf16.msra.mxu0 0
        %1859 = vmatprep.subr.bf16.mxu0 0
        %1860 = vmatpush2.bf16.msra.mxu0 0
        %1861 = vmatprep.subr.bf16.mxu0 0
        %1862 = vmatpush2.bf16.msra.mxu0 0
        %1863 = vmatprep.subr.bf16.mxu0 0
        %1864 = vmatpush2.bf16.msra.mxu0 0
        %1865 = vmatprep.subr.bf16.mxu0 0
        %1866 = vmatpush2.bf16.msra.mxu0 0
        %1867 = vmatprep.mubr.bf16.mxu0 0
        %1868 = vmatmul.mubr.bf16.gmra.mxu0 %v1830
        %v1869 = vpop.f32.mrf.mxu0
        %v1870 = vadd.f32 0.0, %v1869
        %v1871 = vpop.f32.mrf.mxu0
        %v1872 = vpop.f32.mrf.mxu0
        %v1873 = vpop.f32.mrf.mxu0
        %1874 = vdwg.mxu0
        %v1875 = vpack.c.bf16 %v1870, %v1870
        %v1877 = vsel %vm681, %v1875, 0
        %v1880 = vsel %vm747, %v1647, 0
        %1882 = vmatprep.subr.bf16.mxu0 0
        %1883 = vmatpush1.bf16.msra.mxu0 0
        %1884 = vmatprep.subr.bf16.mxu0 0
        %1885 = vmatpush1.bf16.msra.mxu0 0
        %1886 = vmatprep.subr.bf16.mxu0 0
        %1887 = vmatpush1.bf16.msra.mxu0 0
        %1888 = vmatprep.subr.bf16.mxu0 0
        %1889 = vmatpush1.bf16.msra.mxu0 0
        %1890 = vmatprep.subr.bf16.mxu0 0
        %1891 = vmatpush1.bf16.msra.mxu0 0
        %1892 = vmatprep.subr.bf16.mxu0 0
        %1893 = vmatpush1.bf16.msra.mxu0 0
        %1894 = vmatprep.subr.bf16.mxu0 0
        %1895 = vmatpush1.bf16.msra.mxu0 0
        %1896 = vmatprep.subr.bf16.mxu0 0
        %1897 = vmatpush1.bf16.msra.mxu0 %v1880
        %1898 = vmatprep.subr.bf16.mxu0 0
        %1899 = vmatpush2.bf16.msra.mxu0 0
        %1900 = vmatprep.subr.bf16.mxu0 0
        %1901 = vmatpush2.bf16.msra.mxu0 0
        %1902 = vmatprep.subr.bf16.mxu0 0
        %1903 = vmatpush2.bf16.msra.mxu0 0
        %1904 = vmatprep.subr.bf16.mxu0 0
        %1905 = vmatpush2.bf16.msra.mxu0 0
        %1906 = vmatprep.subr.bf16.mxu0 0
        %1907 = vmatpush2.bf16.msra.mxu0 0
        %1908 = vmatprep.subr.bf16.mxu0 0
        %1909 = vmatpush2.bf16.msra.mxu0 0
        %1910 = vmatprep.subr.bf16.mxu0 0
        %1911 = vmatpush2.bf16.msra.mxu0 0
        %1912 = vmatprep.subr.bf16.mxu0 0
        %1913 = vmatpush2.bf16.msra.mxu0 0
        %1914 = vmatprep.mubr.bf16.mxu0 0
        %1915 = vmatmul.mubr.bf16.gmra.mxu0 %v1877
        %v1916 = vpop.f32.mrf.mxu0
        %v1917 = vadd.f32 0.0, %v1916
        %v1918 = vpop.f32.mrf.mxu0
        %v1919 = vpop.f32.mrf.mxu0
        %v1920 = vpop.f32.mrf.mxu0
        %1921 = vdwg.mxu0
        %v1923 = vsel %vm681, %v1762, 0
        %v1926 = vsel %vm747, %v1646, 0
        %1928 = vmatprep.subr.bf16.mxu0 0
        %1929 = vmatpush1.bf16.msra.mxu0 0
        %1930 = vmatprep.subr.bf16.mxu0 0
        %1931 = vmatpush1.bf16.msra.mxu0 0
        %1932 = vmatprep.subr.bf16.mxu0 0
        %1933 = vmatpush1.bf16.msra.mxu0 0
        %1934 = vmatprep.subr.bf16.mxu0 0
        %1935 = vmatpush1.bf16.msra.mxu0 0
        %1936 = vmatprep.subr.bf16.mxu0 0
        %1937 = vmatpush1.bf16.msra.mxu0 0
        %1938 = vmatprep.subr.bf16.mxu0 0
        %1939 = vmatpush1.bf16.msra.mxu0 0
        %1940 = vmatprep.subr.bf16.mxu0 0
        %1941 = vmatpush1.bf16.msra.mxu0 0
        %1942 = vmatprep.subr.bf16.mxu0 0
        %1943 = vmatpush1.bf16.msra.mxu0 %v1926
        %1944 = vmatprep.subr.bf16.mxu0 0
        %1945 = vmatpush2.bf16.msra.mxu0 0
        %1946 = vmatprep.subr.bf16.mxu0 0
        %1947 = vmatpush2.bf16.msra.mxu0 0
        %1948 = vmatprep.subr.bf16.mxu0 0
        %1949 = vmatpush2.bf16.msra.mxu0 0
        %1950 = vmatprep.subr.bf16.mxu0 0
        %1951 = vmatpush2.bf16.msra.mxu0 0
        %1952 = vmatprep.subr.bf16.mxu0 0
        %1953 = vmatpush2.bf16.msra.mxu0 0
        %1954 = vmatprep.subr.bf16.mxu0 0
        %1955 = vmatpush2.bf16.msra.mxu0 0
        %1956 = vmatprep.subr.bf16.mxu0 0
        %1957 = vmatpush2.bf16.msra.mxu0 0
        %1958 = vmatprep.subr.bf16.mxu0 0
        %1959 = vmatpush2.bf16.msra.mxu0 0
        %1960 = vmatprep.mubr.bf16.mxu0 0
        %1961 = vmatmul.mubr.bf16.gmra.mxu0 %v1923
        %v1962 = vpop.f32.mrf.mxu0
        %v1963 = vadd.f32 %v1917, %v1962
        %v1964 = vpop.f32.mrf.mxu0
        %v1965 = vpop.f32.mrf.mxu0
        %v1966 = vpop.f32.mrf.mxu0
        %1967 = vdwg.mxu0
        %1968 = vrot.lane.b32.xlu0 %v1650, 112
        %v1969 = vpop.permute.xlu0 %1968
        %1970 = vrot.lane.b32.xlu0 %v1650, 80
        %v1971 = vpop.permute.xlu0 %1970
        %v1973 = vsel %vm681, %v1969, 0
        %v1976 = vsel %vm681, %v1971, 0
        %1978 = vmatprep.subr.bf16.mxu0 0
        %1979 = vmatpush1.bf16.xpose.msra.mxu0 0
        %1980 = vmatprep.subr.bf16.mxu0 0
        %1981 = vmatpush1.bf16.xpose.msra.mxu0 0
        %1982 = vmatprep.subr.bf16.mxu0 0
        %1983 = vmatpush1.bf16.xpose.msra.mxu0 0
        %1984 = vmatprep.subr.bf16.mxu0 0
        %1985 = vmatpush1.bf16.xpose.msra.mxu0 0
        %1986 = vmatprep.subr.bf16.mxu0 0
        %1987 = vmatpush1.bf16.xpose.msra.mxu0 0
        %1988 = vmatprep.subr.bf16.mxu0 0
        %1989 = vmatpush1.bf16.xpose.msra.mxu0 0
        %1990 = vmatprep.subr.bf16.mxu0 0
        %1991 = vmatpush1.bf16.xpose.msra.mxu0 0
        %1992 = vmatprep.subr.bf16.mxu0 0
        %1993 = vmatpush1.bf16.xpose.msra.mxu0 %v1976
        %1994 = vmatprep.subr.bf16.mxu0 0
        %1995 = vmatpush2.bf16.xpose.msra.mxu0 0
        %1996 = vmatprep.subr.bf16.mxu0 0
        %1997 = vmatpush2.bf16.xpose.msra.mxu0 0
        %1998 = vmatprep.subr.bf16.mxu0 0
        %1999 = vmatpush2.bf16.xpose.msra.mxu0 0
        %2000 = vmatprep.subr.bf16.mxu0 0
        %2001 = vmatpush2.bf16.xpose.msra.mxu0 0
        %2002 = vmatprep.subr.bf16.mxu0 0
        %2003 = vmatpush2.bf16.xpose.msra.mxu0 0
        %2004 = vmatprep.subr.bf16.mxu0 0
        %2005 = vmatpush2.bf16.xpose.msra.mxu0 0
        %2006 = vmatprep.subr.bf16.mxu0 0
        %2007 = vmatpush2.bf16.xpose.msra.mxu0 0
        %2008 = vmatprep.subr.bf16.mxu0 0
        %2009 = vmatpush2.bf16.xpose.msra.mxu0 0
        %2010 = vmatprep.mubr.bf16.mxu0 0
        %2011 = vmatmul.mubr.bf16.gmra.mxu0 %v1973
        %v2012 = vpop.f32.mrf.mxu0
        %v2013 = vadd.f32 0.0, %v2012
        %v2014 = vpop.f32.mrf.mxu0
        %v2015 = vpop.f32.mrf.mxu0
        %v2016 = vpop.f32.mrf.mxu0
        %2017 = vdwg.mxu0
        %v2018 = vmul.f32 %v2013, 0.35355338
        %v2019 = vadd.f32 %v2018, %v574
        %v2020 = vsel %vm681, %v2019, -inf
        %2021 = vmax.xlane.f32.xlu0 %v2020
        %v2022 = vpop.xlane.xlu0 %2021
        %v2023 = vsub.f32 %v2019, %v2022
        %v2024 = vmul.f32 %v2023, 1.442695
        %v2025 = vpow.pop %v2024
        %v2026 = vsel %vm681, %v2025, 0.0
        %2027 = vadd.xlane.f32.xlu0 %v2026
        %v2028 = vpop.xlane.xlu0 %2027
        %v2029 = vrcp.pop %v2028
        %v2030 = vmul.f32 %v2025, %v2029
        %v2031 = vpack.c.bf16 %v2030, %v2030
        %2032 = vrot.lane.b32.xlu0 %v1650, 48
        %v2033 = vpop.permute.xlu0 %2032
        %v2035 = vsel %vm681, %v2031, 0
        %v2038 = vsel %vm747, %v2033, 0
        %2040 = vmatprep.subr.bf16.mxu0 0
        %2041 = vmatpush1.bf16.msra.mxu0 0
        %2042 = vmatprep.subr.bf16.mxu0 0
        %2043 = vmatpush1.bf16.msra.mxu0 0
        %2044 = vmatprep.subr.bf16.mxu0 0
        %2045 = vmatpush1.bf16.msra.mxu0 0
        %2046 = vmatprep.subr.bf16.mxu0 0
        %2047 = vmatpush1.bf16.msra.mxu0 0
        %2048 = vmatprep.subr.bf16.mxu0 0
        %2049 = vmatpush1.bf16.msra.mxu0 0
        %2050 = vmatprep.subr.bf16.mxu0 0
        %2051 = vmatpush1.bf16.msra.mxu0 0
        %2052 = vmatprep.subr.bf16.mxu0 0
        %2053 = vmatpush1.bf16.msra.mxu0 0
        %2054 = vmatprep.subr.bf16.mxu0 0
        %2055 = vmatpush1.bf16.msra.mxu0 %v2038
        %2056 = vmatprep.subr.bf16.mxu0 0
        %2057 = vmatpush2.bf16.msra.mxu0 0
        %2058 = vmatprep.subr.bf16.mxu0 0
        %2059 = vmatpush2.bf16.msra.mxu0 0
        %2060 = vmatprep.subr.bf16.mxu0 0
        %2061 = vmatpush2.bf16.msra.mxu0 0
        %2062 = vmatprep.subr.bf16.mxu0 0
        %2063 = vmatpush2.bf16.msra.mxu0 0
        %2064 = vmatprep.subr.bf16.mxu0 0
        %2065 = vmatpush2.bf16.msra.mxu0 0
        %2066 = vmatprep.subr.bf16.mxu0 0
        %2067 = vmatpush2.bf16.msra.mxu0 0
        %2068 = vmatprep.subr.bf16.mxu0 0
        %2069 = vmatpush2.bf16.msra.mxu0 0
        %2070 = vmatprep.subr.bf16.mxu0 0
        %2071 = vmatpush2.bf16.msra.mxu0 0
        %2072 = vmatprep.mubr.bf16.mxu0 0
        %2073 = vmatmul.mubr.bf16.gmra.mxu0 %v2035
        %v2074 = vpop.f32.mrf.mxu0
        %v2075 = vadd.f32 0.0, %v2074
        %v2076 = vpop.f32.mrf.mxu0
        %v2077 = vpop.f32.mrf.mxu0
        %v2078 = vpop.f32.mrf.mxu0
        %2079 = vdwg.mxu0
        %v2080 = vpack.c.bf16 %v2075, %v2075
        %v2082 = vsel %vm681, %v2080, 0
        %v2085 = vsel %vm747, %v1648, 0
        %2087 = vmatprep.subr.bf16.mxu0 0
        %2088 = vmatpush1.bf16.msra.mxu0 0
        %2089 = vmatprep.subr.bf16.mxu0 0
        %2090 = vmatpush1.bf16.msra.mxu0 0
        %2091 = vmatprep.subr.bf16.mxu0 0
        %2092 = vmatpush1.bf16.msra.mxu0 0
        %2093 = vmatprep.subr.bf16.mxu0 0
        %2094 = vmatpush1.bf16.msra.mxu0 0
        %2095 = vmatprep.subr.bf16.mxu0 0
        %2096 = vmatpush1.bf16.msra.mxu0 0
        %2097 = vmatprep.subr.bf16.mxu0 0
        %2098 = vmatpush1.bf16.msra.mxu0 0
        %2099 = vmatprep.subr.bf16.mxu0 0
        %2100 = vmatpush1.bf16.msra.mxu0 0
        %2101 = vmatprep.subr.bf16.mxu0 0
        %2102 = vmatpush1.bf16.msra.mxu0 %v2085
        %2103 = vmatprep.subr.bf16.mxu0 0
        %2104 = vmatpush2.bf16.msra.mxu0 0
        %2105 = vmatprep.subr.bf16.mxu0 0
        %2106 = vmatpush2.bf16.msra.mxu0 0
        %2107 = vmatprep.subr.bf16.mxu0 0
        %2108 = vmatpush2.bf16.msra.mxu0 0
        %2109 = vmatprep.subr.bf16.mxu0 0
        %2110 = vmatpush2.bf16.msra.mxu0 0
        %2111 = vmatprep.subr.bf16.mxu0 0
        %2112 = vmatpush2.bf16.msra.mxu0 0
        %2113 = vmatprep.subr.bf16.mxu0 0
        %2114 = vmatpush2.bf16.msra.mxu0 0
        %2115 = vmatprep.subr.bf16.mxu0 0
        %2116 = vmatpush2.bf16.msra.mxu0 0
        %2117 = vmatprep.subr.bf16.mxu0 0
        %2118 = vmatpush2.bf16.msra.mxu0 0
        %2119 = vmatprep.mubr.bf16.mxu0 0
        %2120 = vmatmul.mubr.bf16.gmra.mxu0 %v2082
        %v2121 = vpop.f32.mrf.mxu0
        %v2122 = vadd.f32 0.0, %v2121
        %v2123 = vpop.f32.mrf.mxu0
        %v2124 = vpop.f32.mrf.mxu0
        %v2125 = vpop.f32.mrf.mxu0
        %2126 = vdwg.mxu0
        %v2127 = vadd.f32 %v1963, %v2122
        %2128 = vrot.lane.b32.xlu0 %v1650, 104
        %v2129 = vpop.permute.xlu0 %2128
        %2130 = vrot.lane.b32.xlu0 %v1650, 72
        %v2131 = vpop.permute.xlu0 %2130
        %v2133 = vsel %vm681, %v2129, 0
        %v2136 = vsel %vm681, %v2131, 0
        %2138 = vmatprep.subr.bf16.mxu0 0
        %2139 = vmatpush1.bf16.xpose.msra.mxu0 0
        %2140 = vmatprep.subr.bf16.mxu0 0
        %2141 = vmatpush1.bf16.xpose.msra.mxu0 0
        %2142 = vmatprep.subr.bf16.mxu0 0
        %2143 = vmatpush1.bf16.xpose.msra.mxu0 0
        %2144 = vmatprep.subr.bf16.mxu0 0
        %2145 = vmatpush1.bf16.xpose.msra.mxu0 0
        %2146 = vmatprep.subr.bf16.mxu0 0
        %2147 = vmatpush1.bf16.xpose.msra.mxu0 0
        %2148 = vmatprep.subr.bf16.mxu0 0
        %2149 = vmatpush1.bf16.xpose.msra.mxu0 0
        %2150 = vmatprep.subr.bf16.mxu0 0
        %2151 = vmatpush1.bf16.xpose.msra.mxu0 0
        %2152 = vmatprep.subr.bf16.mxu0 0
        %2153 = vmatpush1.bf16.xpose.msra.mxu0 %v2136
        %2154 = vmatprep.subr.bf16.mxu0 0
        %2155 = vmatpush2.bf16.xpose.msra.mxu0 0
        %2156 = vmatprep.subr.bf16.mxu0 0
        %2157 = vmatpush2.bf16.xpose.msra.mxu0 0
        %2158 = vmatprep.subr.bf16.mxu0 0
        %2159 = vmatpush2.bf16.xpose.msra.mxu0 0
        %2160 = vmatprep.subr.bf16.mxu0 0
        %2161 = vmatpush2.bf16.xpose.msra.mxu0 0
        %2162 = vmatprep.subr.bf16.mxu0 0
        %2163 = vmatpush2.bf16.xpose.msra.mxu0 0
        %2164 = vmatprep.subr.bf16.mxu0 0
        %2165 = vmatpush2.bf16.xpose.msra.mxu0 0
        %2166 = vmatprep.subr.bf16.mxu0 0
        %2167 = vmatpush2.bf16.xpose.msra.mxu0 0
        %2168 = vmatprep.subr.bf16.mxu0 0
        %2169 = vmatpush2.bf16.xpose.msra.mxu0 0
        %2170 = vmatprep.mubr.bf16.mxu0 0
        %2171 = vmatmul.mubr.bf16.gmra.mxu0 %v2133
        %v2172 = vpop.f32.mrf.mxu0
        %v2173 = vadd.f32 0.0, %v2172
        %v2174 = vpop.f32.mrf.mxu0
        %v2175 = vpop.f32.mrf.mxu0
        %v2176 = vpop.f32.mrf.mxu0
        %2177 = vdwg.mxu0
        %v2178 = vmul.f32 %v2173, 0.35355338
        %v2179 = vadd.f32 %v2178, %v574
        %v2180 = vsel %vm681, %v2179, -inf
        %2181 = vmax.xlane.f32.xlu0 %v2180
        %v2182 = vpop.xlane.xlu0 %2181
        %v2183 = vsub.f32 %v2179, %v2182
        %v2184 = vmul.f32 %v2183, 1.442695
        %v2185 = vpow.pop %v2184
        %v2186 = vsel %vm681, %v2185, 0.0
        %2187 = vadd.xlane.f32.xlu0 %v2186
        %v2188 = vpop.xlane.xlu0 %2187
        %v2189 = vrcp.pop %v2188
        %v2190 = vmul.f32 %v2185, %v2189
        %v2191 = vpack.c.bf16 %v2190, %v2190
        %2192 = vrot.lane.b32.xlu0 %v1650, 40
        %v2193 = vpop.permute.xlu0 %2192
        %v2195 = vsel %vm681, %v2191, 0
        %v2198 = vsel %vm747, %v2193, 0
        %2200 = vmatprep.subr.bf16.mxu0 0
        %2201 = vmatpush1.bf16.msra.mxu0 0
        %2202 = vmatprep.subr.bf16.mxu0 0
        %2203 = vmatpush1.bf16.msra.mxu0 0
        %2204 = vmatprep.subr.bf16.mxu0 0
        %2205 = vmatpush1.bf16.msra.mxu0 0
        %2206 = vmatprep.subr.bf16.mxu0 0
        %2207 = vmatpush1.bf16.msra.mxu0 0
        %2208 = vmatprep.subr.bf16.mxu0 0
        %2209 = vmatpush1.bf16.msra.mxu0 0
        %2210 = vmatprep.subr.bf16.mxu0 0
        %2211 = vmatpush1.bf16.msra.mxu0 0
        %2212 = vmatprep.subr.bf16.mxu0 0
        %2213 = vmatpush1.bf16.msra.mxu0 0
        %2214 = vmatprep.subr.bf16.mxu0 0
        %2215 = vmatpush1.bf16.msra.mxu0 %v2198
        %2216 = vmatprep.subr.bf16.mxu0 0
        %2217 = vmatpush2.bf16.msra.mxu0 0
        %2218 = vmatprep.subr.bf16.mxu0 0
        %2219 = vmatpush2.bf16.msra.mxu0 0
        %2220 = vmatprep.subr.bf16.mxu0 0
        %2221 = vmatpush2.bf16.msra.mxu0 0
        %2222 = vmatprep.subr.bf16.mxu0 0
        %2223 = vmatpush2.bf16.msra.mxu0 0
        %2224 = vmatprep.subr.bf16.mxu0 0
        %2225 = vmatpush2.bf16.msra.mxu0 0
        %2226 = vmatprep.subr.bf16.mxu0 0
        %2227 = vmatpush2.bf16.msra.mxu0 0
        %2228 = vmatprep.subr.bf16.mxu0 0
        %2229 = vmatpush2.bf16.msra.mxu0 0
        %2230 = vmatprep.subr.bf16.mxu0 0
        %2231 = vmatpush2.bf16.msra.mxu0 0
        %2232 = vmatprep.mubr.bf16.mxu0 0
        %2233 = vmatmul.mubr.bf16.gmra.mxu0 %v2195
        %v2234 = vpop.f32.mrf.mxu0
        %v2235 = vadd.f32 0.0, %v2234
        %v2236 = vpop.f32.mrf.mxu0
        %v2237 = vpop.f32.mrf.mxu0
        %v2238 = vpop.f32.mrf.mxu0
        %2239 = vdwg.mxu0
        %v2240 = vpack.c.bf16 %v2235, %v2235
        %v2242 = vsel %vm681, %v2240, 0
        %v2245 = vsel %vm747, %v1649, 0
        %2247 = vmatprep.subr.bf16.mxu0 0
        %2248 = vmatpush1.bf16.msra.mxu0 0
        %2249 = vmatprep.subr.bf16.mxu0 0
        %2250 = vmatpush1.bf16.msra.mxu0 0
        %2251 = vmatprep.subr.bf16.mxu0 0
        %2252 = vmatpush1.bf16.msra.mxu0 0
        %2253 = vmatprep.subr.bf16.mxu0 0
        %2254 = vmatpush1.bf16.msra.mxu0 0
        %2255 = vmatprep.subr.bf16.mxu0 0
        %2256 = vmatpush1.bf16.msra.mxu0 0
        %2257 = vmatprep.subr.bf16.mxu0 0
        %2258 = vmatpush1.bf16.msra.mxu0 0
        %2259 = vmatprep.subr.bf16.mxu0 0
        %2260 = vmatpush1.bf16.msra.mxu0 0
        %2261 = vmatprep.subr.bf16.mxu0 0
        %2262 = vmatpush1.bf16.msra.mxu0 %v2245
        %2263 = vmatprep.subr.bf16.mxu0 0
        %2264 = vmatpush2.bf16.msra.mxu0 0
        %2265 = vmatprep.subr.bf16.mxu0 0
        %2266 = vmatpush2.bf16.msra.mxu0 0
        %2267 = vmatprep.subr.bf16.mxu0 0
        %2268 = vmatpush2.bf16.msra.mxu0 0
        %2269 = vmatprep.subr.bf16.mxu0 0
        %2270 = vmatpush2.bf16.msra.mxu0 0
        %2271 = vmatprep.subr.bf16.mxu0 0
        %2272 = vmatpush2.bf16.msra.mxu0 0
        %2273 = vmatprep.subr.bf16.mxu0 0
        %2274 = vmatpush2.bf16.msra.mxu0 0
        %2275 = vmatprep.subr.bf16.mxu0 0
        %2276 = vmatpush2.bf16.msra.mxu0 0
        %2277 = vmatprep.subr.bf16.mxu0 0
        %2278 = vmatpush2.bf16.msra.mxu0 0
        %2279 = vmatprep.mubr.bf16.mxu0 0
        %2280 = vmatmul.mubr.bf16.gmra.mxu0 %v2242
        %v2281 = vpop.f32.mrf.mxu0
        %v2282 = vadd.f32 0.0, %v2281
        %v2283 = vpop.f32.mrf.mxu0
        %v2284 = vpop.f32.mrf.mxu0
        %v2285 = vpop.f32.mrf.mxu0
        %2286 = vdwg.mxu0
        %v2287 = vadd.f32 %v2127, %v2282
        %v2288 = vadd.f32 %v1544, %v2287
        %s2289 = scalar_lea.vmem %s7, 1
        %v2290 = vld [vmem:[%s2289] sm:$0x1]
        %v2292 = vlaneseq
        %v2293 = vshrl.u32 %v2292, 7
        %v2294 = vsub.s32 0, %v2293
        %v2295 = vrot.slane %v2290, %v2294
        %v2297 = vadd.f32 %v2288, %v2295
        %s2298 = scalar_lea.vmem %s8, 1
        %v2299 = vld [vmem:[%s2298] sm:$0x1]
        %s2300 = scalar_lea.vmem %s9, 1
        %v2301 = vld [vmem:[%s2300] sm:$0x1]
        %v2302 = vsel %vm577, %v2297, 0.0
        %2303 = vadd.xlane.f32.xlu0 %v2302
        %v2304 = vpop.xlane.xlu0 %2303
        %v2305 = vmul.f32 %v2304, %v581
        %v2306 = vsub.f32 %v2297, %v2305
        %v2307 = vmul.f32 %v2306, %v2306
        %v2308 = vsel %vm577, %v2307, 0.0
        %2309 = vadd.xlane.f32.xlu0 %v2308
        %v2310 = vpop.xlane.xlu0 %2309
        %v2311 = vmul.f32 %v2310, %v581
        %v2312 = vadd.f32 %v2311, 1e-05
        %v2313 = vrsqrt.pop %v2312
        %v2314 = vmul.f32 %v2306, %v2313
        %v2316 = vlaneseq
        %v2317 = vshrl.u32 %v2316, 7
        %v2318 = vsub.s32 0, %v2317
        %v2319 = vrot.slane %v2299, %v2318
        %v2321 = vmul.f32 %v2314, %v2319
        %v2323 = vlaneseq
        %v2324 = vshrl.u32 %v2323, 7
        %v2325 = vsub.s32 0, %v2324
        %v2326 = vrot.slane %v2301, %v2325
        %v2328 = vadd.f32 %v2321, %v2326
        %v2329 = vpack.c.bf16 %v2328, %v2328
        %s2330 = scalar_lea.vmem %s10, 16
        %v2331 = vld [vmem:[%s2330] sm:$0xf]
        %v2332 = vld [vmem:[%s2330 + $0x4] sm:$0xf]
        %v2333 = vld [vmem:[%s2330 + $0x8] sm:$0xf]
        %v2334 = vld [vmem:[%s2330 + $0xc] sm:$0xf]
        %s2335 = scalar_lea.vmem %s11, 1
        %v2336 = vld [vmem:[%s2335] sm:$0x1]
        %v2338 = vlaneseq
        %v2339 = vshrl.u32 %v2338, 7
        %v2340 = vsub.s32 0, %v2339
        %v2341 = vrot.slane %v2336, %v2340
        %v2347 = vunpack.c.l.b16 %v2331
        %v2348 = vunpack.c.l.b16 %v2332
        %v2349 = vunpack.c.l.b16 %v2333
        %v2350 = vunpack.c.l.b16 %v2334
        %v2351 = vpack.c.b16 %v2348, %v2347
        %v2352 = vpack.c.b16 %v2350, %v2349
        %v2356 = vsel %vm577, %v2329, 0
        %2358 = vmatprep.subr.bf16.mxu0 0
        %2359 = vmatpush1.bf16.msra.mxu0 0
        %2360 = vmatprep.subr.bf16.mxu0 0
        %2361 = vmatpush1.bf16.msra.mxu0 0
        %2362 = vmatprep.subr.bf16.mxu0 0
        %2363 = vmatpush1.bf16.msra.mxu0 0
        %2364 = vmatprep.subr.bf16.mxu0 0
        %2365 = vmatpush1.bf16.msra.mxu0 0
        %2366 = vmatprep.subr.bf16.mxu0 0
        %2367 = vmatpush1.bf16.msra.mxu0 0
        %2368 = vmatprep.subr.bf16.mxu0 0
        %2369 = vmatpush1.bf16.msra.mxu0 0
        %2370 = vmatprep.subr.bf16.mxu0 0
        %2371 = vmatpush1.bf16.msra.mxu0 %v2352
        %2372 = vmatprep.subr.bf16.mxu0 0
        %2373 = vmatpush1.bf16.msra.mxu0 %v2351
        %2374 = vmatprep.subr.bf16.mxu0 0
        %2375 = vmatpush2.bf16.msra.mxu0 0
        %2376 = vmatprep.subr.bf16.mxu0 0
        %2377 = vmatpush2.bf16.msra.mxu0 0
        %2378 = vmatprep.subr.bf16.mxu0 0
        %2379 = vmatpush2.bf16.msra.mxu0 0
        %2380 = vmatprep.subr.bf16.mxu0 0
        %2381 = vmatpush2.bf16.msra.mxu0 0
        %2382 = vmatprep.subr.bf16.mxu0 0
        %2383 = vmatpush2.bf16.msra.mxu0 0
        %2384 = vmatprep.subr.bf16.mxu0 0
        %2385 = vmatpush2.bf16.msra.mxu0 0
        %2386 = vmatprep.subr.bf16.mxu0 0
        %2387 = vmatpush2.bf16.msra.mxu0 0
        %2388 = vmatprep.subr.bf16.mxu0 0
        %2389 = vmatpush2.bf16.msra.mxu0 0
        %2390 = vmatprep.mubr.bf16.mxu0 0
        %2391 = vmatmul.mubr.bf16.gmra.mxu0 %v2356
        %v2392 = vpop.f32.mrf.mxu0
        %v2393 = vadd.f32 %v2341, %v2392
        %v2394 = vpop.f32.mrf.mxu0
        %v2395 = vpop.f32.mrf.mxu0
        %v2396 = vpop.f32.mrf.mxu0
        %2397 = vdwg.mxu0
        %v2398 = vmul.f32 %v2393, 0.5
        %v2399 = vmul.f32 %v2393, 0.044715
        %v2400 = vmul.f32 %v2399, %v2393
        %v2401 = vmul.f32 %v2400, %v2393
        %v2402 = vadd.f32 %v2393, %v2401
        %v2403 = vmul.f32 %v2402, 0.7978846
        %v2404 = vtanh.pop %v2403
        %v2405 = vadd.f32 %v2404, 1.0
        %v2406 = vmul.f32 %v2398, %v2405
        %v2407 = vpack.c.bf16 %v2406, %v2406
        %s2408 = scalar_lea.vmem %s12, 64
        %v2409 = vld [vmem:[%s2408] sm:$0xf]
        %v2410 = vld [vmem:[%s2408 + $0x4] sm:$0xf]
        %v2411 = vld [vmem:[%s2408 + $0x8] sm:$0xf]
        %v2412 = vld [vmem:[%s2408 + $0xc] sm:$0xf]
        %v2413 = vld [vmem:[%s2408 + $0x10] sm:$0xf]
        %v2414 = vld [vmem:[%s2408 + $0x14] sm:$0xf]
        %v2415 = vld [vmem:[%s2408 + $0x18] sm:$0xf]
        %v2416 = vld [vmem:[%s2408 + $0x1c] sm:$0xf]
        %v2417 = vld [vmem:[%s2408 + $0x20] sm:$0xf]
        %v2418 = vld [vmem:[%s2408 + $0x24] sm:$0xf]
        %v2419 = vld [vmem:[%s2408 + $0x28] sm:$0xf]
        %v2420 = vld [vmem:[%s2408 + $0x2c] sm:$0xf]
        %v2421 = vld [vmem:[%s2408 + $0x30] sm:$0xf]
        %v2422 = vld [vmem:[%s2408 + $0x34] sm:$0xf]
        %v2423 = vld [vmem:[%s2408 + $0x38] sm:$0xf]
        %v2424 = vld [vmem:[%s2408 + $0x3c] sm:$0xf]
        %v2441 = vunpack.c.l.b16 %v2409
        %v2442 = vunpack.c.l.b16 %v2410
        %v2443 = vunpack.c.l.b16 %v2411
        %v2444 = vunpack.c.l.b16 %v2412
        %v2445 = vunpack.c.l.b16 %v2413
        %v2446 = vunpack.c.l.b16 %v2414
        %v2447 = vunpack.c.l.b16 %v2415
        %v2448 = vunpack.c.l.b16 %v2416
        %v2449 = vunpack.c.l.b16 %v2417
        %v2450 = vunpack.c.l.b16 %v2418
        %v2451 = vunpack.c.l.b16 %v2419
        %v2452 = vunpack.c.l.b16 %v2420
        %v2453 = vunpack.c.l.b16 %v2421
        %v2454 = vunpack.c.l.b16 %v2422
        %v2455 = vunpack.c.l.b16 %v2423
        %v2456 = vunpack.c.l.b16 %v2424
        %v2457 = vpack.c.b16 %v2442, %v2441
        %v2458 = vpack.c.b16 %v2444, %v2443
        %v2459 = vpack.c.b16 %v2446, %v2445
        %v2460 = vpack.c.b16 %v2448, %v2447
        %v2461 = vpack.c.b16 %v2450, %v2449
        %v2462 = vpack.c.b16 %v2452, %v2451
        %v2463 = vpack.c.b16 %v2454, %v2453
        %v2464 = vpack.c.b16 %v2456, %v2455
        %2473 = vmatprep.subr.bf16.mxu0 0
        %2474 = vmatpush1.bf16.msra.mxu0 %v2464
        %2475 = vmatprep.subr.bf16.mxu0 0
        %2476 = vmatpush1.bf16.msra.mxu0 %v2463
        %2477 = vmatprep.subr.bf16.mxu0 0
        %2478 = vmatpush1.bf16.msra.mxu0 %v2462
        %2479 = vmatprep.subr.bf16.mxu0 0
        %2480 = vmatpush1.bf16.msra.mxu0 %v2461
        %2481 = vmatprep.subr.bf16.mxu0 0
        %2482 = vmatpush1.bf16.msra.mxu0 %v2460
        %2483 = vmatprep.subr.bf16.mxu0 0
        %2484 = vmatpush1.bf16.msra.mxu0 %v2459
        %2485 = vmatprep.subr.bf16.mxu0 0
        %2486 = vmatpush1.bf16.msra.mxu0 %v2458
        %2487 = vmatprep.subr.bf16.mxu0 0
        %2488 = vmatpush1.bf16.msra.mxu0 %v2457
        %2489 = vmatprep.subr.bf16.mxu0 0
        %2490 = vmatpush2.bf16.msra.mxu0 0
        %2491 = vmatprep.subr.bf16.mxu0 0
        %2492 = vmatpush2.bf16.msra.mxu0 0
        %2493 = vmatprep.subr.bf16.mxu0 0
        %2494 = vmatpush2.bf16.msra.mxu0 0
        %2495 = vmatprep.subr.bf16.mxu0 0
        %2496 = vmatpush2.bf16.msra.mxu0 0
        %2497 = vmatprep.subr.bf16.mxu0 0
        %2498 = vmatpush2.bf16.msra.mxu0 0
        %2499 = vmatprep.subr.bf16.mxu0 0
        %2500 = vmatpush2.bf16.msra.mxu0 0
        %2501 = vmatprep.subr.bf16.mxu0 0
        %2502 = vmatpush2.bf16.msra.mxu0 0
        %2503 = vmatprep.subr.bf16.mxu0 0
        %2504 = vmatpush2.bf16.msra.mxu0 0
        %2505 = vmatprep.mubr.bf16.mxu0 0
        %2506 = vmatmul.mubr.bf16.gmra.mxu0 %v2407
        %v2507 = vpop.f32.mrf.mxu0
        %v2508 = vadd.f32 0.0, %v2507
        %v2509 = vpop.f32.mrf.mxu0
        %v2510 = vpop.f32.mrf.mxu0
        %v2511 = vpop.f32.mrf.mxu0
        %2512 = vdwg.mxu0
        %v2513 = vadd.f32 %v2297, %v2508
        %s2514 = scalar_lea.vmem %s13, 1
        %v2515 = vld [vmem:[%s2514] sm:$0x1]
        %v2517 = vlaneseq
        %v2518 = vshrl.u32 %v2517, 7
        %v2519 = vsub.s32 0, %v2518
        %v2520 = vrot.slane %v2515, %v2519
        %v2522 = vadd.f32 %v2513, %v2520
        %v2523 = vld [vmem:[%s14] sm:$0x1]
        %v2524 = vld [vmem:[%s15] sm:$0x1]
        %v2525 = vsel %vm577, %v2522, 0.0
        %2526 = vadd.xlane.f32.xlu0 %v2525
        %v2527 = vpop.xlane.xlu0 %2526
        %v2528 = vmul.f32 %v2527, %v581
        %v2529 = vsub.f32 %v2522, %v2528
        %v2530 = vmul.f32 %v2529, %v2529
        %v2531 = vsel %vm577, %v2530, 0.0
        %2532 = vadd.xlane.f32.xlu0 %v2531
        %v2533 = vpop.xlane.xlu0 %2532
        %v2534 = vmul.f32 %v2533, %v581
        %v2535 = vadd.f32 %v2534, 1e-05
        %v2536 = vrsqrt.pop %v2535
        %v2537 = vmul.f32 %v2529, %v2536
        %v2539 = vlaneseq
        %v2540 = vshrl.u32 %v2539, 7
        %v2541 = vsub.s32 0, %v2540
        %v2542 = vrot.slane %v2523, %v2541
        %v2544 = vmul.f32 %v2537, %v2542
        %v2546 = vlaneseq
        %v2547 = vshrl.u32 %v2546, 7
        %v2548 = vsub.s32 0, %v2547
        %v2549 = vrot.slane %v2524, %v2548
        %v2551 = vadd.f32 %v2544, %v2549
        %v2552 = vpack.c.bf16 %v2551, %v2551
        %v2553 = vld [vmem:[%s16] sm:$0xf]
        %v2554 = vld [vmem:[%s16 + $0x4] sm:$0xf]
        %v2555 = vld [vmem:[%s16 + $0x8] sm:$0xf]
        %v2556 = vld [vmem:[%s16 + $0xc] sm:$0xf]
        %v2557 = vld [vmem:[%s16 + $0x10] sm:$0xf]
        %v2558 = vld [vmem:[%s16 + $0x14] sm:$0xf]
        %v2559 = vld [vmem:[%s16 + $0x18] sm:$0xf]
        %v2560 = vld [vmem:[%s16 + $0x1c] sm:$0xf]
        %v2561 = vld [vmem:[%s16 + $0x20] sm:$0xf]
        %v2562 = vld [vmem:[%s16 + $0x24] sm:$0xf]
        %v2563 = vld [vmem:[%s16 + $0x28] sm:$0xf]
        %v2564 = vld [vmem:[%s16 + $0x2c] sm:$0xf]
        %v2565 = vld [vmem:[%s16 + $0x30] sm:$0xf]
        %v2566 = vld [vmem:[%s16 + $0x34] sm:$0xf]
        %v2567 = vld [vmem:[%s16 + $0x38] sm:$0xf]
        %v2568 = vld [vmem:[%s16 + $0x3c] sm:$0xf]
        %v2569 = vld [vmem:[%s16 + $0x40] sm:$0xf]
        %v2570 = vld [vmem:[%s16 + $0x44] sm:$0xf]
        %v2571 = vld [vmem:[%s16 + $0x48] sm:$0xf]
        %v2572 = vld [vmem:[%s16 + $0x4c] sm:$0xf]
        %v2573 = vld [vmem:[%s16 + $0x50] sm:$0xf]
        %v2574 = vld [vmem:[%s16 + $0x54] sm:$0xf]
        %v2575 = vld [vmem:[%s16 + $0x58] sm:$0xf]
        %v2576 = vld [vmem:[%s16 + $0x5c] sm:$0xf]
        %v2577 = vld [vmem:[%s16 + $0x60] sm:$0xf]
        %v2578 = vld [vmem:[%s16 + $0x64] sm:$0xf]
        %v2579 = vld [vmem:[%s16 + $0x68] sm:$0xf]
        %v2580 = vld [vmem:[%s16 + $0x6c] sm:$0xf]
        %v2581 = vld [vmem:[%s16 + $0x70] sm:$0xf]
        %v2582 = vld [vmem:[%s16 + $0x74] sm:$0xf]
        %v2583 = vld [vmem:[%s16 + $0x78] sm:$0xf]
        %v2584 = vld [vmem:[%s16 + $0x7c] sm:$0xf]
        %v2617 = vunpack.c.l.b16 %v2553
        %v2618 = vunpack.c.l.b16 %v2554
        %v2619 = vunpack.c.l.b16 %v2555
        %v2620 = vunpack.c.l.b16 %v2556
        %v2621 = vunpack.c.l.b16 %v2557
        %v2622 = vunpack.c.l.b16 %v2558
        %v2623 = vunpack.c.l.b16 %v2559
        %v2624 = vunpack.c.l.b16 %v2560
        %v2625 = vunpack.c.l.b16 %v2561
        %v2626 = vunpack.c.l.b16 %v2562
        %v2627 = vunpack.c.l.b16 %v2563
        %v2628 = vunpack.c.l.b16 %v2564
        %v2629 = vunpack.c.l.b16 %v2565
        %v2630 = vunpack.c.l.b16 %v2566
        %v2631 = vunpack.c.l.b16 %v2567
        %v2632 = vunpack.c.l.b16 %v2568
        %v2633 = vunpack.c.l.b16 %v2569
        %v2634 = vunpack.c.l.b16 %v2570
        %v2635 = vunpack.c.l.b16 %v2571
        %v2636 = vunpack.c.l.b16 %v2572
        %v2637 = vunpack.c.l.b16 %v2573
        %v2638 = vunpack.c.l.b16 %v2574
        %v2639 = vunpack.c.l.b16 %v2575
        %v2640 = vunpack.c.l.b16 %v2576
        %v2641 = vunpack.c.l.b16 %v2577
        %v2642 = vunpack.c.l.b16 %v2578
        %v2643 = vunpack.c.l.b16 %v2579
        %v2644 = vunpack.c.l.b16 %v2580
        %v2645 = vunpack.c.l.b16 %v2581
        %v2646 = vunpack.c.l.b16 %v2582
        %v2647 = vunpack.c.l.b16 %v2583
        %v2648 = vunpack.c.l.b16 %v2584
        %v2649 = vpack.c.b16 %v2618, %v2617
        %v2650 = vpack.c.b16 %v2620, %v2619
        %v2651 = vpack.c.b16 %v2622, %v2621
        %v2652 = vpack.c.b16 %v2624, %v2623
        %v2653 = vpack.c.b16 %v2626, %v2625
        %v2654 = vpack.c.b16 %v2628, %v2627
        %v2655 = vpack.c.b16 %v2630, %v2629
        %v2656 = vpack.c.b16 %v2632, %v2631
        %v2657 = vpack.c.b16 %v2634, %v2633
        %v2658 = vpack.c.b16 %v2636, %v2635
        %v2659 = vpack.c.b16 %v2638, %v2637
        %v2660 = vpack.c.b16 %v2640, %v2639
        %v2661 = vpack.c.b16 %v2642, %v2641
        %v2662 = vpack.c.b16 %v2644, %v2643
        %v2663 = vpack.c.b16 %v2646, %v2645
        %v2664 = vpack.c.b16 %v2648, %v2647
        %v2666 = vsel %vm577, %v2552, 0
        %v2669 = vsel %vm577, %v2649, 0
        %v2672 = vsel %vm577, %v2650, 0
        %v2675 = vsel %vm577, %v2651, 0
        %v2678 = vsel %vm577, %v2652, 0
        %v2681 = vsel %vm577, %v2653, 0
        %v2684 = vsel %vm577, %v2654, 0
        %v2687 = vsel %vm577, %v2655, 0
        %v2690 = vsel %vm577, %v2656, 0
        %v2693 = vsel %vm577, %v2657, 0
        %v2696 = vsel %vm577, %v2658, 0
        %v2699 = vsel %vm577, %v2659, 0
        %v2702 = vsel %vm577, %v2660, 0
        %v2705 = vsel %vm577, %v2661, 0
        %v2708 = vsel %vm577, %v2662, 0
        %v2711 = vsel %vm577, %v2663, 0
        %v2714 = vsel %vm577, %v2664, 0
        %2716 = vmatprep.subr.bf16.mxu0 0
        %2717 = vmatpush1.bf16.xpose.msra.mxu0 %v2690
        %2718 = vmatprep.subr.bf16.mxu0 0
        %2719 = vmatpush1.bf16.xpose.msra.mxu0 %v2687
        %2720 = vmatprep.subr.bf16.mxu0 0
        %2721 = vmatpush1.bf16.xpose.msra.mxu0 %v2684
        %2722 = vmatprep.subr.bf16.mxu0 0
        %2723 = vmatpush1.bf16.xpose.msra.mxu0 %v2681
        %2724 = vmatprep.subr.bf16.mxu0 0
        %2725 = vmatpush1.bf16.xpose.msra.mxu0 %v2678
        %2726 = vmatprep.subr.bf16.mxu0 0
        %2727 = vmatpush1.bf16.xpose.msra.mxu0 %v2675
        %2728 = vmatprep.subr.bf16.mxu0 0
        %2729 = vmatpush1.bf16.xpose.msra.mxu0 %v2672
        %2730 = vmatprep.subr.bf16.mxu0 0
        %2731 = vmatpush1.bf16.xpose.msra.mxu0 %v2669
        %2732 = vmatprep.subr.bf16.mxu0 0
        %2733 = vmatpush2.bf16.xpose.msra.mxu0 %v2714
        %2734 = vmatprep.subr.bf16.mxu0 0
        %2735 = vmatpush2.bf16.xpose.msra.mxu0 %v2711
        %2736 = vmatprep.subr.bf16.mxu0 0
        %2737 = vmatpush2.bf16.xpose.msra.mxu0 %v2708
        %2738 = vmatprep.subr.bf16.mxu0 0
        %2739 = vmatpush2.bf16.xpose.msra.mxu0 %v2705
        %2740 = vmatprep.subr.bf16.mxu0 0
        %2741 = vmatpush2.bf16.xpose.msra.mxu0 %v2702
        %2742 = vmatprep.subr.bf16.mxu0 0
        %2743 = vmatpush2.bf16.xpose.msra.mxu0 %v2699
        %2744 = vmatprep.subr.bf16.mxu0 0
        %2745 = vmatpush2.bf16.xpose.msra.mxu0 %v2696
        %2746 = vmatprep.subr.bf16.mxu0 0
        %2747 = vmatpush2.bf16.xpose.msra.mxu0 %v2693
        %2748 = vmatprep.mubr.bf16.mxu0 0
        %2749 = vmatmul.mubr.bf16.gmra.mxu0 %v2666
        %v2750 = vpop.f32.mrf.mxu0
        %v2751 = vadd.f32 0.0, %v2750
        %v2752 = vpop.f32.mrf.mxu0
        %v2753 = vadd.f32 0.0, %v2752
        %v2754 = vpop.f32.mrf.mxu0
        %v2755 = vpop.f32.mrf.mxu0
        %2756 = vdwg.mxu0
        %2757 = vst [vmem:[%s550] sm:$0xff] %v2751
        %2758 = vst [vmem:[%s550 + $0x8] sm:$0xff] %v2753
        %s2759 = sand.u32 %s406, 1
        %s2760 = scalar_lea.sflag [#allocation3], %s2759
        %s2761 = sand.u32 %s406, 1
        %s2762 = smul.addr %s2761, 16
        %s2763 = scalar_lea.vmem [#allocation2], %s2762
        // Predicated region
        $region89: #{instruction_generation_forward.1} parent=87 // pred_check
          %p2764 = pneg %p416
        $region90: #{instruction_generation_forward.1} parent=87 // pred_check_branch
          %2766 = sbr.rel (%p2764) target = $region92
        $region91: #{instruction_generation_forward.1} parent=87 // pred_region
          %s2768 = ssub.s32 256, 256
          %2769 = vsyncadd %s2760, %s2768
          %s2770 = smul.addr %s31, 2
          %s2771 = smul.addr %s2770, 128
          %s2772 = scalar_lea.hbm %s17, %s2771
          %s2774 = sshll.u32 %s2763, 4
          %s2775 = int_to_ptr.vmem [resolvable:$true] %s2774
          %2777 = dma.vmem_to_hbm [thread:$0]  %s2775, 256, %s2772, %s2760
        $region92: #{instruction_generation_forward.1} parent=87 // pred_fallthru
          _
      $region88: #{instruction_generation_forward.1} parent=5 // pred_fallthru
        _
      %p2778 = scmp.le.s32.totalorder 2, %s26
      // Predicated region
      $region93: #{instruction_generation_forward.1} parent=5 // pred_check
        %p2779 = pneg %p2778
      $region94: #{instruction_generation_forward.1} parent=5 // pred_check_branch
        %2781 = sbr.rel (%p2779) target = $region96
      $region95: #{instruction_generation_forward.1} parent=5 // pred_region
        %s2782 = ssub.s32 %s26, 2
        // Predicated region
        $region97: #{instruction_generation_forward.1} parent=95 // pred_check
          %p2783 = pneg %p422
        $region98: #{instruction_generation_forward.1} parent=95 // pred_check_branch
          %2785 = sbr.rel (%p2783) target = $region100
        $region99: #{instruction_generation_forward.1} parent=95 // pred_region
          %s2786 = sand.u32 %s407, 1
          %s2787 = scalar_lea.sflag [#allocation3], %s2786
          %s2788 = sand.u32 %s407, 1
          %s2789 = smul.addr %s2788, 16
          %s2790 = scalar_lea.vmem [#allocation2], %s2789
          %2791 = dma.done %s2787, 256
        $region100: #{instruction_generation_forward.1} parent=95 // pred_fallthru
          _
      $region96: #{instruction_generation_forward.1} parent=5 // pred_fallthru
        _
    $region6: #{instruction_generation_forward.1} parent=1 // loop_footer
      %s30 = sadd.s32 1, %s26
    $region7: #{instruction_generation_forward.1} parent=1 // loop_footer_branch
      %25 = sbr.rel target = $region3
    $region8: #{instruction_generation_forward.1} parent=1 // loop_exit
      _
    %2792 = vsyncpa [#allocation3], 1
    %s2793 = scalar_lea.sflag [#allocation3], 1
    %2794 = vsyncpa %s2793, 1

</llo_original>
